<compile_context>
chip_gen: v6e
topology: v6e:2x2x1
jax: 0.10.0
libtpu: 0.0.40
codegen_flags: <defaults>
</compile_context>

<pallas_src>
import functools

import jax
import jax.numpy as jnp
from jax import lax
from jax.experimental import pallas as pl
from jax.experimental.pallas import tpu as pltpu


def _round_up(x, m):
    return ((x + m - 1) // m) * m


def gru_conv_kernel(gi_ref, whh_ref, bhhn_ref, wconv_ref, bconv_ref,
                    out_ref, hall_ref, *, hidden_pad, seq_len):
    """Fused GRU recurrence + deferred (1,T) conv contraction.

    gi_ref:    (T, BN, 3*Hp)   precomputed x@W_ih + b_ih (+ b_hh for r,z),
                               gate g in lanes [g*Hp, g*Hp+Hp)
    whh_ref:   (Hp, 3*Hp)      W_hh^T, gate-lane-padded
    bhhn_ref:  (1, Hp)         b_hn (new-gate hidden bias), lane-padded
    wconv_ref: (T*Hp, Op)      conv weight flattened over (t, h), lane-padded
    bconv_ref: (1, Op)         conv bias, lane-padded
    out_ref:   (BN, Op)        conv output (single lane-dense store)
    hall_ref:  (BN, T*Hp)      VMEM scratch holding all hidden states
    """
    Hp = hidden_pad
    BN = out_ref.shape[0]

    # Hoisted once (JAX does not CSE broadcast_in_dim inside the unroll).
    bhh_n = jnp.broadcast_to(bhhn_ref[...], (BN, Hp))

    h = jnp.zeros((BN, Hp), jnp.float32)          # register-resident state
    for t in range(seq_len):                      # static unroll, static slices
        gi = gi_ref[t]                                            # (BN, 3Hp)
        gh = jnp.dot(h, whh_ref[...],
                     preferred_element_type=jnp.float32)          # (BN, 3Hp)
        r = jax.nn.sigmoid(gi[:, 0:Hp] + gh[:, 0:Hp])
        z = jax.nn.sigmoid(gi[:, Hp:2 * Hp] + gh[:, Hp:2 * Hp])
        n = jnp.tanh(gi[:, 2 * Hp:3 * Hp] + r * (gh[:, 2 * Hp:3 * Hp] + bhh_n))
        h = (1.0 - z) * n + z * h
        # Lane-group aligned store, off the recurrence dependency chain.
        hall_ref[:, t * Hp:(t + 1) * Hp] = h

    # One large matmul (K = T*Hp) + single lane-dense output store.
    out_ref[...] = (jnp.dot(hall_ref[...], wconv_ref[...],
                            preferred_element_type=jnp.float32)
                    + bconv_ref[...]).astype(out_ref.dtype)


def gru_conv_forward(x, params, *, hidden_dim, out_dim):
    """x: (B, in_dim, N, T) NCHW, float32.  Returns (B, out_dim, N, 1)."""
    B, C, N, T = x.shape
    BN = B * N
    H = hidden_dim
    Hp = _round_up(H, 128)          # per-gate lane group
    Op = _round_up(out_dim, 128)    # lane-dense output
    BNp = _round_up(BN, 8)          # sublane-friendly row count

    # (B, C, N, T) -> (T, B, N, C) -> (T, BN, C)   (time-major sequence)
    x_seq = jnp.transpose(x, (3, 0, 2, 1)).reshape(T, BN, C).astype(jnp.float32)

    w_ih_t = params["w_ih"].T.astype(jnp.float32)          # (C, 3H)  [r|z|n]
    w_hh_t = params["w_hh"].T.astype(jnp.float32)          # (H, 3H)
    b_ih = params["b_ih"].astype(jnp.float32)              # (3H,)
    b_hh = params["b_hh"].astype(jnp.float32)              # (3H,)

    # Gate-lane-padded input/hidden weights and folded biases.
    w_ih_pad = jnp.zeros((C, 3 * Hp), jnp.float32)
    whh_pad = jnp.zeros((Hp, 3 * Hp), jnp.float32)
    bias_pad = jnp.zeros((3 * Hp,), jnp.float32)
    for g in range(3):
        w_ih_pad = w_ih_pad.at[:, g * Hp:g * Hp + H].set(w_ih_t[:, g * H:(g + 1) * H])
        whh_pad = whh_pad.at[:H, g * Hp:g * Hp + H].set(w_hh_t[:, g * H:(g + 1) * H])
        bb = b_ih[g * H:(g + 1) * H]
        if g < 2:                       # fold b_hh into the r/z gate biases
            bb = bb + b_hh[g * H:(g + 1) * H]
        bias_pad = bias_pad.at[g * Hp:g * Hp + H].set(bb)
    bhh_n = jnp.zeros((1, Hp), jnp.float32).at[0, :H].set(b_hh[2 * H:3 * H])

    # Precompute the input projection for all timesteps (K = in_dim is tiny).
    gi_all = jnp.einsum("tbc,cg->tbg", x_seq, w_ih_pad) + bias_pad  # (T, BN, 3Hp)

    # Conv weight flattened over (t, h) for one big post-loop matmul.
    wc = jnp.transpose(params["conv_w"][:, :, 0, :], (2, 1, 0))     # (T, H, out)
    wconv = jnp.zeros((T, Hp, Op), jnp.float32).at[:, :H, :out_dim].set(
        wc.astype(jnp.float32)).reshape(T * Hp, Op)
    bconv = jnp.zeros((1, Op), jnp.float32).at[0, :out_dim].set(
        params["conv_b"].astype(jnp.float32))

    if BNp != BN:
        gi_all = jnp.pad(gi_all, ((0, 0), (0, BNp - BN), (0, 0)))

    kernel = functools.partial(gru_conv_kernel, hidden_pad=Hp, seq_len=T)

    # TODO(synk): for large BN on v7x, add a "parallel" grid axis over BN
    # blocks to use the second TensorCore; at BN=32 it is pure overhead.
    out = pl.pallas_call(
        kernel,
        out_shape=jax.ShapeDtypeStruct((BNp, Op), jnp.float32),
        grid_spec=pltpu.PrefetchScalarGridSpec(
            num_scalar_prefetch=0,
            grid=(1,),
            in_specs=[
                pl.BlockSpec((T, BNp, 3 * Hp), lambda i: (0, 0, 0)),
                pl.BlockSpec((Hp, 3 * Hp), lambda i: (0, 0)),
                pl.BlockSpec((1, Hp), lambda i: (0, 0)),
                pl.BlockSpec((T * Hp, Op), lambda i: (0, 0)),
                pl.BlockSpec((1, Op), lambda i: (0, 0)),
            ],
            out_specs=pl.BlockSpec((BNp, Op), lambda i: (0, 0)),
            scratch_shapes=[pltpu.VMEM((BNp, T * Hp), jnp.float32)],
        ),
        compiler_params=pltpu.CompilerParams(
            dimension_semantics=("arbitrary",)),
    )(gi_all, whh_pad, bhh_n, wconv, bconv)

    out = out[:BN, :out_dim]
    # (BN, out) -> (B, N, out) -> (B, out, N, 1)
    return jnp.transpose(out.reshape(B, N, out_dim), (0, 2, 1))[..., None]


def reference_forward(x, params, *, hidden_dim, out_dim):
    """Pure-JAX reference mirroring the PyTorch module."""
    B, C, N, T = x.shape
    BN = B * N
    H = hidden_dim
    x_seq = jnp.transpose(x, (0, 2, 3, 1)).reshape(BN, T, C)
    w_ih, w_hh = params["w_ih"], params["w_hh"]
    b_ih, b_hh = params["b_ih"], params["b_hh"]

    def step(h, x_t):
        gi = x_t @ w_ih.T + b_ih
        gh = h @ w_hh.T + b_hh
        r = jax.nn.sigmoid(gi[:, :H] + gh[:, :H])
        z = jax.nn.sigmoid(gi[:, H:2 * H] + gh[:, H:2 * H])
        n = jnp.tanh(gi[:, 2 * H:] + r * gh[:, 2 * H:])
        h_new = (1.0 - z) * n + z * h
        return h_new, h_new

    h0 = jnp.zeros((BN, H), jnp.float32)
    _, hs = lax.scan(step, h0, jnp.transpose(x_seq, (1, 0, 2)))   # (T, BN, H)
    gru_out = jnp.transpose(hs, (1, 0, 2))                        # (BN, T, H)
    out = jnp.einsum("bth,oht->bo", gru_out,
                     params["conv_w"][:, :, 0, :]) + params["conv_b"]
    return jnp.transpose(out.reshape(B, N, out_dim), (0, 2, 1))[..., None]


def init_params(key, *, in_dim, hidden_dim, out_dim, length):
    """Deterministic init matching the PyTorch module's parameter shapes."""
    ks = jax.random.split(key, 6)
    H = hidden_dim
    bound = 1.0 / jnp.sqrt(jnp.float32(H))
    conv_fan_in = hidden_dim * 1 * length
    cbound = 1.0 / jnp.sqrt(jnp.float32(conv_fan_in))
    return {
        "w_ih": jax.random.uniform(ks[0], (3 * H, in_dim), jnp.float32, -bound, bound),
        "w_hh": jax.random.uniform(ks[1], (3 * H, H), jnp.float32, -bound, bound),
        "b_ih": jax.random.uniform(ks[2], (3 * H,), jnp.float32, -bound, bound),
        "b_hh": jax.random.uniform(ks[3], (3 * H,), jnp.float32, -bound, bound),
        "conv_w": jax.random.uniform(ks[4], (out_dim, hidden_dim, 1, length),
                                     jnp.float32, -cbound, cbound),
        "conv_b": jax.random.uniform(ks[5], (out_dim,), jnp.float32, -cbound, cbound),
    }


if __name__ == "__main__":
    length, in_dim, hidden_dim, out_dim = 12, 1, 32, 12
    B, N = 2, 16                       # batch, number of nodes

    key = jax.random.PRNGKey(0)
    pkey, xkey = jax.random.split(key)
    params = init_params(pkey, in_dim=in_dim, hidden_dim=hidden_dim,
                         out_dim=out_dim, length=length)
    x = jax.random.normal(xkey, (B, in_dim, N, length), jnp.float32)

    out = gru_conv_forward(x, params, hidden_dim=hidden_dim, out_dim=out_dim)
    out = jax.block_until_ready(out)

    ref = reference_forward(x, params, hidden_dim=hidden_dim, out_dim=out_dim)
    assert out.shape == (B, out_dim, N, 1), out.shape
    assert jnp.allclose(out, ref, rtol=1e-5, atol=1e-5), \
        float(jnp.max(jnp.abs(out - ref)))

    print("KERNEL_OK")
</pallas_src>

<mosaic_0001>
module attributes {stable_mosaic.version = 11 : i64} {
  func.func @gru_conv_kernel(%arg0: i32, %arg1: memref<12x32x384xf32, #tpu.memory_space<vmem>>, %arg2: memref<128x384xf32, #tpu.memory_space<vmem>>, %arg3: memref<1x128xf32, #tpu.memory_space<vmem>>, %arg4: memref<1536x128xf32, #tpu.memory_space<vmem>>, %arg5: memref<1x128xf32, #tpu.memory_space<vmem>>, %arg6: memref<32x128xf32, #tpu.memory_space<vmem>>, %arg7: memref<32x1536xf32, #tpu.memory_space<vmem>>) attributes {dimension_semantics = [#tpu.dimension_semantics<arbitrary>], iteration_bounds = array<i64: 1>, scalar_prefetch = 0 : i64, scratch_operands = 1 : i64, tpu.core_type = #tpu.core_type<tc>, window_params = [{pipeline_mode = #tpu.pipeline_mode<synchronous>, transform_indices = @transform_0, window_bounds = array<i64: 12, 32, 384>}, {pipeline_mode = #tpu.pipeline_mode<synchronous>, transform_indices = @transform_1, window_bounds = array<i64: 128, 384>}, {pipeline_mode = #tpu.pipeline_mode<synchronous>, transform_indices = @transform_2, window_bounds = array<i64: 1, 128>}, {pipeline_mode = #tpu.pipeline_mode<synchronous>, transform_indices = @transform_3, window_bounds = array<i64: 1536, 128>}, {pipeline_mode = #tpu.pipeline_mode<synchronous>, transform_indices = @transform_4, window_bounds = array<i64: 1, 128>}, {pipeline_mode = #tpu.pipeline_mode<synchronous>, transform_indices = @transform_5, window_bounds = array<i64: 32, 128>}]} {
    %c0 = arith.constant 0 : index
    %c0_0 = arith.constant 0 : index
    %0 = vector.load %arg3[%c0, %c0_0] : memref<1x128xf32, #tpu.memory_space<vmem>>, vector<1x128xf32>
    %1 = vector.shape_cast %0 : vector<1x128xf32> to vector<1x128xf32>
    %2 = vector.broadcast %1 : vector<1x128xf32> to vector<32x128xf32>
    %cst = arith.constant 0.000000e+00 : f32
    %3 = vector.broadcast %cst : f32 to vector<32x128xf32>
    %c0_1 = arith.constant 0 : index
    %c0_2 = arith.constant 0 : index
    %c0_3 = arith.constant 0 : index
    %4 = vector.load %arg1[%c0_1, %c0_2, %c0_3] : memref<12x32x384xf32, #tpu.memory_space<vmem>>, vector<1x32x384xf32>
    %5 = vector.shape_cast %4 : vector<1x32x384xf32> to vector<32x384xf32>
    %c0_4 = arith.constant 0 : index
    %c0_5 = arith.constant 0 : index
    %6 = vector.load %arg2[%c0_4, %c0_5] : memref<128x384xf32, #tpu.memory_space<vmem>>, vector<128x384xf32>
    %cst_6 = arith.constant dense<0.000000e+00> : vector<32x384xf32>
    %7 = tpu.matmul %3, %6, %cst_6 {dimension_numbers = #tpu.dot_dimension_numbers<[1], [0], [0], [1], [0, 0, 1, 1], [], []>} : vector<32x128xf32>, vector<128x384xf32>, vector<32x384xf32> -> vector<32x384xf32>
    %8 = vector.extract_strided_slice %5 {offsets = [0, 0], sizes = [32, 128], strides = [1, 1]} : vector<32x384xf32> to vector<32x128xf32>
    %9 = vector.extract_strided_slice %7 {offsets = [0, 0], sizes = [32, 128], strides = [1, 1]} : vector<32x384xf32> to vector<32x128xf32>
    %10 = arith.addf %8, %9 : vector<32x128xf32>
    %11 = arith.negf %10 : vector<32x128xf32>
    %12 = math.exp %11 : vector<32x128xf32>
    %cst_7 = arith.constant 1.000000e+00 : f32
    %13 = vector.broadcast %cst_7 : f32 to vector<32x128xf32>
    %14 = arith.addf %13, %12 : vector<32x128xf32>
    %15 = arith.divf %13, %14 : vector<32x128xf32>
    %16 = vector.extract_strided_slice %5 {offsets = [0, 128], sizes = [32, 128], strides = [1, 1]} : vector<32x384xf32> to vector<32x128xf32>
    %17 = vector.extract_strided_slice %7 {offsets = [0, 128], sizes = [32, 128], strides = [1, 1]} : vector<32x384xf32> to vector<32x128xf32>
    %18 = arith.addf %16, %17 : vector<32x128xf32>
    %19 = arith.negf %18 : vector<32x128xf32>
    %20 = math.exp %19 : vector<32x128xf32>
    %cst_8 = arith.constant 1.000000e+00 : f32
    %21 = vector.broadcast %cst_8 : f32 to vector<32x128xf32>
    %22 = arith.addf %21, %20 : vector<32x128xf32>
    %23 = arith.divf %21, %22 : vector<32x128xf32>
    %24 = vector.extract_strided_slice %5 {offsets = [0, 256], sizes = [32, 128], strides = [1, 1]} : vector<32x384xf32> to vector<32x128xf32>
    %25 = vector.extract_strided_slice %7 {offsets = [0, 256], sizes = [32, 128], strides = [1, 1]} : vector<32x384xf32> to vector<32x128xf32>
    %26 = arith.addf %25, %2 : vector<32x128xf32>
    %27 = arith.mulf %15, %26 : vector<32x128xf32>
    %28 = arith.addf %24, %27 : vector<32x128xf32>
    %29 = math.tanh %28 : vector<32x128xf32>
    %cst_9 = arith.constant 1.000000e+00 : f32
    %30 = vector.broadcast %cst_9 : f32 to vector<32x128xf32>
    %31 = arith.subf %30, %23 : vector<32x128xf32>
    %32 = arith.mulf %31, %29 : vector<32x128xf32>
    %33 = arith.mulf %23, %3 : vector<32x128xf32>
    %34 = arith.addf %32, %33 : vector<32x128xf32>
    %c0_10 = arith.constant 0 : index
    %c0_11 = arith.constant 0 : index
    %35 = vector.load %arg7[%c0_10, %c0_11] : memref<32x1536xf32, #tpu.memory_space<vmem>>, vector<32x128xf32>
    tpu.vector_store %arg7[%c0_10, %c0_11], %34 {strides = array<i32>} : memref<32x1536xf32, #tpu.memory_space<vmem>>, vector<32x128xf32>,
    %c1 = arith.constant 1 : index
    %c0_12 = arith.constant 0 : index
    %c0_13 = arith.constant 0 : index
    %36 = vector.load %arg1[%c1, %c0_12, %c0_13] : memref<12x32x384xf32, #tpu.memory_space<vmem>>, vector<1x32x384xf32>
    %37 = vector.shape_cast %36 : vector<1x32x384xf32> to vector<32x384xf32>
    %c0_14 = arith.constant 0 : index
    %c0_15 = arith.constant 0 : index
    %38 = vector.load %arg2[%c0_14, %c0_15] : memref<128x384xf32, #tpu.memory_space<vmem>>, vector<128x384xf32>
    %cst_16 = arith.constant dense<0.000000e+00> : vector<32x384xf32>
    %39 = tpu.matmul %34, %38, %cst_16 {dimension_numbers = #tpu.dot_dimension_numbers<[1], [0], [0], [1], [0, 0, 1, 1], [], []>} : vector<32x128xf32>, vector<128x384xf32>, vector<32x384xf32> -> vector<32x384xf32>
    %40 = vector.extract_strided_slice %37 {offsets = [0, 0], sizes = [32, 128], strides = [1, 1]} : vector<32x384xf32> to vector<32x128xf32>
    %41 = vector.extract_strided_slice %39 {offsets = [0, 0], sizes = [32, 128], strides = [1, 1]} : vector<32x384xf32> to vector<32x128xf32>
    %42 = arith.addf %40, %41 : vector<32x128xf32>
    %43 = arith.negf %42 : vector<32x128xf32>
    %44 = math.exp %43 : vector<32x128xf32>
    %cst_17 = arith.constant 1.000000e+00 : f32
    %45 = vector.broadcast %cst_17 : f32 to vector<32x128xf32>
    %46 = arith.addf %45, %44 : vector<32x128xf32>
    %47 = arith.divf %45, %46 : vector<32x128xf32>
    %48 = vector.extract_strided_slice %37 {offsets = [0, 128], sizes = [32, 128], strides = [1, 1]} : vector<32x384xf32> to vector<32x128xf32>
    %49 = vector.extract_strided_slice %39 {offsets = [0, 128], sizes = [32, 128], strides = [1, 1]} : vector<32x384xf32> to vector<32x128xf32>
    %50 = arith.addf %48, %49 : vector<32x128xf32>
    %51 = arith.negf %50 : vector<32x128xf32>
    %52 = math.exp %51 : vector<32x128xf32>
    %cst_18 = arith.constant 1.000000e+00 : f32
    %53 = vector.broadcast %cst_18 : f32 to vector<32x128xf32>
    %54 = arith.addf %53, %52 : vector<32x128xf32>
    %55 = arith.divf %53, %54 : vector<32x128xf32>
    %56 = vector.extract_strided_slice %37 {offsets = [0, 256], sizes = [32, 128], strides = [1, 1]} : vector<32x384xf32> to vector<32x128xf32>
    %57 = vector.extract_strided_slice %39 {offsets = [0, 256], sizes = [32, 128], strides = [1, 1]} : vector<32x384xf32> to vector<32x128xf32>
    %58 = arith.addf %57, %2 : vector<32x128xf32>
    %59 = arith.mulf %47, %58 : vector<32x128xf32>
    %60 = arith.addf %56, %59 : vector<32x128xf32>
    %61 = math.tanh %60 : vector<32x128xf32>
    %cst_19 = arith.constant 1.000000e+00 : f32
    %62 = vector.broadcast %cst_19 : f32 to vector<32x128xf32>
    %63 = arith.subf %62, %55 : vector<32x128xf32>
    %64 = arith.mulf %63, %61 : vector<32x128xf32>
    %65 = arith.mulf %55, %34 : vector<32x128xf32>
    %66 = arith.addf %64, %65 : vector<32x128xf32>
    %c0_20 = arith.constant 0 : index
    %c128 = arith.constant 128 : index
    %67 = vector.load %arg7[%c0_20, %c128] : memref<32x1536xf32, #tpu.memory_space<vmem>>, vector<32x128xf32>
    tpu.vector_store %arg7[%c0_20, %c128], %66 {strides = array<i32>} : memref<32x1536xf32, #tpu.memory_space<vmem>>, vector<32x128xf32>,
    %c2 = arith.constant 2 : index
    %c0_21 = arith.constant 0 : index
    %c0_22 = arith.constant 0 : index
    %68 = vector.load %arg1[%c2, %c0_21, %c0_22] : memref<12x32x384xf32, #tpu.memory_space<vmem>>, vector<1x32x384xf32>
    %69 = vector.shape_cast %68 : vector<1x32x384xf32> to vector<32x384xf32>
    %c0_23 = arith.constant 0 : index
    %c0_24 = arith.constant 0 : index
    %70 = vector.load %arg2[%c0_23, %c0_24] : memref<128x384xf32, #tpu.memory_space<vmem>>, vector<128x384xf32>
    %cst_25 = arith.constant dense<0.000000e+00> : vector<32x384xf32>
    %71 = tpu.matmul %66, %70, %cst_25 {dimension_numbers = #tpu.dot_dimension_numbers<[1], [0], [0], [1], [0, 0, 1, 1], [], []>} : vector<32x128xf32>, vector<128x384xf32>, vector<32x384xf32> -> vector<32x384xf32>
    %72 = vector.extract_strided_slice %69 {offsets = [0, 0], sizes = [32, 128], strides = [1, 1]} : vector<32x384xf32> to vector<32x128xf32>
    %73 = vector.extract_strided_slice %71 {offsets = [0, 0], sizes = [32, 128], strides = [1, 1]} : vector<32x384xf32> to vector<32x128xf32>
    %74 = arith.addf %72, %73 : vector<32x128xf32>
    %75 = arith.negf %74 : vector<32x128xf32>
    %76 = math.exp %75 : vector<32x128xf32>
    %cst_26 = arith.constant 1.000000e+00 : f32
    %77 = vector.broadcast %cst_26 : f32 to vector<32x128xf32>
    %78 = arith.addf %77, %76 : vector<32x128xf32>
    %79 = arith.divf %77, %78 : vector<32x128xf32>
    %80 = vector.extract_strided_slice %69 {offsets = [0, 128], sizes = [32, 128], strides = [1, 1]} : vector<32x384xf32> to vector<32x128xf32>
    %81 = vector.extract_strided_slice %71 {offsets = [0, 128], sizes = [32, 128], strides = [1, 1]} : vector<32x384xf32> to vector<32x128xf32>
    %82 = arith.addf %80, %81 : vector<32x128xf32>
    %83 = arith.negf %82 : vector<32x128xf32>
    %84 = math.exp %83 : vector<32x128xf32>
    %cst_27 = arith.constant 1.000000e+00 : f32
    %85 = vector.broadcast %cst_27 : f32 to vector<32x128xf32>
    %86 = arith.addf %85, %84 : vector<32x128xf32>
    %87 = arith.divf %85, %86 : vector<32x128xf32>
    %88 = vector.extract_strided_slice %69 {offsets = [0, 256], sizes = [32, 128], strides = [1, 1]} : vector<32x384xf32> to vector<32x128xf32>
    %89 = vector.extract_strided_slice %71 {offsets = [0, 256], sizes = [32, 128], strides = [1, 1]} : vector<32x384xf32> to vector<32x128xf32>
    %90 = arith.addf %89, %2 : vector<32x128xf32>
    %91 = arith.mulf %79, %90 : vector<32x128xf32>
    %92 = arith.addf %88, %91 : vector<32x128xf32>
    %93 = math.tanh %92 : vector<32x128xf32>
    %cst_28 = arith.constant 1.000000e+00 : f32
    %94 = vector.broadcast %cst_28 : f32 to vector<32x128xf32>
    %95 = arith.subf %94, %87 : vector<32x128xf32>
    %96 = arith.mulf %95, %93 : vector<32x128xf32>
    %97 = arith.mulf %87, %66 : vector<32x128xf32>
    %98 = arith.addf %96, %97 : vector<32x128xf32>
    %c0_29 = arith.constant 0 : index
    %c256 = arith.constant 256 : index
    %99 = vector.load %arg7[%c0_29, %c256] : memref<32x1536xf32, #tpu.memory_space<vmem>>, vector<32x128xf32>
    tpu.vector_store %arg7[%c0_29, %c256], %98 {strides = array<i32>} : memref<32x1536xf32, #tpu.memory_space<vmem>>, vector<32x128xf32>,
    %c3 = arith.constant 3 : index
    %c0_30 = arith.constant 0 : index
    %c0_31 = arith.constant 0 : index
    %100 = vector.load %arg1[%c3, %c0_30, %c0_31] : memref<12x32x384xf32, #tpu.memory_space<vmem>>, vector<1x32x384xf32>
    %101 = vector.shape_cast %100 : vector<1x32x384xf32> to vector<32x384xf32>
    %c0_32 = arith.constant 0 : index
    %c0_33 = arith.constant 0 : index
    %102 = vector.load %arg2[%c0_32, %c0_33] : memref<128x384xf32, #tpu.memory_space<vmem>>, vector<128x384xf32>
    %cst_34 = arith.constant dense<0.000000e+00> : vector<32x384xf32>
    %103 = tpu.matmul %98, %102, %cst_34 {dimension_numbers = #tpu.dot_dimension_numbers<[1], [0], [0], [1], [0, 0, 1, 1], [], []>} : vector<32x128xf32>, vector<128x384xf32>, vector<32x384xf32> -> vector<32x384xf32>
    %104 = vector.extract_strided_slice %101 {offsets = [0, 0], sizes = [32, 128], strides = [1, 1]} : vector<32x384xf32> to vector<32x128xf32>
    %105 = vector.extract_strided_slice %103 {offsets = [0, 0], sizes = [32, 128], strides = [1, 1]} : vector<32x384xf32> to vector<32x128xf32>
    %106 = arith.addf %104, %105 : vector<32x128xf32>
    %107 = arith.negf %106 : vector<32x128xf32>
    %108 = math.exp %107 : vector<32x128xf32>
    %cst_35 = arith.constant 1.000000e+00 : f32
    %109 = vector.broadcast %cst_35 : f32 to vector<32x128xf32>
    %110 = arith.addf %109, %108 : vector<32x128xf32>
    %111 = arith.divf %109, %110 : vector<32x128xf32>
    %112 = vector.extract_strided_slice %101 {offsets = [0, 128], sizes = [32, 128], strides = [1, 1]} : vector<32x384xf32> to vector<32x128xf32>
    %113 = vector.extract_strided_slice %103 {offsets = [0, 128], sizes = [32, 128], strides = [1, 1]} : vector<32x384xf32> to vector<32x128xf32>
    %114 = arith.addf %112, %113 : vector<32x128xf32>
    %115 = arith.negf %114 : vector<32x128xf32>
    %116 = math.exp %115 : vector<32x128xf32>
    %cst_36 = arith.constant 1.000000e+00 : f32
    %117 = vector.broadcast %cst_36 : f32 to vector<32x128xf32>
    %118 = arith.addf %117, %116 : vector<32x128xf32>
    %119 = arith.divf %117, %118 : vector<32x128xf32>
    %120 = vector.extract_strided_slice %101 {offsets = [0, 256], sizes = [32, 128], strides = [1, 1]} : vector<32x384xf32> to vector<32x128xf32>
    %121 = vector.extract_strided_slice %103 {offsets = [0, 256], sizes = [32, 128], strides = [1, 1]} : vector<32x384xf32> to vector<32x128xf32>
    %122 = arith.addf %121, %2 : vector<32x128xf32>
    %123 = arith.mulf %111, %122 : vector<32x128xf32>
    %124 = arith.addf %120, %123 : vector<32x128xf32>
    %125 = math.tanh %124 : vector<32x128xf32>
    %cst_37 = arith.constant 1.000000e+00 : f32
    %126 = vector.broadcast %cst_37 : f32 to vector<32x128xf32>
    %127 = arith.subf %126, %119 : vector<32x128xf32>
    %128 = arith.mulf %127, %125 : vector<32x128xf32>
    %129 = arith.mulf %119, %98 : vector<32x128xf32>
    %130 = arith.addf %128, %129 : vector<32x128xf32>
    %c0_38 = arith.constant 0 : index
    %c384 = arith.constant 384 : index
    %131 = vector.load %arg7[%c0_38, %c384] : memref<32x1536xf32, #tpu.memory_space<vmem>>, vector<32x128xf32>
    tpu.vector_store %arg7[%c0_38, %c384], %130 {strides = array<i32>} : memref<32x1536xf32, #tpu.memory_space<vmem>>, vector<32x128xf32>,
    %c4 = arith.constant 4 : index
    %c0_39 = arith.constant 0 : index
    %c0_40 = arith.constant 0 : index
    %132 = vector.load %arg1[%c4, %c0_39, %c0_40] : memref<12x32x384xf32, #tpu.memory_space<vmem>>, vector<1x32x384xf32>
    %133 = vector.shape_cast %132 : vector<1x32x384xf32> to vector<32x384xf32>
    %c0_41 = arith.constant 0 : index
    %c0_42 = arith.constant 0 : index
    %134 = vector.load %arg2[%c0_41, %c0_42] : memref<128x384xf32, #tpu.memory_space<vmem>>, vector<128x384xf32>
    %cst_43 = arith.constant dense<0.000000e+00> : vector<32x384xf32>
    %135 = tpu.matmul %130, %134, %cst_43 {dimension_numbers = #tpu.dot_dimension_numbers<[1], [0], [0], [1], [0, 0, 1, 1], [], []>} : vector<32x128xf32>, vector<128x384xf32>, vector<32x384xf32> -> vector<32x384xf32>
    %136 = vector.extract_strided_slice %133 {offsets = [0, 0], sizes = [32, 128], strides = [1, 1]} : vector<32x384xf32> to vector<32x128xf32>
    %137 = vector.extract_strided_slice %135 {offsets = [0, 0], sizes = [32, 128], strides = [1, 1]} : vector<32x384xf32> to vector<32x128xf32>
    %138 = arith.addf %136, %137 : vector<32x128xf32>
    %139 = arith.negf %138 : vector<32x128xf32>
    %140 = math.exp %139 : vector<32x128xf32>
    %cst_44 = arith.constant 1.000000e+00 : f32
    %141 = vector.broadcast %cst_44 : f32 to vector<32x128xf32>
    %142 = arith.addf %141, %140 : vector<32x128xf32>
    %143 = arith.divf %141, %142 : vector<32x128xf32>
    %144 = vector.extract_strided_slice %133 {offsets = [0, 128], sizes = [32, 128], strides = [1, 1]} : vector<32x384xf32> to vector<32x128xf32>
    %145 = vector.extract_strided_slice %135 {offsets = [0, 128], sizes = [32, 128], strides = [1, 1]} : vector<32x384xf32> to vector<32x128xf32>
    %146 = arith.addf %144, %145 : vector<32x128xf32>
    %147 = arith.negf %146 : vector<32x128xf32>
    %148 = math.exp %147 : vector<32x128xf32>
    %cst_45 = arith.constant 1.000000e+00 : f32
    %149 = vector.broadcast %cst_45 : f32 to vector<32x128xf32>
    %150 = arith.addf %149, %148 : vector<32x128xf32>
    %151 = arith.divf %149, %150 : vector<32x128xf32>
    %152 = vector.extract_strided_slice %133 {offsets = [0, 256], sizes = [32, 128], strides = [1, 1]} : vector<32x384xf32> to vector<32x128xf32>
    %153 = vector.extract_strided_slice %135 {offsets = [0, 256], sizes = [32, 128], strides = [1, 1]} : vector<32x384xf32> to vector<32x128xf32>
    %154 = arith.addf %153, %2 : vector<32x128xf32>
    %155 = arith.mulf %143, %154 : vector<32x128xf32>
    %156 = arith.addf %152, %155 : vector<32x128xf32>
    %157 = math.tanh %156 : vector<32x128xf32>
    %cst_46 = arith.constant 1.000000e+00 : f32
    %158 = vector.broadcast %cst_46 : f32 to vector<32x128xf32>
    %159 = arith.subf %158, %151 : vector<32x128xf32>
    %160 = arith.mulf %159, %157 : vector<32x128xf32>
    %161 = arith.mulf %151, %130 : vector<32x128xf32>
    %162 = arith.addf %160, %161 : vector<32x128xf32>
    %c0_47 = arith.constant 0 : index
    %c512 = arith.constant 512 : index
    %163 = vector.load %arg7[%c0_47, %c512] : memref<32x1536xf32, #tpu.memory_space<vmem>>, vector<32x128xf32>
    tpu.vector_store %arg7[%c0_47, %c512], %162 {strides = array<i32>} : memref<32x1536xf32, #tpu.memory_space<vmem>>, vector<32x128xf32>,
    %c5 = arith.constant 5 : index
    %c0_48 = arith.constant 0 : index
    %c0_49 = arith.constant 0 : index
    %164 = vector.load %arg1[%c5, %c0_48, %c0_49] : memref<12x32x384xf32, #tpu.memory_space<vmem>>, vector<1x32x384xf32>
    %165 = vector.shape_cast %164 : vector<1x32x384xf32> to vector<32x384xf32>
    %c0_50 = arith.constant 0 : index
    %c0_51 = arith.constant 0 : index
    %166 = vector.load %arg2[%c0_50, %c0_51] : memref<128x384xf32, #tpu.memory_space<vmem>>, vector<128x384xf32>
    %cst_52 = arith.constant dense<0.000000e+00> : vector<32x384xf32>
    %167 = tpu.matmul %162, %166, %cst_52 {dimension_numbers = #tpu.dot_dimension_numbers<[1], [0], [0], [1], [0, 0, 1, 1], [], []>} : vector<32x128xf32>, vector<128x384xf32>, vector<32x384xf32> -> vector<32x384xf32>
    %168 = vector.extract_strided_slice %165 {offsets = [0, 0], sizes = [32, 128], strides = [1, 1]} : vector<32x384xf32> to vector<32x128xf32>
    %169 = vector.extract_strided_slice %167 {offsets = [0, 0], sizes = [32, 128], strides = [1, 1]} : vector<32x384xf32> to vector<32x128xf32>
    %170 = arith.addf %168, %169 : vector<32x128xf32>
    %171 = arith.negf %170 : vector<32x128xf32>
    %172 = math.exp %171 : vector<32x128xf32>
    %cst_53 = arith.constant 1.000000e+00 : f32
    %173 = vector.broadcast %cst_53 : f32 to vector<32x128xf32>
    %174 = arith.addf %173, %172 : vector<32x128xf32>
    %175 = arith.divf %173, %174 : vector<32x128xf32>
    %176 = vector.extract_strided_slice %165 {offsets = [0, 128], sizes = [32, 128], strides = [1, 1]} : vector<32x384xf32> to vector<32x128xf32>
    %177 = vector.extract_strided_slice %167 {offsets = [0, 128], sizes = [32, 128], strides = [1, 1]} : vector<32x384xf32> to vector<32x128xf32>
    %178 = arith.addf %176, %177 : vector<32x128xf32>
    %179 = arith.negf %178 : vector<32x128xf32>
    %180 = math.exp %179 : vector<32x128xf32>
    %cst_54 = arith.constant 1.000000e+00 : f32
    %181 = vector.broadcast %cst_54 : f32 to vector<32x128xf32>
    %182 = arith.addf %181, %180 : vector<32x128xf32>
    %183 = arith.divf %181, %182 : vector<32x128xf32>
    %184 = vector.extract_strided_slice %165 {offsets = [0, 256], sizes = [32, 128], strides = [1, 1]} : vector<32x384xf32> to vector<32x128xf32>
    %185 = vector.extract_strided_slice %167 {offsets = [0, 256], sizes = [32, 128], strides = [1, 1]} : vector<32x384xf32> to vector<32x128xf32>
    %186 = arith.addf %185, %2 : vector<32x128xf32>
    %187 = arith.mulf %175, %186 : vector<32x128xf32>
    %188 = arith.addf %184, %187 : vector<32x128xf32>
    %189 = math.tanh %188 : vector<32x128xf32>
    %cst_55 = arith.constant 1.000000e+00 : f32
    %190 = vector.broadcast %cst_55 : f32 to vector<32x128xf32>
    %191 = arith.subf %190, %183 : vector<32x128xf32>
    %192 = arith.mulf %191, %189 : vector<32x128xf32>
    %193 = arith.mulf %183, %162 : vector<32x128xf32>
    %194 = arith.addf %192, %193 : vector<32x128xf32>
    %c0_56 = arith.constant 0 : index
    %c640 = arith.constant 640 : index
    %195 = vector.load %arg7[%c0_56, %c640] : memref<32x1536xf32, #tpu.memory_space<vmem>>, vector<32x128xf32>
    tpu.vector_store %arg7[%c0_56, %c640], %194 {strides = array<i32>} : memref<32x1536xf32, #tpu.memory_space<vmem>>, vector<32x128xf32>,
    %c6 = arith.constant 6 : index
    %c0_57 = arith.constant 0 : index
    %c0_58 = arith.constant 0 : index
    %196 = vector.load %arg1[%c6, %c0_57, %c0_58] : memref<12x32x384xf32, #tpu.memory_space<vmem>>, vector<1x32x384xf32>
    %197 = vector.shape_cast %196 : vector<1x32x384xf32> to vector<32x384xf32>
    %c0_59 = arith.constant 0 : index
    %c0_60 = arith.constant 0 : index
    %198 = vector.load %arg2[%c0_59, %c0_60] : memref<128x384xf32, #tpu.memory_space<vmem>>, vector<128x384xf32>
    %cst_61 = arith.constant dense<0.000000e+00> : vector<32x384xf32>
    %199 = tpu.matmul %194, %198, %cst_61 {dimension_numbers = #tpu.dot_dimension_numbers<[1], [0], [0], [1], [0, 0, 1, 1], [], []>} : vector<32x128xf32>, vector<128x384xf32>, vector<32x384xf32> -> vector<32x384xf32>
    %200 = vector.extract_strided_slice %197 {offsets = [0, 0], sizes = [32, 128], strides = [1, 1]} : vector<32x384xf32> to vector<32x128xf32>
    %201 = vector.extract_strided_slice %199 {offsets = [0, 0], sizes = [32, 128], strides = [1, 1]} : vector<32x384xf32> to vector<32x128xf32>
    %202 = arith.addf %200, %201 : vector<32x128xf32>
    %203 = arith.negf %202 : vector<32x128xf32>
    %204 = math.exp %203 : vector<32x128xf32>
    %cst_62 = arith.constant 1.000000e+00 : f32
    %205 = vector.broadcast %cst_62 : f32 to vector<32x128xf32>
    %206 = arith.addf %205, %204 : vector<32x128xf32>
    %207 = arith.divf %205, %206 : vector<32x128xf32>
    %208 = vector.extract_strided_slice %197 {offsets = [0, 128], sizes = [32, 128], strides = [1, 1]} : vector<32x384xf32> to vector<32x128xf32>
    %209 = vector.extract_strided_slice %199 {offsets = [0, 128], sizes = [32, 128], strides = [1, 1]} : vector<32x384xf32> to vector<32x128xf32>
    %210 = arith.addf %208, %209 : vector<32x128xf32>
    %211 = arith.negf %210 : vector<32x128xf32>
    %212 = math.exp %211 : vector<32x128xf32>
    %cst_63 = arith.constant 1.000000e+00 : f32
    %213 = vector.broadcast %cst_63 : f32 to vector<32x128xf32>
    %214 = arith.addf %213, %212 : vector<32x128xf32>
    %215 = arith.divf %213, %214 : vector<32x128xf32>
    %216 = vector.extract_strided_slice %197 {offsets = [0, 256], sizes = [32, 128], strides = [1, 1]} : vector<32x384xf32> to vector<32x128xf32>
    %217 = vector.extract_strided_slice %199 {offsets = [0, 256], sizes = [32, 128], strides = [1, 1]} : vector<32x384xf32> to vector<32x128xf32>
    %218 = arith.addf %217, %2 : vector<32x128xf32>
    %219 = arith.mulf %207, %218 : vector<32x128xf32>
    %220 = arith.addf %216, %219 : vector<32x128xf32>
    %221 = math.tanh %220 : vector<32x128xf32>
    %cst_64 = arith.constant 1.000000e+00 : f32
    %222 = vector.broadcast %cst_64 : f32 to vector<32x128xf32>
    %223 = arith.subf %222, %215 : vector<32x128xf32>
    %224 = arith.mulf %223, %221 : vector<32x128xf32>
    %225 = arith.mulf %215, %194 : vector<32x128xf32>
    %226 = arith.addf %224, %225 : vector<32x128xf32>
    %c0_65 = arith.constant 0 : index
    %c768 = arith.constant 768 : index
    %227 = vector.load %arg7[%c0_65, %c768] : memref<32x1536xf32, #tpu.memory_space<vmem>>, vector<32x128xf32>
    tpu.vector_store %arg7[%c0_65, %c768], %226 {strides = array<i32>} : memref<32x1536xf32, #tpu.memory_space<vmem>>, vector<32x128xf32>,
    %c7 = arith.constant 7 : index
    %c0_66 = arith.constant 0 : index
    %c0_67 = arith.constant 0 : index
    %228 = vector.load %arg1[%c7, %c0_66, %c0_67] : memref<12x32x384xf32, #tpu.memory_space<vmem>>, vector<1x32x384xf32>
    %229 = vector.shape_cast %228 : vector<1x32x384xf32> to vector<32x384xf32>
    %c0_68 = arith.constant 0 : index
    %c0_69 = arith.constant 0 : index
    %230 = vector.load %arg2[%c0_68, %c0_69] : memref<128x384xf32, #tpu.memory_space<vmem>>, vector<128x384xf32>
    %cst_70 = arith.constant dense<0.000000e+00> : vector<32x384xf32>
    %231 = tpu.matmul %226, %230, %cst_70 {dimension_numbers = #tpu.dot_dimension_numbers<[1], [0], [0], [1], [0, 0, 1, 1], [], []>} : vector<32x128xf32>, vector<128x384xf32>, vector<32x384xf32> -> vector<32x384xf32>
    %232 = vector.extract_strided_slice %229 {offsets = [0, 0], sizes = [32, 128], strides = [1, 1]} : vector<32x384xf32> to vector<32x128xf32>
    %233 = vector.extract_strided_slice %231 {offsets = [0, 0], sizes = [32, 128], strides = [1, 1]} : vector<32x384xf32> to vector<32x128xf32>
    %234 = arith.addf %232, %233 : vector<32x128xf32>
    %235 = arith.negf %234 : vector<32x128xf32>
    %236 = math.exp %235 : vector<32x128xf32>
    %cst_71 = arith.constant 1.000000e+00 : f32
    %237 = vector.broadcast %cst_71 : f32 to vector<32x128xf32>
    %238 = arith.addf %237, %236 : vector<32x128xf32>
    %239 = arith.divf %237, %238 : vector<32x128xf32>
    %240 = vector.extract_strided_slice %229 {offsets = [0, 128], sizes = [32, 128], strides = [1, 1]} : vector<32x384xf32> to vector<32x128xf32>
    %241 = vector.extract_strided_slice %231 {offsets = [0, 128], sizes = [32, 128], strides = [1, 1]} : vector<32x384xf32> to vector<32x128xf32>
    %242 = arith.addf %240, %241 : vector<32x128xf32>
    %243 = arith.negf %242 : vector<32x128xf32>
    %244 = math.exp %243 : vector<32x128xf32>
    %cst_72 = arith.constant 1.000000e+00 : f32
    %245 = vector.broadcast %cst_72 : f32 to vector<32x128xf32>
    %246 = arith.addf %245, %244 : vector<32x128xf32>
    %247 = arith.divf %245, %246 : vector<32x128xf32>
    %248 = vector.extract_strided_slice %229 {offsets = [0, 256], sizes = [32, 128], strides = [1, 1]} : vector<32x384xf32> to vector<32x128xf32>
    %249 = vector.extract_strided_slice %231 {offsets = [0, 256], sizes = [32, 128], strides = [1, 1]} : vector<32x384xf32> to vector<32x128xf32>
    %250 = arith.addf %249, %2 : vector<32x128xf32>
    %251 = arith.mulf %239, %250 : vector<32x128xf32>
    %252 = arith.addf %248, %251 : vector<32x128xf32>
    %253 = math.tanh %252 : vector<32x128xf32>
    %cst_73 = arith.constant 1.000000e+00 : f32
    %254 = vector.broadcast %cst_73 : f32 to vector<32x128xf32>
    %255 = arith.subf %254, %247 : vector<32x128xf32>
    %256 = arith.mulf %255, %253 : vector<32x128xf32>
    %257 = arith.mulf %247, %226 : vector<32x128xf32>
    %258 = arith.addf %256, %257 : vector<32x128xf32>
    %c0_74 = arith.constant 0 : index
    %c896 = arith.constant 896 : index
    %259 = vector.load %arg7[%c0_74, %c896] : memref<32x1536xf32, #tpu.memory_space<vmem>>, vector<32x128xf32>
    tpu.vector_store %arg7[%c0_74, %c896], %258 {strides = array<i32>} : memref<32x1536xf32, #tpu.memory_space<vmem>>, vector<32x128xf32>,
    %c8 = arith.constant 8 : index
    %c0_75 = arith.constant 0 : index
    %c0_76 = arith.constant 0 : index
    %260 = vector.load %arg1[%c8, %c0_75, %c0_76] : memref<12x32x384xf32, #tpu.memory_space<vmem>>, vector<1x32x384xf32>
    %261 = vector.shape_cast %260 : vector<1x32x384xf32> to vector<32x384xf32>
    %c0_77 = arith.constant 0 : index
    %c0_78 = arith.constant 0 : index
    %262 = vector.load %arg2[%c0_77, %c0_78] : memref<128x384xf32, #tpu.memory_space<vmem>>, vector<128x384xf32>
    %cst_79 = arith.constant dense<0.000000e+00> : vector<32x384xf32>
    %263 = tpu.matmul %258, %262, %cst_79 {dimension_numbers = #tpu.dot_dimension_numbers<[1], [0], [0], [1], [0, 0, 1, 1], [], []>} : vector<32x128xf32>, vector<128x384xf32>, vector<32x384xf32> -> vector<32x384xf32>
    %264 = vector.extract_strided_slice %261 {offsets = [0, 0], sizes = [32, 128], strides = [1, 1]} : vector<32x384xf32> to vector<32x128xf32>
    %265 = vector.extract_strided_slice %263 {offsets = [0, 0], sizes = [32, 128], strides = [1, 1]} : vector<32x384xf32> to vector<32x128xf32>
    %266 = arith.addf %264, %265 : vector<32x128xf32>
    %267 = arith.negf %266 : vector<32x128xf32>
    %268 = math.exp %267 : vector<32x128xf32>
    %cst_80 = arith.constant 1.000000e+00 : f32
    %269 = vector.broadcast %cst_80 : f32 to vector<32x128xf32>
    %270 = arith.addf %269, %268 : vector<32x128xf32>
    %271 = arith.divf %269, %270 : vector<32x128xf32>
    %272 = vector.extract_strided_slice %261 {offsets = [0, 128], sizes = [32, 128], strides = [1, 1]} : vector<32x384xf32> to vector<32x128xf32>
    %273 = vector.extract_strided_slice %263 {offsets = [0, 128], sizes = [32, 128], strides = [1, 1]} : vector<32x384xf32> to vector<32x128xf32>
    %274 = arith.addf %272, %273 : vector<32x128xf32>
    %275 = arith.negf %274 : vector<32x128xf32>
    %276 = math.exp %275 : vector<32x128xf32>
    %cst_81 = arith.constant 1.000000e+00 : f32
    %277 = vector.broadcast %cst_81 : f32 to vector<32x128xf32>
    %278 = arith.addf %277, %276 : vector<32x128xf32>
    %279 = arith.divf %277, %278 : vector<32x128xf32>
    %280 = vector.extract_strided_slice %261 {offsets = [0, 256], sizes = [32, 128], strides = [1, 1]} : vector<32x384xf32> to vector<32x128xf32>
    %281 = vector.extract_strided_slice %263 {offsets = [0, 256], sizes = [32, 128], strides = [1, 1]} : vector<32x384xf32> to vector<32x128xf32>
    %282 = arith.addf %281, %2 : vector<32x128xf32>
    %283 = arith.mulf %271, %282 : vector<32x128xf32>
    %284 = arith.addf %280, %283 : vector<32x128xf32>
    %285 = math.tanh %284 : vector<32x128xf32>
    %cst_82 = arith.constant 1.000000e+00 : f32
    %286 = vector.broadcast %cst_82 : f32 to vector<32x128xf32>
    %287 = arith.subf %286, %279 : vector<32x128xf32>
    %288 = arith.mulf %287, %285 : vector<32x128xf32>
    %289 = arith.mulf %279, %258 : vector<32x128xf32>
    %290 = arith.addf %288, %289 : vector<32x128xf32>
    %c0_83 = arith.constant 0 : index
    %c1024 = arith.constant 1024 : index
    %291 = vector.load %arg7[%c0_83, %c1024] : memref<32x1536xf32, #tpu.memory_space<vmem>>, vector<32x128xf32>
    tpu.vector_store %arg7[%c0_83, %c1024], %290 {strides = array<i32>} : memref<32x1536xf32, #tpu.memory_space<vmem>>, vector<32x128xf32>,
    %c9 = arith.constant 9 : index
    %c0_84 = arith.constant 0 : index
    %c0_85 = arith.constant 0 : index
    %292 = vector.load %arg1[%c9, %c0_84, %c0_85] : memref<12x32x384xf32, #tpu.memory_space<vmem>>, vector<1x32x384xf32>
    %293 = vector.shape_cast %292 : vector<1x32x384xf32> to vector<32x384xf32>
    %c0_86 = arith.constant 0 : index
    %c0_87 = arith.constant 0 : index
    %294 = vector.load %arg2[%c0_86, %c0_87] : memref<128x384xf32, #tpu.memory_space<vmem>>, vector<128x384xf32>
    %cst_88 = arith.constant dense<0.000000e+00> : vector<32x384xf32>
    %295 = tpu.matmul %290, %294, %cst_88 {dimension_numbers = #tpu.dot_dimension_numbers<[1], [0], [0], [1], [0, 0, 1, 1], [], []>} : vector<32x128xf32>, vector<128x384xf32>, vector<32x384xf32> -> vector<32x384xf32>
    %296 = vector.extract_strided_slice %293 {offsets = [0, 0], sizes = [32, 128], strides = [1, 1]} : vector<32x384xf32> to vector<32x128xf32>
    %297 = vector.extract_strided_slice %295 {offsets = [0, 0], sizes = [32, 128], strides = [1, 1]} : vector<32x384xf32> to vector<32x128xf32>
    %298 = arith.addf %296, %297 : vector<32x128xf32>
    %299 = arith.negf %298 : vector<32x128xf32>
    %300 = math.exp %299 : vector<32x128xf32>
    %cst_89 = arith.constant 1.000000e+00 : f32
    %301 = vector.broadcast %cst_89 : f32 to vector<32x128xf32>
    %302 = arith.addf %301, %300 : vector<32x128xf32>
    %303 = arith.divf %301, %302 : vector<32x128xf32>
    %304 = vector.extract_strided_slice %293 {offsets = [0, 128], sizes = [32, 128], strides = [1, 1]} : vector<32x384xf32> to vector<32x128xf32>
    %305 = vector.extract_strided_slice %295 {offsets = [0, 128], sizes = [32, 128], strides = [1, 1]} : vector<32x384xf32> to vector<32x128xf32>
    %306 = arith.addf %304, %305 : vector<32x128xf32>
    %307 = arith.negf %306 : vector<32x128xf32>
    %308 = math.exp %307 : vector<32x128xf32>
    %cst_90 = arith.constant 1.000000e+00 : f32
    %309 = vector.broadcast %cst_90 : f32 to vector<32x128xf32>
    %310 = arith.addf %309, %308 : vector<32x128xf32>
    %311 = arith.divf %309, %310 : vector<32x128xf32>
    %312 = vector.extract_strided_slice %293 {offsets = [0, 256], sizes = [32, 128], strides = [1, 1]} : vector<32x384xf32> to vector<32x128xf32>
    %313 = vector.extract_strided_slice %295 {offsets = [0, 256], sizes = [32, 128], strides = [1, 1]} : vector<32x384xf32> to vector<32x128xf32>
    %314 = arith.addf %313, %2 : vector<32x128xf32>
    %315 = arith.mulf %303, %314 : vector<32x128xf32>
    %316 = arith.addf %312, %315 : vector<32x128xf32>
    %317 = math.tanh %316 : vector<32x128xf32>
    %cst_91 = arith.constant 1.000000e+00 : f32
    %318 = vector.broadcast %cst_91 : f32 to vector<32x128xf32>
    %319 = arith.subf %318, %311 : vector<32x128xf32>
    %320 = arith.mulf %319, %317 : vector<32x128xf32>
    %321 = arith.mulf %311, %290 : vector<32x128xf32>
    %322 = arith.addf %320, %321 : vector<32x128xf32>
    %c0_92 = arith.constant 0 : index
    %c1152 = arith.constant 1152 : index
    %323 = vector.load %arg7[%c0_92, %c1152] : memref<32x1536xf32, #tpu.memory_space<vmem>>, vector<32x128xf32>
    tpu.vector_store %arg7[%c0_92, %c1152], %322 {strides = array<i32>} : memref<32x1536xf32, #tpu.memory_space<vmem>>, vector<32x128xf32>,
    %c10 = arith.constant 10 : index
    %c0_93 = arith.constant 0 : index
    %c0_94 = arith.constant 0 : index
    %324 = vector.load %arg1[%c10, %c0_93, %c0_94] : memref<12x32x384xf32, #tpu.memory_space<vmem>>, vector<1x32x384xf32>
    %325 = vector.shape_cast %324 : vector<1x32x384xf32> to vector<32x384xf32>
    %c0_95 = arith.constant 0 : index
    %c0_96 = arith.constant 0 : index
    %326 = vector.load %arg2[%c0_95, %c0_96] : memref<128x384xf32, #tpu.memory_space<vmem>>, vector<128x384xf32>
    %cst_97 = arith.constant dense<0.000000e+00> : vector<32x384xf32>
    %327 = tpu.matmul %322, %326, %cst_97 {dimension_numbers = #tpu.dot_dimension_numbers<[1], [0], [0], [1], [0, 0, 1, 1], [], []>} : vector<32x128xf32>, vector<128x384xf32>, vector<32x384xf32> -> vector<32x384xf32>
    %328 = vector.extract_strided_slice %325 {offsets = [0, 0], sizes = [32, 128], strides = [1, 1]} : vector<32x384xf32> to vector<32x128xf32>
    %329 = vector.extract_strided_slice %327 {offsets = [0, 0], sizes = [32, 128], strides = [1, 1]} : vector<32x384xf32> to vector<32x128xf32>
    %330 = arith.addf %328, %329 : vector<32x128xf32>
    %331 = arith.negf %330 : vector<32x128xf32>
    %332 = math.exp %331 : vector<32x128xf32>
    %cst_98 = arith.constant 1.000000e+00 : f32
    %333 = vector.broadcast %cst_98 : f32 to vector<32x128xf32>
    %334 = arith.addf %333, %332 : vector<32x128xf32>
    %335 = arith.divf %333, %334 : vector<32x128xf32>
    %336 = vector.extract_strided_slice %325 {offsets = [0, 128], sizes = [32, 128], strides = [1, 1]} : vector<32x384xf32> to vector<32x128xf32>
    %337 = vector.extract_strided_slice %327 {offsets = [0, 128], sizes = [32, 128], strides = [1, 1]} : vector<32x384xf32> to vector<32x128xf32>
    %338 = arith.addf %336, %337 : vector<32x128xf32>
    %339 = arith.negf %338 : vector<32x128xf32>
    %340 = math.exp %339 : vector<32x128xf32>
    %cst_99 = arith.constant 1.000000e+00 : f32
    %341 = vector.broadcast %cst_99 : f32 to vector<32x128xf32>
    %342 = arith.addf %341, %340 : vector<32x128xf32>
    %343 = arith.divf %341, %342 : vector<32x128xf32>
    %344 = vector.extract_strided_slice %325 {offsets = [0, 256], sizes = [32, 128], strides = [1, 1]} : vector<32x384xf32> to vector<32x128xf32>
    %345 = vector.extract_strided_slice %327 {offsets = [0, 256], sizes = [32, 128], strides = [1, 1]} : vector<32x384xf32> to vector<32x128xf32>
    %346 = arith.addf %345, %2 : vector<32x128xf32>
    %347 = arith.mulf %335, %346 : vector<32x128xf32>
    %348 = arith.addf %344, %347 : vector<32x128xf32>
    %349 = math.tanh %348 : vector<32x128xf32>
    %cst_100 = arith.constant 1.000000e+00 : f32
    %350 = vector.broadcast %cst_100 : f32 to vector<32x128xf32>
    %351 = arith.subf %350, %343 : vector<32x128xf32>
    %352 = arith.mulf %351, %349 : vector<32x128xf32>
    %353 = arith.mulf %343, %322 : vector<32x128xf32>
    %354 = arith.addf %352, %353 : vector<32x128xf32>
    %c0_101 = arith.constant 0 : index
    %c1280 = arith.constant 1280 : index
    %355 = vector.load %arg7[%c0_101, %c1280] : memref<32x1536xf32, #tpu.memory_space<vmem>>, vector<32x128xf32>
    tpu.vector_store %arg7[%c0_101, %c1280], %354 {strides = array<i32>} : memref<32x1536xf32, #tpu.memory_space<vmem>>, vector<32x128xf32>,
    %c11 = arith.constant 11 : index
    %c0_102 = arith.constant 0 : index
    %c0_103 = arith.constant 0 : index
    %356 = vector.load %arg1[%c11, %c0_102, %c0_103] : memref<12x32x384xf32, #tpu.memory_space<vmem>>, vector<1x32x384xf32>
    %357 = vector.shape_cast %356 : vector<1x32x384xf32> to vector<32x384xf32>
    %c0_104 = arith.constant 0 : index
    %c0_105 = arith.constant 0 : index
    %358 = vector.load %arg2[%c0_104, %c0_105] : memref<128x384xf32, #tpu.memory_space<vmem>>, vector<128x384xf32>
    %cst_106 = arith.constant dense<0.000000e+00> : vector<32x384xf32>
    %359 = tpu.matmul %354, %358, %cst_106 {dimension_numbers = #tpu.dot_dimension_numbers<[1], [0], [0], [1], [0, 0, 1, 1], [], []>} : vector<32x128xf32>, vector<128x384xf32>, vector<32x384xf32> -> vector<32x384xf32>
    %360 = vector.extract_strided_slice %357 {offsets = [0, 0], sizes = [32, 128], strides = [1, 1]} : vector<32x384xf32> to vector<32x128xf32>
    %361 = vector.extract_strided_slice %359 {offsets = [0, 0], sizes = [32, 128], strides = [1, 1]} : vector<32x384xf32> to vector<32x128xf32>
    %362 = arith.addf %360, %361 : vector<32x128xf32>
    %363 = arith.negf %362 : vector<32x128xf32>
    %364 = math.exp %363 : vector<32x128xf32>
    %cst_107 = arith.constant 1.000000e+00 : f32
    %365 = vector.broadcast %cst_107 : f32 to vector<32x128xf32>
    %366 = arith.addf %365, %364 : vector<32x128xf32>
    %367 = arith.divf %365, %366 : vector<32x128xf32>
    %368 = vector.extract_strided_slice %357 {offsets = [0, 128], sizes = [32, 128], strides = [1, 1]} : vector<32x384xf32> to vector<32x128xf32>
    %369 = vector.extract_strided_slice %359 {offsets = [0, 128], sizes = [32, 128], strides = [1, 1]} : vector<32x384xf32> to vector<32x128xf32>
    %370 = arith.addf %368, %369 : vector<32x128xf32>
    %371 = arith.negf %370 : vector<32x128xf32>
    %372 = math.exp %371 : vector<32x128xf32>
    %cst_108 = arith.constant 1.000000e+00 : f32
    %373 = vector.broadcast %cst_108 : f32 to vector<32x128xf32>
    %374 = arith.addf %373, %372 : vector<32x128xf32>
    %375 = arith.divf %373, %374 : vector<32x128xf32>
    %376 = vector.extract_strided_slice %357 {offsets = [0, 256], sizes = [32, 128], strides = [1, 1]} : vector<32x384xf32> to vector<32x128xf32>
    %377 = vector.extract_strided_slice %359 {offsets = [0, 256], sizes = [32, 128], strides = [1, 1]} : vector<32x384xf32> to vector<32x128xf32>
    %378 = arith.addf %377, %2 : vector<32x128xf32>
    %379 = arith.mulf %367, %378 : vector<32x128xf32>
    %380 = arith.addf %376, %379 : vector<32x128xf32>
    %381 = math.tanh %380 : vector<32x128xf32>
    %cst_109 = arith.constant 1.000000e+00 : f32
    %382 = vector.broadcast %cst_109 : f32 to vector<32x128xf32>
    %383 = arith.subf %382, %375 : vector<32x128xf32>
    %384 = arith.mulf %383, %381 : vector<32x128xf32>
    %385 = arith.mulf %375, %354 : vector<32x128xf32>
    %386 = arith.addf %384, %385 : vector<32x128xf32>
    %c0_110 = arith.constant 0 : index
    %c1408 = arith.constant 1408 : index
    %387 = vector.load %arg7[%c0_110, %c1408] : memref<32x1536xf32, #tpu.memory_space<vmem>>, vector<32x128xf32>
    tpu.vector_store %arg7[%c0_110, %c1408], %386 {strides = array<i32>} : memref<32x1536xf32, #tpu.memory_space<vmem>>, vector<32x128xf32>,
    %c0_111 = arith.constant 0 : index
    %c0_112 = arith.constant 0 : index
    %388 = vector.load %arg7[%c0_111, %c0_112] : memref<32x1536xf32, #tpu.memory_space<vmem>>, vector<32x1536xf32>
    %c0_113 = arith.constant 0 : index
    %c0_114 = arith.constant 0 : index
    %389 = vector.load %arg4[%c0_113, %c0_114] : memref<1536x128xf32, #tpu.memory_space<vmem>>, vector<1536x128xf32>
    %cst_115 = arith.constant dense<0.000000e+00> : vector<32x128xf32>
    %390 = tpu.matmul %388, %389, %cst_115 {dimension_numbers = #tpu.dot_dimension_numbers<[1], [0], [0], [1], [0, 0, 1, 1], [], []>} : vector<32x1536xf32>, vector<1536x128xf32>, vector<32x128xf32> -> vector<32x128xf32>
    %c0_116 = arith.constant 0 : index
    %c0_117 = arith.constant 0 : index
    %391 = vector.load %arg5[%c0_116, %c0_117] : memref<1x128xf32, #tpu.memory_space<vmem>>, vector<1x128xf32>
    %392 = vector.broadcast %391 : vector<1x128xf32> to vector<32x128xf32>
    %393 = arith.addf %390, %392 : vector<32x128xf32>
    %c0_118 = arith.constant 0 : index
    %c0_119 = arith.constant 0 : index
    %394 = vector.load %arg6[%c0_118, %c0_119] : memref<32x128xf32, #tpu.memory_space<vmem>>, vector<32x128xf32>
    tpu.vector_store %arg6[%c0_118, %c0_119], %393 {strides = array<i32>} : memref<32x128xf32, #tpu.memory_space<vmem>>, vector<32x128xf32>,
    return
  }
  func.func @transform_0(%arg0: i32) -> (i32, i32, i32) {
    %c0_i32 = arith.constant 0 : i32
    %c0_i32_0 = arith.constant 0 : i32
    %c0_i32_1 = arith.constant 0 : i32
    %c0_i32_2 = arith.constant 0 : i32
    return %c0_i32, %c0_i32_0, %c0_i32_1 : i32, i32, i32
  }
  func.func @transform_1(%arg0: i32) -> (i32, i32) {
    %c0_i32 = arith.constant 0 : i32
    %c0_i32_0 = arith.constant 0 : i32
    %c0_i32_1 = arith.constant 0 : i32
    return %c0_i32, %c0_i32_0 : i32, i32
  }
  func.func @transform_2(%arg0: i32) -> (i32, i32) {
    %c0_i32 = arith.constant 0 : i32
    %c0_i32_0 = arith.constant 0 : i32
    %c0_i32_1 = arith.constant 0 : i32
    return %c0_i32, %c0_i32_0 : i32, i32
  }
  func.func @transform_3(%arg0: i32) -> (i32, i32) {
    %c0_i32 = arith.constant 0 : i32
    %c0_i32_0 = arith.constant 0 : i32
    %c0_i32_1 = arith.constant 0 : i32
    return %c0_i32, %c0_i32_0 : i32, i32
  }
  func.func @transform_4(%arg0: i32) -> (i32, i32) {
    %c0_i32 = arith.constant 0 : i32
    %c0_i32_0 = arith.constant 0 : i32
    %c0_i32_1 = arith.constant 0 : i32
    return %c0_i32, %c0_i32_0 : i32, i32
  }
  func.func @transform_5(%arg0: i32) -> (i32, i32) {
    %c0_i32 = arith.constant 0 : i32
    %c0_i32_0 = arith.constant 0 : i32
    %c0_i32_1 = arith.constant 0 : i32
    return %c0_i32, %c0_i32_0 : i32, i32
  }
}

</mosaic_0001>

<llo_original>
// kernel: tpu_custom_call.1
$region0: #{tpu_custom_call.1}
  #allocation0 [shape = 'u32[]', space=smem, size = 0x4, offset = 0x4, fixed_abs, tag = 'smem constant byte address 0x4 - core index']
  #allocation1 [shape = 'u32[144,128]{1,0:T(1,128)}', space=vmem, size = 0x12000, scoped, tag = 'internal scratch']
  #allocation2 [shape = 'f32[32,1536]{1,0:T(8,128)}', space=vmem, size = 0x30000, scoped, tag = 'scratch operand']
  %s0 = inlined_call_operand.hbm [shape: f32[12,32,384], index: 0, kind: input, shape index: {}]
  %s1 = inlined_call_operand.hbm [shape: f32[128,384], index: 1, kind: input, shape index: {}]
  %s2 = inlined_call_operand.vmem [shape: f32[1,128], index: 2, kind: input, shape index: {}]
  %s3 = inlined_call_operand.hbm [shape: f32[1536,128], index: 3, kind: input, shape index: {}]
  %s4 = inlined_call_operand.vmem [shape: f32[1,128], index: 4, kind: input, shape index: {}]
  %s5 = inlined_call_operand.hbm [shape: f32[32,128], index: 5, kind: output, shape index: {}]
  %s6 = sld [smem:[#allocation0]]
  $region42: #{tpu_custom_call.1} parent=0
    _
  %s8 = ssub.s32 1, %s6
  %s9 = scalar_select 0, %s8, %s6
  $region1: #{tpu_custom_call.1} parent=0
    #allocation3 [shape = 'u8[589824]{0}', space=vmem, size = 0x90000, scoped, tag = 'input window, operand 0, single buffered']
    #allocation4 [shape = 's32[1]{0}', space=sflag, size = 0x4, scoped, tag = 'scoped memory for tpu_custom_call.1']
    #allocation5 [shape = 's32[1]{0}', space=sflag, size = 0x4, scoped, tag = 'scoped memory for tpu_custom_call.1']
    #allocation6 [shape = 'u8[196608]{0}', space=vmem, size = 0x30000, scoped, tag = 'input window, operand 1, single buffered']
    #allocation7 [shape = 's32[1]{0}', space=sflag, size = 0x4, scoped, tag = 'scoped memory for tpu_custom_call.1']
    #allocation8 [shape = 'u8[786432]{0}', space=vmem, size = 0xc0000, scoped, tag = 'input window, operand 3, single buffered']
    #allocation9 [shape = 'u8[16384]{0}', space=vmem, size = 0x4000, scoped, tag = 'output window, operand 0, single buffered']
    %10 = vsyncpa [#allocation4], 0
    %11 = vsyncpa [#allocation7], 0
    %12 = vsyncpa [#allocation5], 0
    // Predicated region
    $region2: #{tpu_custom_call.1} parent=1 // pred_check
      _
    $region3: #{tpu_custom_call.1} parent=1 // pred_check_branch
      %14 = sbr.rel (0) target = $region5
    $region4: #{tpu_custom_call.1} parent=1 // pred_region
      %s16 = ssub.s32 18432, 18432
      %17 = vsyncadd [#allocation4], %s16
      %s18 = sshll.u32 [#allocation3], 4
      %s19 = int_to_ptr.vmem [resolvable:$true] %s18
      %24 = dma.hbm_to_vmem [thread:$0]  %s0, 18432, %s19, [#allocation4], 384, 384, 24
    $region5: #{tpu_custom_call.1} parent=1 // pred_fallthru
      _
    // Predicated region
    $region6: #{tpu_custom_call.1} parent=1 // pred_check
      _
    $region7: #{tpu_custom_call.1} parent=1 // pred_check_branch
      %26 = sbr.rel (0) target = $region9
    $region8: #{tpu_custom_call.1} parent=1 // pred_region
      %s28 = ssub.s32 6144, 6144
      %29 = vsyncadd [#allocation7], %s28
      %s30 = sshll.u32 [#allocation6], 4
      %s31 = int_to_ptr.vmem [resolvable:$true] %s30
      %36 = dma.hbm_to_vmem [thread:$0]  %s1, 6144, %s31, [#allocation7], 384, 384, 24
    $region9: #{tpu_custom_call.1} parent=1 // pred_fallthru
      _
    // Predicated region
    $region10: #{tpu_custom_call.1} parent=1 // pred_check
      _
    $region11: #{tpu_custom_call.1} parent=1 // pred_check_branch
      %38 = sbr.rel (0) target = $region13
    $region12: #{tpu_custom_call.1} parent=1 // pred_region
      _
    $region13: #{tpu_custom_call.1} parent=1 // pred_fallthru
      _
    // Predicated region
    $region14: #{tpu_custom_call.1} parent=1 // pred_check
      _
    $region15: #{tpu_custom_call.1} parent=1 // pred_check_branch
      %40 = sbr.rel (0) target = $region17
    $region16: #{tpu_custom_call.1} parent=1 // pred_region
      %s42 = ssub.s32 24576, 24576
      %43 = vsyncadd [#allocation7], %s42
      %s44 = sshll.u32 [#allocation8], 4
      %s45 = int_to_ptr.vmem [resolvable:$true] %s44
      %50 = dma.hbm_to_vmem [thread:$0]  %s3, 24576, %s45, [#allocation7], 128, 128, 8
    $region17: #{tpu_custom_call.1} parent=1 // pred_fallthru
      _
    // Predicated region
    $region18: #{tpu_custom_call.1} parent=1 // pred_check
      _
    $region19: #{tpu_custom_call.1} parent=1 // pred_check_branch
      %52 = sbr.rel (0) target = $region21
    $region20: #{tpu_custom_call.1} parent=1 // pred_region
      _
    $region21: #{tpu_custom_call.1} parent=1 // pred_fallthru
      _
    // Predicated region
    $region22: #{tpu_custom_call.1} parent=1 // pred_check
      _
    $region23: #{tpu_custom_call.1} parent=1 // pred_check_branch
      %54 = sbr.rel (0) target = $region25
    $region24: #{tpu_custom_call.1} parent=1 // pred_region
      %55 = dma.done [#allocation4], 18432
    $region25: #{tpu_custom_call.1} parent=1 // pred_fallthru
      _
    // Predicated region
    $region26: #{tpu_custom_call.1} parent=1 // pred_check
      _
    $region27: #{tpu_custom_call.1} parent=1 // pred_check_branch
      %57 = sbr.rel (0) target = $region29
    $region28: #{tpu_custom_call.1} parent=1 // pred_region
      %58 = dma.done [#allocation7], 6144
    $region29: #{tpu_custom_call.1} parent=1 // pred_fallthru
      _
    // Predicated region
    $region30: #{tpu_custom_call.1} parent=1 // pred_check
      _
    $region31: #{tpu_custom_call.1} parent=1 // pred_check_branch
      %60 = sbr.rel (0) target = $region33
    $region32: #{tpu_custom_call.1} parent=1 // pred_region
      %61 = dma.done [#allocation7], 24576
    $region33: #{tpu_custom_call.1} parent=1 // pred_fallthru
      _
    %v62 = vld [vmem:[%s2] sm:$0x1]
    %v64 = vlaneseq
    %v65 = vshrl.u32 %v64, 7
    %v66 = vsub.s32 0, %v65
    %v67 = vrot.slane %v62, %v66
    %v69 = vld [vmem:[#allocation3] sm:$0xff]
    %v70 = vld [vmem:[#allocation3 + $0x8] sm:$0xff]
    %v71 = vld [vmem:[#allocation3 + $0x10] sm:$0xff]
    %v72 = vld [vmem:[#allocation3 + $0x18] sm:$0xff]
    %v73 = vld [vmem:[#allocation3 + $0x20] sm:$0xff]
    %v74 = vld [vmem:[#allocation3 + $0x28] sm:$0xff]
    %v75 = vld [vmem:[#allocation3 + $0x30] sm:$0xff]
    %v76 = vld [vmem:[#allocation3 + $0x38] sm:$0xff]
    %v77 = vld [vmem:[#allocation3 + $0x40] sm:$0xff]
    %v78 = vld [vmem:[#allocation3 + $0x48] sm:$0xff]
    %v79 = vld [vmem:[#allocation3 + $0x50] sm:$0xff]
    %v80 = vld [vmem:[#allocation3 + $0x58] sm:$0xff]
    %v81 = vld [vmem:[#allocation6] sm:$0xff]
    %v82 = vld [vmem:[#allocation6 + $0x8] sm:$0xff]
    %v83 = vld [vmem:[#allocation6 + $0x10] sm:$0xff]
    %v84 = vld [vmem:[#allocation6 + $0x18] sm:$0xff]
    %v85 = vld [vmem:[#allocation6 + $0x20] sm:$0xff]
    %v86 = vld [vmem:[#allocation6 + $0x28] sm:$0xff]
    %v87 = vld [vmem:[#allocation6 + $0x30] sm:$0xff]
    %v88 = vld [vmem:[#allocation6 + $0x38] sm:$0xff]
    %v89 = vld [vmem:[#allocation6 + $0x40] sm:$0xff]
    %v90 = vld [vmem:[#allocation6 + $0x48] sm:$0xff]
    %v91 = vld [vmem:[#allocation6 + $0x50] sm:$0xff]
    %v92 = vld [vmem:[#allocation6 + $0x58] sm:$0xff]
    %v93 = vld [vmem:[#allocation6 + $0x60] sm:$0xff]
    %v94 = vld [vmem:[#allocation6 + $0x68] sm:$0xff]
    %v95 = vld [vmem:[#allocation6 + $0x70] sm:$0xff]
    %v96 = vld [vmem:[#allocation6 + $0x78] sm:$0xff]
    %v97 = vld [vmem:[#allocation6 + $0x80] sm:$0xff]
    %v98 = vld [vmem:[#allocation6 + $0x88] sm:$0xff]
    %v99 = vld [vmem:[#allocation6 + $0x90] sm:$0xff]
    %v100 = vld [vmem:[#allocation6 + $0x98] sm:$0xff]
    %v101 = vld [vmem:[#allocation6 + $0xa0] sm:$0xff]
    %v102 = vld [vmem:[#allocation6 + $0xa8] sm:$0xff]
    %v103 = vld [vmem:[#allocation6 + $0xb0] sm:$0xff]
    %v104 = vld [vmem:[#allocation6 + $0xb8] sm:$0xff]
    %v105 = vld [vmem:[#allocation6 + $0xc0] sm:$0xff]
    %v106 = vld [vmem:[#allocation6 + $0xc8] sm:$0xff]
    %v107 = vld [vmem:[#allocation6 + $0xd0] sm:$0xff]
    %v108 = vld [vmem:[#allocation6 + $0xd8] sm:$0xff]
    %v109 = vld [vmem:[#allocation6 + $0xe0] sm:$0xff]
    %v110 = vld [vmem:[#allocation6 + $0xe8] sm:$0xff]
    %v111 = vld [vmem:[#allocation6 + $0xf0] sm:$0xff]
    %v112 = vld [vmem:[#allocation6 + $0xf8] sm:$0xff]
    %v113 = vld [vmem:[#allocation6 + $0x100] sm:$0xff]
    %v114 = vld [vmem:[#allocation6 + $0x108] sm:$0xff]
    %v115 = vld [vmem:[#allocation6 + $0x110] sm:$0xff]
    %v116 = vld [vmem:[#allocation6 + $0x118] sm:$0xff]
    %v117 = vld [vmem:[#allocation6 + $0x120] sm:$0xff]
    %v118 = vld [vmem:[#allocation6 + $0x128] sm:$0xff]
    %v119 = vld [vmem:[#allocation6 + $0x130] sm:$0xff]
    %v120 = vld [vmem:[#allocation6 + $0x138] sm:$0xff]
    %v121 = vld [vmem:[#allocation6 + $0x140] sm:$0xff]
    %v122 = vld [vmem:[#allocation6 + $0x148] sm:$0xff]
    %v123 = vld [vmem:[#allocation6 + $0x150] sm:$0xff]
    %v124 = vld [vmem:[#allocation6 + $0x158] sm:$0xff]
    %v125 = vld [vmem:[#allocation6 + $0x160] sm:$0xff]
    %v126 = vld [vmem:[#allocation6 + $0x168] sm:$0xff]
    %v127 = vld [vmem:[#allocation6 + $0x170] sm:$0xff]
    %v128 = vld [vmem:[#allocation6 + $0x178] sm:$0xff]
    %129 = vmatprep.subr.mxu0 %v127
    %130 = vmatpush1.msra.mxu0 %v126
    %131 = vmatprep.subr.mxu0 %v124
    %132 = vmatpush1.msra.mxu0 %v123
    %133 = vmatprep.subr.mxu0 %v121
    %134 = vmatpush1.msra.mxu0 %v120
    %135 = vmatprep.subr.mxu0 %v118
    %136 = vmatpush1.msra.mxu0 %v117
    %137 = vmatprep.subr.mxu0 %v115
    %138 = vmatpush1.msra.mxu0 %v114
    %139 = vmatprep.subr.mxu0 %v112
    %140 = vmatpush1.msra.mxu0 %v111
    %141 = vmatprep.subr.mxu0 %v109
    %142 = vmatpush1.msra.mxu0 %v108
    %143 = vmatprep.subr.mxu0 %v106
    %144 = vmatpush1.msra.mxu0 %v105
    %145 = vmatprep.subr.mxu0 %v103
    %146 = vmatpush1.msra.mxu0 %v102
    %147 = vmatprep.subr.mxu0 %v100
    %148 = vmatpush1.msra.mxu0 %v99
    %149 = vmatprep.subr.mxu0 %v97
    %150 = vmatpush1.msra.mxu0 %v96
    %151 = vmatprep.subr.mxu0 %v94
    %152 = vmatpush1.msra.mxu0 %v93
    %153 = vmatprep.subr.mxu0 %v91
    %154 = vmatpush1.msra.mxu0 %v90
    %155 = vmatprep.subr.mxu0 %v88
    %156 = vmatpush1.msra.mxu0 %v87
    %157 = vmatprep.subr.mxu0 %v85
    %158 = vmatpush1.msra.mxu0 %v84
    %159 = vmatprep.subr.mxu0 %v82
    %160 = vmatpush1.msra.mxu0 %v81
    %161 = vmatprep.subr.mxu0 0.0
    %162 = vmatpush2.msra.mxu0 0.0
    %163 = vmatprep.subr.mxu0 0.0
    %164 = vmatpush2.msra.mxu0 0.0
    %165 = vmatprep.subr.mxu0 0.0
    %166 = vmatpush2.msra.mxu0 0.0
    %167 = vmatprep.subr.mxu0 0.0
    %168 = vmatpush2.msra.mxu0 0.0
    %169 = vmatprep.subr.mxu0 0.0
    %170 = vmatpush2.msra.mxu0 0.0
    %171 = vmatprep.subr.mxu0 0.0
    %172 = vmatpush2.msra.mxu0 0.0
    %173 = vmatprep.subr.mxu0 0.0
    %174 = vmatpush2.msra.mxu0 0.0
    %175 = vmatprep.subr.mxu0 0.0
    %176 = vmatpush2.msra.mxu0 0.0
    %177 = vmatprep.subr.mxu0 0.0
    %178 = vmatpush2.msra.mxu0 0.0
    %179 = vmatprep.subr.mxu0 0.0
    %180 = vmatpush2.msra.mxu0 0.0
    %181 = vmatprep.subr.mxu0 0.0
    %182 = vmatpush2.msra.mxu0 0.0
    %183 = vmatprep.subr.mxu0 0.0
    %184 = vmatpush2.msra.mxu0 0.0
    %185 = vmatprep.subr.mxu0 0.0
    %186 = vmatpush2.msra.mxu0 0.0
    %187 = vmatprep.subr.mxu0 0.0
    %188 = vmatpush2.msra.mxu0 0.0
    %189 = vmatprep.subr.mxu0 0.0
    %190 = vmatpush2.msra.mxu0 0.0
    %191 = vmatprep.subr.mxu0 0.0
    %192 = vmatpush2.msra.mxu0 0.0
    %193 = vmatprep.mubr.f32.mxu0 0.0
    %194 = vmatmul.mubr.f32.gmra.mxu0 0.0
    %v195 = vpop.f32.mrf.mxu0
    %v196 = vadd.f32 0.0, %v195
    %v197 = vpop.f32.mrf.mxu0
    %v198 = vadd.f32 0.0, %v197
    %199 = vmatprep.mubr.f32.mxu0 0.0
    %200 = vmatmul.mubr.f32.gmra.mxu0 0.0
    %v201 = vpop.f32.mrf.mxu0
    %v202 = vadd.f32 0.0, %v201
    %v203 = vpop.f32.mrf.mxu0
    %v204 = vadd.f32 0.0, %v203
    %205 = vmatprep.mubr.f32.mxu0 0.0
    %206 = vmatmul.mubr.f32.gmra.mxu0 0.0
    %v207 = vpop.f32.mrf.mxu0
    %v208 = vadd.f32 0.0, %v207
    %v209 = vpop.f32.mrf.mxu0
    %v210 = vadd.f32 0.0, %v209
    %211 = vmatprep.mubr.f32.mxu0 0.0
    %212 = vmatmul.mubr.f32.gmra.mxu0 0.0
    %v213 = vpop.f32.mrf.mxu0
    %v214 = vadd.f32 0.0, %v213
    %v215 = vpop.f32.mrf.mxu0
    %v216 = vadd.f32 0.0, %v215
    %217 = vdwg.mxu0
    %218 = vmatprep.subr.mxu0 0.0
    %219 = vmatpush1.msra.mxu0 %v128
    %220 = vmatprep.subr.mxu0 0.0
    %221 = vmatpush1.msra.mxu0 %v125
    %222 = vmatprep.subr.mxu0 0.0
    %223 = vmatpush1.msra.mxu0 %v122
    %224 = vmatprep.subr.mxu0 0.0
    %225 = vmatpush1.msra.mxu0 %v119
    %226 = vmatprep.subr.mxu0 0.0
    %227 = vmatpush1.msra.mxu0 %v116
    %228 = vmatprep.subr.mxu0 0.0
    %229 = vmatpush1.msra.mxu0 %v113
    %230 = vmatprep.subr.mxu0 0.0
    %231 = vmatpush1.msra.mxu0 %v110
    %232 = vmatprep.subr.mxu0 0.0
    %233 = vmatpush1.msra.mxu0 %v107
    %234 = vmatprep.subr.mxu0 0.0
    %235 = vmatpush1.msra.mxu0 %v104
    %236 = vmatprep.subr.mxu0 0.0
    %237 = vmatpush1.msra.mxu0 %v101
    %238 = vmatprep.subr.mxu0 0.0
    %239 = vmatpush1.msra.mxu0 %v98
    %240 = vmatprep.subr.mxu0 0.0
    %241 = vmatpush1.msra.mxu0 %v95
    %242 = vmatprep.subr.mxu0 0.0
    %243 = vmatpush1.msra.mxu0 %v92
    %244 = vmatprep.subr.mxu0 0.0
    %245 = vmatpush1.msra.mxu0 %v89
    %246 = vmatprep.subr.mxu0 0.0
    %247 = vmatpush1.msra.mxu0 %v86
    %248 = vmatprep.subr.mxu0 0.0
    %249 = vmatpush1.msra.mxu0 %v83
    %250 = vmatprep.subr.mxu0 0.0
    %251 = vmatpush2.msra.mxu0 0.0
    %252 = vmatprep.subr.mxu0 0.0
    %253 = vmatpush2.msra.mxu0 0.0
    %254 = vmatprep.subr.mxu0 0.0
    %255 = vmatpush2.msra.mxu0 0.0
    %256 = vmatprep.subr.mxu0 0.0
    %257 = vmatpush2.msra.mxu0 0.0
    %258 = vmatprep.subr.mxu0 0.0
    %259 = vmatpush2.msra.mxu0 0.0
    %260 = vmatprep.subr.mxu0 0.0
    %261 = vmatpush2.msra.mxu0 0.0
    %262 = vmatprep.subr.mxu0 0.0
    %263 = vmatpush2.msra.mxu0 0.0
    %264 = vmatprep.subr.mxu0 0.0
    %265 = vmatpush2.msra.mxu0 0.0
    %266 = vmatprep.subr.mxu0 0.0
    %267 = vmatpush2.msra.mxu0 0.0
    %268 = vmatprep.subr.mxu0 0.0
    %269 = vmatpush2.msra.mxu0 0.0
    %270 = vmatprep.subr.mxu0 0.0
    %271 = vmatpush2.msra.mxu0 0.0
    %272 = vmatprep.subr.mxu0 0.0
    %273 = vmatpush2.msra.mxu0 0.0
    %274 = vmatprep.subr.mxu0 0.0
    %275 = vmatpush2.msra.mxu0 0.0
    %276 = vmatprep.subr.mxu0 0.0
    %277 = vmatpush2.msra.mxu0 0.0
    %278 = vmatprep.subr.mxu0 0.0
    %279 = vmatpush2.msra.mxu0 0.0
    %280 = vmatprep.subr.mxu0 0.0
    %281 = vmatpush2.msra.mxu0 0.0
    %282 = vmatprep.mubr.f32.mxu0 0.0
    %283 = vmatmul.mubr.f32.gmra.mxu0 0.0
    %v284 = vpop.f32.mrf.mxu0
    %v285 = vadd.f32 0.0, %v284
    %v286 = vpop.f32.mrf.mxu0
    %287 = vmatprep.mubr.f32.mxu0 0.0
    %288 = vmatmul.mubr.f32.gmra.mxu0 0.0
    %v289 = vpop.f32.mrf.mxu0
    %v290 = vadd.f32 0.0, %v289
    %v291 = vpop.f32.mrf.mxu0
    %292 = vmatprep.mubr.f32.mxu0 0.0
    %293 = vmatmul.mubr.f32.gmra.mxu0 0.0
    %v294 = vpop.f32.mrf.mxu0
    %v295 = vadd.f32 0.0, %v294
    %v296 = vpop.f32.mrf.mxu0
    %297 = vmatprep.mubr.f32.mxu0 0.0
    %298 = vmatmul.mubr.f32.gmra.mxu0 0.0
    %v299 = vpop.f32.mrf.mxu0
    %v300 = vadd.f32 0.0, %v299
    %v301 = vpop.f32.mrf.mxu0
    %302 = vdwg.mxu0
    %v303 = vadd.f32 %v69, %v196
    %v304 = vadd.f32 %v72, %v202
    %v305 = vadd.f32 %v75, %v208
    %v306 = vadd.f32 %v78, %v214
    %v307 = vxor.u32 %v303, 2147483648
    %v308 = vxor.u32 %v304, 2147483648
    %v309 = vxor.u32 %v305, 2147483648
    %v310 = vxor.u32 %v306, 2147483648
    %v311 = vmul.f32 %v307, 1.442695
    %v312 = vpow.pop %v311
    %v313 = vmul.f32 %v308, 1.442695
    %v314 = vpow.pop %v313
    %v315 = vmul.f32 %v309, 1.442695
    %v316 = vpow.pop %v315
    %v317 = vmul.f32 %v310, 1.442695
    %v318 = vpow.pop %v317
    %v319 = vadd.f32 %v312, 1.0
    %v320 = vadd.f32 %v314, 1.0
    %v321 = vadd.f32 %v316, 1.0
    %v322 = vadd.f32 %v318, 1.0
    %v323 = vrcp.pop %v319
    %v324 = vmul.f32 1.0, %v323
    %v325 = vrcp.pop %v320
    %v326 = vmul.f32 1.0, %v325
    %v327 = vrcp.pop %v321
    %v328 = vmul.f32 1.0, %v327
    %v329 = vrcp.pop %v322
    %v330 = vmul.f32 1.0, %v329
    %v331 = vadd.f32 %v70, %v198
    %v332 = vadd.f32 %v73, %v204
    %v333 = vadd.f32 %v76, %v210
    %v334 = vadd.f32 %v79, %v216
    %v335 = vxor.u32 %v331, 2147483648
    %v336 = vxor.u32 %v332, 2147483648
    %v337 = vxor.u32 %v333, 2147483648
    %v338 = vxor.u32 %v334, 2147483648
    %v339 = vmul.f32 %v335, 1.442695
    %v340 = vpow.pop %v339
    %v341 = vmul.f32 %v336, 1.442695
    %v342 = vpow.pop %v341
    %v343 = vmul.f32 %v337, 1.442695
    %v344 = vpow.pop %v343
    %v345 = vmul.f32 %v338, 1.442695
    %v346 = vpow.pop %v345
    %v347 = vadd.f32 %v340, 1.0
    %v348 = vadd.f32 %v342, 1.0
    %v349 = vadd.f32 %v344, 1.0
    %v350 = vadd.f32 %v346, 1.0
    %v351 = vrcp.pop %v347
    %v352 = vmul.f32 1.0, %v351
    %v353 = vrcp.pop %v348
    %v354 = vmul.f32 1.0, %v353
    %v355 = vrcp.pop %v349
    %v356 = vmul.f32 1.0, %v355
    %v357 = vrcp.pop %v350
    %v358 = vmul.f32 1.0, %v357
    %v359 = vadd.f32 %v285, %v67
    %v360 = vadd.f32 %v290, %v67
    %v361 = vadd.f32 %v295, %v67
    %v362 = vadd.f32 %v300, %v67
    %v363 = vmul.f32 %v324, %v359
    %v364 = vmul.f32 %v326, %v360
    %v365 = vmul.f32 %v328, %v361
    %v366 = vmul.f32 %v330, %v362
    %v367 = vadd.f32 %v71, %v363
    %v368 = vadd.f32 %v74, %v364
    %v369 = vadd.f32 %v77, %v365
    %v370 = vadd.f32 %v80, %v366
    %v371 = vtanh.pop %v367
    %v372 = vtanh.pop %v368
    %v373 = vtanh.pop %v369
    %v374 = vtanh.pop %v370
    %v375 = vsub.f32 1.0, %v352
    %v376 = vsub.f32 1.0, %v354
    %v377 = vsub.f32 1.0, %v356
    %v378 = vsub.f32 1.0, %v358
    %v379 = vmul.f32 %v375, %v371
    %v380 = vmul.f32 %v376, %v372
    %v381 = vmul.f32 %v377, %v373
    %v382 = vmul.f32 %v378, %v374
    %v383 = vmul.f32 %v352, 0.0
    %v384 = vmul.f32 %v354, 0.0
    %v385 = vmul.f32 %v356, 0.0
    %v386 = vmul.f32 %v358, 0.0
    %v387 = vadd.f32 %v379, %v383
    %v388 = vadd.f32 %v380, %v384
    %v389 = vadd.f32 %v381, %v385
    %v390 = vadd.f32 %v382, %v386
    %391 = vst [vmem:[#allocation2] sm:$0xff] %v387
    %392 = vst [vmem:[#allocation2 + $0x60] sm:$0xff] %v388
    %393 = vst [vmem:[#allocation2 + $0xc0] sm:$0xff] %v389
    %394 = vst [vmem:[#allocation2 + $0x120] sm:$0xff] %v390
    %s395 = scalar_lea.vmem [#allocation3], 96
    %v396 = vld [vmem:[%s395] sm:$0xff]
    %v397 = vld [vmem:[%s395 + $0x8] sm:$0xff]
    %v398 = vld [vmem:[%s395 + $0x10] sm:$0xff]
    %v399 = vld [vmem:[%s395 + $0x18] sm:$0xff]
    %v400 = vld [vmem:[%s395 + $0x20] sm:$0xff]
    %v401 = vld [vmem:[%s395 + $0x28] sm:$0xff]
    %v402 = vld [vmem:[%s395 + $0x30] sm:$0xff]
    %v403 = vld [vmem:[%s395 + $0x38] sm:$0xff]
    %v404 = vld [vmem:[%s395 + $0x40] sm:$0xff]
    %v405 = vld [vmem:[%s395 + $0x48] sm:$0xff]
    %v406 = vld [vmem:[%s395 + $0x50] sm:$0xff]
    %v407 = vld [vmem:[%s395 + $0x58] sm:$0xff]
    %v408 = vld [vmem:[#allocation6] sm:$0xff]
    %v409 = vld [vmem:[#allocation6 + $0x8] sm:$0xff]
    %v410 = vld [vmem:[#allocation6 + $0x10] sm:$0xff]
    %v411 = vld [vmem:[#allocation6 + $0x18] sm:$0xff]
    %v412 = vld [vmem:[#allocation6 + $0x20] sm:$0xff]
    %v413 = vld [vmem:[#allocation6 + $0x28] sm:$0xff]
    %v414 = vld [vmem:[#allocation6 + $0x30] sm:$0xff]
    %v415 = vld [vmem:[#allocation6 + $0x38] sm:$0xff]
    %v416 = vld [vmem:[#allocation6 + $0x40] sm:$0xff]
    %v417 = vld [vmem:[#allocation6 + $0x48] sm:$0xff]
    %v418 = vld [vmem:[#allocation6 + $0x50] sm:$0xff]
    %v419 = vld [vmem:[#allocation6 + $0x58] sm:$0xff]
    %v420 = vld [vmem:[#allocation6 + $0x60] sm:$0xff]
    %v421 = vld [vmem:[#allocation6 + $0x68] sm:$0xff]
    %v422 = vld [vmem:[#allocation6 + $0x70] sm:$0xff]
    %v423 = vld [vmem:[#allocation6 + $0x78] sm:$0xff]
    %v424 = vld [vmem:[#allocation6 + $0x80] sm:$0xff]
    %v425 = vld [vmem:[#allocation6 + $0x88] sm:$0xff]
    %v426 = vld [vmem:[#allocation6 + $0x90] sm:$0xff]
    %v427 = vld [vmem:[#allocation6 + $0x98] sm:$0xff]
    %v428 = vld [vmem:[#allocation6 + $0xa0] sm:$0xff]
    %v429 = vld [vmem:[#allocation6 + $0xa8] sm:$0xff]
    %v430 = vld [vmem:[#allocation6 + $0xb0] sm:$0xff]
    %v431 = vld [vmem:[#allocation6 + $0xb8] sm:$0xff]
    %v432 = vld [vmem:[#allocation6 + $0xc0] sm:$0xff]
    %v433 = vld [vmem:[#allocation6 + $0xc8] sm:$0xff]
    %v434 = vld [vmem:[#allocation6 + $0xd0] sm:$0xff]
    %v435 = vld [vmem:[#allocation6 + $0xd8] sm:$0xff]
    %v436 = vld [vmem:[#allocation6 + $0xe0] sm:$0xff]
    %v437 = vld [vmem:[#allocation6 + $0xe8] sm:$0xff]
    %v438 = vld [vmem:[#allocation6 + $0xf0] sm:$0xff]
    %v439 = vld [vmem:[#allocation6 + $0xf8] sm:$0xff]
    %v440 = vld [vmem:[#allocation6 + $0x100] sm:$0xff]
    %v441 = vld [vmem:[#allocation6 + $0x108] sm:$0xff]
    %v442 = vld [vmem:[#allocation6 + $0x110] sm:$0xff]
    %v443 = vld [vmem:[#allocation6 + $0x118] sm:$0xff]
    %v444 = vld [vmem:[#allocation6 + $0x120] sm:$0xff]
    %v445 = vld [vmem:[#allocation6 + $0x128] sm:$0xff]
    %v446 = vld [vmem:[#allocation6 + $0x130] sm:$0xff]
    %v447 = vld [vmem:[#allocation6 + $0x138] sm:$0xff]
    %v448 = vld [vmem:[#allocation6 + $0x140] sm:$0xff]
    %v449 = vld [vmem:[#allocation6 + $0x148] sm:$0xff]
    %v450 = vld [vmem:[#allocation6 + $0x150] sm:$0xff]
    %v451 = vld [vmem:[#allocation6 + $0x158] sm:$0xff]
    %v452 = vld [vmem:[#allocation6 + $0x160] sm:$0xff]
    %v453 = vld [vmem:[#allocation6 + $0x168] sm:$0xff]
    %v454 = vld [vmem:[#allocation6 + $0x170] sm:$0xff]
    %v455 = vld [vmem:[#allocation6 + $0x178] sm:$0xff]
    %456 = vmatprep.subr.mxu0 %v454
    %457 = vmatpush1.msra.mxu0 %v453
    %458 = vmatprep.subr.mxu0 %v451
    %459 = vmatpush1.msra.mxu0 %v450
    %460 = vmatprep.subr.mxu0 %v448
    %461 = vmatpush1.msra.mxu0 %v447
    %462 = vmatprep.subr.mxu0 %v445
    %463 = vmatpush1.msra.mxu0 %v444
    %464 = vmatprep.subr.mxu0 %v442
    %465 = vmatpush1.msra.mxu0 %v441
    %466 = vmatprep.subr.mxu0 %v439
    %467 = vmatpush1.msra.mxu0 %v438
    %468 = vmatprep.subr.mxu0 %v436
    %469 = vmatpush1.msra.mxu0 %v435
    %470 = vmatprep.subr.mxu0 %v433
    %471 = vmatpush1.msra.mxu0 %v432
    %472 = vmatprep.subr.mxu0 %v430
    %473 = vmatpush1.msra.mxu0 %v429
    %474 = vmatprep.subr.mxu0 %v427
    %475 = vmatpush1.msra.mxu0 %v426
    %476 = vmatprep.subr.mxu0 %v424
    %477 = vmatpush1.msra.mxu0 %v423
    %478 = vmatprep.subr.mxu0 %v421
    %479 = vmatpush1.msra.mxu0 %v420
    %480 = vmatprep.subr.mxu0 %v418
    %481 = vmatpush1.msra.mxu0 %v417
    %482 = vmatprep.subr.mxu0 %v415
    %483 = vmatpush1.msra.mxu0 %v414
    %484 = vmatprep.subr.mxu0 %v412
    %485 = vmatpush1.msra.mxu0 %v411
    %486 = vmatprep.subr.mxu0 %v409
    %487 = vmatpush1.msra.mxu0 %v408
    %488 = vmatprep.subr.mxu0 0.0
    %489 = vmatpush2.msra.mxu0 0.0
    %490 = vmatprep.subr.mxu0 0.0
    %491 = vmatpush2.msra.mxu0 0.0
    %492 = vmatprep.subr.mxu0 0.0
    %493 = vmatpush2.msra.mxu0 0.0
    %494 = vmatprep.subr.mxu0 0.0
    %495 = vmatpush2.msra.mxu0 0.0
    %496 = vmatprep.subr.mxu0 0.0
    %497 = vmatpush2.msra.mxu0 0.0
    %498 = vmatprep.subr.mxu0 0.0
    %499 = vmatpush2.msra.mxu0 0.0
    %500 = vmatprep.subr.mxu0 0.0
    %501 = vmatpush2.msra.mxu0 0.0
    %502 = vmatprep.subr.mxu0 0.0
    %503 = vmatpush2.msra.mxu0 0.0
    %504 = vmatprep.subr.mxu0 0.0
    %505 = vmatpush2.msra.mxu0 0.0
    %506 = vmatprep.subr.mxu0 0.0
    %507 = vmatpush2.msra.mxu0 0.0
    %508 = vmatprep.subr.mxu0 0.0
    %509 = vmatpush2.msra.mxu0 0.0
    %510 = vmatprep.subr.mxu0 0.0
    %511 = vmatpush2.msra.mxu0 0.0
    %512 = vmatprep.subr.mxu0 0.0
    %513 = vmatpush2.msra.mxu0 0.0
    %514 = vmatprep.subr.mxu0 0.0
    %515 = vmatpush2.msra.mxu0 0.0
    %516 = vmatprep.subr.mxu0 0.0
    %517 = vmatpush2.msra.mxu0 0.0
    %518 = vmatprep.subr.mxu0 0.0
    %519 = vmatpush2.msra.mxu0 0.0
    %520 = vmatprep.mubr.f32.mxu0 0.0
    %521 = vmatmul.mubr.f32.gmra.mxu0 %v387
    %v522 = vpop.f32.mrf.mxu0
    %v523 = vadd.f32 0.0, %v522
    %v524 = vpop.f32.mrf.mxu0
    %v525 = vadd.f32 0.0, %v524
    %526 = vmatprep.mubr.f32.mxu0 0.0
    %527 = vmatmul.mubr.f32.gmra.mxu0 %v388
    %v528 = vpop.f32.mrf.mxu0
    %v529 = vadd.f32 0.0, %v528
    %v530 = vpop.f32.mrf.mxu0
    %v531 = vadd.f32 0.0, %v530
    %532 = vmatprep.mubr.f32.mxu0 0.0
    %533 = vmatmul.mubr.f32.gmra.mxu0 %v389
    %v534 = vpop.f32.mrf.mxu0
    %v535 = vadd.f32 0.0, %v534
    %v536 = vpop.f32.mrf.mxu0
    %v537 = vadd.f32 0.0, %v536
    %538 = vmatprep.mubr.f32.mxu0 0.0
    %539 = vmatmul.mubr.f32.gmra.mxu0 %v390
    %v540 = vpop.f32.mrf.mxu0
    %v541 = vadd.f32 0.0, %v540
    %v542 = vpop.f32.mrf.mxu0
    %v543 = vadd.f32 0.0, %v542
    %544 = vdwg.mxu0
    %545 = vmatprep.subr.mxu0 0.0
    %546 = vmatpush1.msra.mxu0 %v455
    %547 = vmatprep.subr.mxu0 0.0
    %548 = vmatpush1.msra.mxu0 %v452
    %549 = vmatprep.subr.mxu0 0.0
    %550 = vmatpush1.msra.mxu0 %v449
    %551 = vmatprep.subr.mxu0 0.0
    %552 = vmatpush1.msra.mxu0 %v446
    %553 = vmatprep.subr.mxu0 0.0
    %554 = vmatpush1.msra.mxu0 %v443
    %555 = vmatprep.subr.mxu0 0.0
    %556 = vmatpush1.msra.mxu0 %v440
    %557 = vmatprep.subr.mxu0 0.0
    %558 = vmatpush1.msra.mxu0 %v437
    %559 = vmatprep.subr.mxu0 0.0
    %560 = vmatpush1.msra.mxu0 %v434
    %561 = vmatprep.subr.mxu0 0.0
    %562 = vmatpush1.msra.mxu0 %v431
    %563 = vmatprep.subr.mxu0 0.0
    %564 = vmatpush1.msra.mxu0 %v428
    %565 = vmatprep.subr.mxu0 0.0
    %566 = vmatpush1.msra.mxu0 %v425
    %567 = vmatprep.subr.mxu0 0.0
    %568 = vmatpush1.msra.mxu0 %v422
    %569 = vmatprep.subr.mxu0 0.0
    %570 = vmatpush1.msra.mxu0 %v419
    %571 = vmatprep.subr.mxu0 0.0
    %572 = vmatpush1.msra.mxu0 %v416
    %573 = vmatprep.subr.mxu0 0.0
    %574 = vmatpush1.msra.mxu0 %v413
    %575 = vmatprep.subr.mxu0 0.0
    %576 = vmatpush1.msra.mxu0 %v410
    %577 = vmatprep.subr.mxu0 0.0
    %578 = vmatpush2.msra.mxu0 0.0
    %579 = vmatprep.subr.mxu0 0.0
    %580 = vmatpush2.msra.mxu0 0.0
    %581 = vmatprep.subr.mxu0 0.0
    %582 = vmatpush2.msra.mxu0 0.0
    %583 = vmatprep.subr.mxu0 0.0
    %584 = vmatpush2.msra.mxu0 0.0
    %585 = vmatprep.subr.mxu0 0.0
    %586 = vmatpush2.msra.mxu0 0.0
    %587 = vmatprep.subr.mxu0 0.0
    %588 = vmatpush2.msra.mxu0 0.0
    %589 = vmatprep.subr.mxu0 0.0
    %590 = vmatpush2.msra.mxu0 0.0
    %591 = vmatprep.subr.mxu0 0.0
    %592 = vmatpush2.msra.mxu0 0.0
    %593 = vmatprep.subr.mxu0 0.0
    %594 = vmatpush2.msra.mxu0 0.0
    %595 = vmatprep.subr.mxu0 0.0
    %596 = vmatpush2.msra.mxu0 0.0
    %597 = vmatprep.subr.mxu0 0.0
    %598 = vmatpush2.msra.mxu0 0.0
    %599 = vmatprep.subr.mxu0 0.0
    %600 = vmatpush2.msra.mxu0 0.0
    %601 = vmatprep.subr.mxu0 0.0
    %602 = vmatpush2.msra.mxu0 0.0
    %603 = vmatprep.subr.mxu0 0.0
    %604 = vmatpush2.msra.mxu0 0.0
    %605 = vmatprep.subr.mxu0 0.0
    %606 = vmatpush2.msra.mxu0 0.0
    %607 = vmatprep.subr.mxu0 0.0
    %608 = vmatpush2.msra.mxu0 0.0
    %609 = vmatprep.mubr.f32.mxu0 0.0
    %610 = vmatmul.mubr.f32.gmra.mxu0 %v387
    %v611 = vpop.f32.mrf.mxu0
    %v612 = vadd.f32 0.0, %v611
    %v613 = vpop.f32.mrf.mxu0
    %614 = vmatprep.mubr.f32.mxu0 0.0
    %615 = vmatmul.mubr.f32.gmra.mxu0 %v388
    %v616 = vpop.f32.mrf.mxu0
    %v617 = vadd.f32 0.0, %v616
    %v618 = vpop.f32.mrf.mxu0
    %619 = vmatprep.mubr.f32.mxu0 0.0
    %620 = vmatmul.mubr.f32.gmra.mxu0 %v389
    %v621 = vpop.f32.mrf.mxu0
    %v622 = vadd.f32 0.0, %v621
    %v623 = vpop.f32.mrf.mxu0
    %624 = vmatprep.mubr.f32.mxu0 0.0
    %625 = vmatmul.mubr.f32.gmra.mxu0 %v390
    %v626 = vpop.f32.mrf.mxu0
    %v627 = vadd.f32 0.0, %v626
    %v628 = vpop.f32.mrf.mxu0
    %629 = vdwg.mxu0
    %v630 = vadd.f32 %v396, %v523
    %v631 = vadd.f32 %v399, %v529
    %v632 = vadd.f32 %v402, %v535
    %v633 = vadd.f32 %v405, %v541
    %v634 = vxor.u32 %v630, 2147483648
    %v635 = vxor.u32 %v631, 2147483648
    %v636 = vxor.u32 %v632, 2147483648
    %v637 = vxor.u32 %v633, 2147483648
    %v638 = vmul.f32 %v634, 1.442695
    %v639 = vpow.pop %v638
    %v640 = vmul.f32 %v635, 1.442695
    %v641 = vpow.pop %v640
    %v642 = vmul.f32 %v636, 1.442695
    %v643 = vpow.pop %v642
    %v644 = vmul.f32 %v637, 1.442695
    %v645 = vpow.pop %v644
    %v646 = vadd.f32 %v639, 1.0
    %v647 = vadd.f32 %v641, 1.0
    %v648 = vadd.f32 %v643, 1.0
    %v649 = vadd.f32 %v645, 1.0
    %v650 = vrcp.pop %v646
    %v651 = vmul.f32 1.0, %v650
    %v652 = vrcp.pop %v647
    %v653 = vmul.f32 1.0, %v652
    %v654 = vrcp.pop %v648
    %v655 = vmul.f32 1.0, %v654
    %v656 = vrcp.pop %v649
    %v657 = vmul.f32 1.0, %v656
    %v658 = vadd.f32 %v397, %v525
    %v659 = vadd.f32 %v400, %v531
    %v660 = vadd.f32 %v403, %v537
    %v661 = vadd.f32 %v406, %v543
    %v662 = vxor.u32 %v658, 2147483648
    %v663 = vxor.u32 %v659, 2147483648
    %v664 = vxor.u32 %v660, 2147483648
    %v665 = vxor.u32 %v661, 2147483648
    %v666 = vmul.f32 %v662, 1.442695
    %v667 = vpow.pop %v666
    %v668 = vmul.f32 %v663, 1.442695
    %v669 = vpow.pop %v668
    %v670 = vmul.f32 %v664, 1.442695
    %v671 = vpow.pop %v670
    %v672 = vmul.f32 %v665, 1.442695
    %v673 = vpow.pop %v672
    %v674 = vadd.f32 %v667, 1.0
    %v675 = vadd.f32 %v669, 1.0
    %v676 = vadd.f32 %v671, 1.0
    %v677 = vadd.f32 %v673, 1.0
    %v678 = vrcp.pop %v674
    %v679 = vmul.f32 1.0, %v678
    %v680 = vrcp.pop %v675
    %v681 = vmul.f32 1.0, %v680
    %v682 = vrcp.pop %v676
    %v683 = vmul.f32 1.0, %v682
    %v684 = vrcp.pop %v677
    %v685 = vmul.f32 1.0, %v684
    %v686 = vadd.f32 %v612, %v67
    %v687 = vadd.f32 %v617, %v67
    %v688 = vadd.f32 %v622, %v67
    %v689 = vadd.f32 %v627, %v67
    %v690 = vmul.f32 %v651, %v686
    %v691 = vmul.f32 %v653, %v687
    %v692 = vmul.f32 %v655, %v688
    %v693 = vmul.f32 %v657, %v689
    %v694 = vadd.f32 %v398, %v690
    %v695 = vadd.f32 %v401, %v691
    %v696 = vadd.f32 %v404, %v692
    %v697 = vadd.f32 %v407, %v693
    %v698 = vtanh.pop %v694
    %v699 = vtanh.pop %v695
    %v700 = vtanh.pop %v696
    %v701 = vtanh.pop %v697
    %v702 = vsub.f32 1.0, %v679
    %v703 = vsub.f32 1.0, %v681
    %v704 = vsub.f32 1.0, %v683
    %v705 = vsub.f32 1.0, %v685
    %v706 = vmul.f32 %v702, %v698
    %v707 = vmul.f32 %v703, %v699
    %v708 = vmul.f32 %v704, %v700
    %v709 = vmul.f32 %v705, %v701
    %v710 = vmul.f32 %v679, %v387
    %v711 = vmul.f32 %v681, %v388
    %v712 = vmul.f32 %v683, %v389
    %v713 = vmul.f32 %v685, %v390
    %v714 = vadd.f32 %v706, %v710
    %v715 = vadd.f32 %v707, %v711
    %v716 = vadd.f32 %v708, %v712
    %v717 = vadd.f32 %v709, %v713
    %718 = vst [vmem:[#allocation2 + $0x8] sm:$0xff] %v714
    %719 = vst [vmem:[#allocation2 + $0x68] sm:$0xff] %v715
    %720 = vst [vmem:[#allocation2 + $0xc8] sm:$0xff] %v716
    %721 = vst [vmem:[#allocation2 + $0x128] sm:$0xff] %v717
    %s722 = scalar_lea.vmem [#allocation3], 192
    %v723 = vld [vmem:[%s722] sm:$0xff]
    %v724 = vld [vmem:[%s722 + $0x8] sm:$0xff]
    %v725 = vld [vmem:[%s722 + $0x10] sm:$0xff]
    %v726 = vld [vmem:[%s722 + $0x18] sm:$0xff]
    %v727 = vld [vmem:[%s722 + $0x20] sm:$0xff]
    %v728 = vld [vmem:[%s722 + $0x28] sm:$0xff]
    %v729 = vld [vmem:[%s722 + $0x30] sm:$0xff]
    %v730 = vld [vmem:[%s722 + $0x38] sm:$0xff]
    %v731 = vld [vmem:[%s722 + $0x40] sm:$0xff]
    %v732 = vld [vmem:[%s722 + $0x48] sm:$0xff]
    %v733 = vld [vmem:[%s722 + $0x50] sm:$0xff]
    %v734 = vld [vmem:[%s722 + $0x58] sm:$0xff]
    %v735 = vld [vmem:[#allocation6] sm:$0xff]
    %v736 = vld [vmem:[#allocation6 + $0x8] sm:$0xff]
    %v737 = vld [vmem:[#allocation6 + $0x10] sm:$0xff]
    %v738 = vld [vmem:[#allocation6 + $0x18] sm:$0xff]
    %v739 = vld [vmem:[#allocation6 + $0x20] sm:$0xff]
    %v740 = vld [vmem:[#allocation6 + $0x28] sm:$0xff]
    %v741 = vld [vmem:[#allocation6 + $0x30] sm:$0xff]
    %v742 = vld [vmem:[#allocation6 + $0x38] sm:$0xff]
    %v743 = vld [vmem:[#allocation6 + $0x40] sm:$0xff]
    %v744 = vld [vmem:[#allocation6 + $0x48] sm:$0xff]
    %v745 = vld [vmem:[#allocation6 + $0x50] sm:$0xff]
    %v746 = vld [vmem:[#allocation6 + $0x58] sm:$0xff]
    %v747 = vld [vmem:[#allocation6 + $0x60] sm:$0xff]
    %v748 = vld [vmem:[#allocation6 + $0x68] sm:$0xff]
    %v749 = vld [vmem:[#allocation6 + $0x70] sm:$0xff]
    %v750 = vld [vmem:[#allocation6 + $0x78] sm:$0xff]
    %v751 = vld [vmem:[#allocation6 + $0x80] sm:$0xff]
    %v752 = vld [vmem:[#allocation6 + $0x88] sm:$0xff]
    %v753 = vld [vmem:[#allocation6 + $0x90] sm:$0xff]
    %v754 = vld [vmem:[#allocation6 + $0x98] sm:$0xff]
    %v755 = vld [vmem:[#allocation6 + $0xa0] sm:$0xff]
    %v756 = vld [vmem:[#allocation6 + $0xa8] sm:$0xff]
    %v757 = vld [vmem:[#allocation6 + $0xb0] sm:$0xff]
    %v758 = vld [vmem:[#allocation6 + $0xb8] sm:$0xff]
    %v759 = vld [vmem:[#allocation6 + $0xc0] sm:$0xff]
    %v760 = vld [vmem:[#allocation6 + $0xc8] sm:$0xff]
    %v761 = vld [vmem:[#allocation6 + $0xd0] sm:$0xff]
    %v762 = vld [vmem:[#allocation6 + $0xd8] sm:$0xff]
    %v763 = vld [vmem:[#allocation6 + $0xe0] sm:$0xff]
    %v764 = vld [vmem:[#allocation6 + $0xe8] sm:$0xff]
    %v765 = vld [vmem:[#allocation6 + $0xf0] sm:$0xff]
    %v766 = vld [vmem:[#allocation6 + $0xf8] sm:$0xff]
    %v767 = vld [vmem:[#allocation6 + $0x100] sm:$0xff]
    %v768 = vld [vmem:[#allocation6 + $0x108] sm:$0xff]
    %v769 = vld [vmem:[#allocation6 + $0x110] sm:$0xff]
    %v770 = vld [vmem:[#allocation6 + $0x118] sm:$0xff]
    %v771 = vld [vmem:[#allocation6 + $0x120] sm:$0xff]
    %v772 = vld [vmem:[#allocation6 + $0x128] sm:$0xff]
    %v773 = vld [vmem:[#allocation6 + $0x130] sm:$0xff]
    %v774 = vld [vmem:[#allocation6 + $0x138] sm:$0xff]
    %v775 = vld [vmem:[#allocation6 + $0x140] sm:$0xff]
    %v776 = vld [vmem:[#allocation6 + $0x148] sm:$0xff]
    %v777 = vld [vmem:[#allocation6 + $0x150] sm:$0xff]
    %v778 = vld [vmem:[#allocation6 + $0x158] sm:$0xff]
    %v779 = vld [vmem:[#allocation6 + $0x160] sm:$0xff]
    %v780 = vld [vmem:[#allocation6 + $0x168] sm:$0xff]
    %v781 = vld [vmem:[#allocation6 + $0x170] sm:$0xff]
    %v782 = vld [vmem:[#allocation6 + $0x178] sm:$0xff]
    %783 = vmatprep.subr.mxu0 %v781
    %784 = vmatpush1.msra.mxu0 %v780
    %785 = vmatprep.subr.mxu0 %v778
    %786 = vmatpush1.msra.mxu0 %v777
    %787 = vmatprep.subr.mxu0 %v775
    %788 = vmatpush1.msra.mxu0 %v774
    %789 = vmatprep.subr.mxu0 %v772
    %790 = vmatpush1.msra.mxu0 %v771
    %791 = vmatprep.subr.mxu0 %v769
    %792 = vmatpush1.msra.mxu0 %v768
    %793 = vmatprep.subr.mxu0 %v766
    %794 = vmatpush1.msra.mxu0 %v765
    %795 = vmatprep.subr.mxu0 %v763
    %796 = vmatpush1.msra.mxu0 %v762
    %797 = vmatprep.subr.mxu0 %v760
    %798 = vmatpush1.msra.mxu0 %v759
    %799 = vmatprep.subr.mxu0 %v757
    %800 = vmatpush1.msra.mxu0 %v756
    %801 = vmatprep.subr.mxu0 %v754
    %802 = vmatpush1.msra.mxu0 %v753
    %803 = vmatprep.subr.mxu0 %v751
    %804 = vmatpush1.msra.mxu0 %v750
    %805 = vmatprep.subr.mxu0 %v748
    %806 = vmatpush1.msra.mxu0 %v747
    %807 = vmatprep.subr.mxu0 %v745
    %808 = vmatpush1.msra.mxu0 %v744
    %809 = vmatprep.subr.mxu0 %v742
    %810 = vmatpush1.msra.mxu0 %v741
    %811 = vmatprep.subr.mxu0 %v739
    %812 = vmatpush1.msra.mxu0 %v738
    %813 = vmatprep.subr.mxu0 %v736
    %814 = vmatpush1.msra.mxu0 %v735
    %815 = vmatprep.subr.mxu0 0.0
    %816 = vmatpush2.msra.mxu0 0.0
    %817 = vmatprep.subr.mxu0 0.0
    %818 = vmatpush2.msra.mxu0 0.0
    %819 = vmatprep.subr.mxu0 0.0
    %820 = vmatpush2.msra.mxu0 0.0
    %821 = vmatprep.subr.mxu0 0.0
    %822 = vmatpush2.msra.mxu0 0.0
    %823 = vmatprep.subr.mxu0 0.0
    %824 = vmatpush2.msra.mxu0 0.0
    %825 = vmatprep.subr.mxu0 0.0
    %826 = vmatpush2.msra.mxu0 0.0
    %827 = vmatprep.subr.mxu0 0.0
    %828 = vmatpush2.msra.mxu0 0.0
    %829 = vmatprep.subr.mxu0 0.0
    %830 = vmatpush2.msra.mxu0 0.0
    %831 = vmatprep.subr.mxu0 0.0
    %832 = vmatpush2.msra.mxu0 0.0
    %833 = vmatprep.subr.mxu0 0.0
    %834 = vmatpush2.msra.mxu0 0.0
    %835 = vmatprep.subr.mxu0 0.0
    %836 = vmatpush2.msra.mxu0 0.0
    %837 = vmatprep.subr.mxu0 0.0
    %838 = vmatpush2.msra.mxu0 0.0
    %839 = vmatprep.subr.mxu0 0.0
    %840 = vmatpush2.msra.mxu0 0.0
    %841 = vmatprep.subr.mxu0 0.0
    %842 = vmatpush2.msra.mxu0 0.0
    %843 = vmatprep.subr.mxu0 0.0
    %844 = vmatpush2.msra.mxu0 0.0
    %845 = vmatprep.subr.mxu0 0.0
    %846 = vmatpush2.msra.mxu0 0.0
    %847 = vmatprep.mubr.f32.mxu0 0.0
    %848 = vmatmul.mubr.f32.gmra.mxu0 %v714
    %v849 = vpop.f32.mrf.mxu0
    %v850 = vadd.f32 0.0, %v849
    %v851 = vpop.f32.mrf.mxu0
    %v852 = vadd.f32 0.0, %v851
    %853 = vmatprep.mubr.f32.mxu0 0.0
    %854 = vmatmul.mubr.f32.gmra.mxu0 %v715
    %v855 = vpop.f32.mrf.mxu0
    %v856 = vadd.f32 0.0, %v855
    %v857 = vpop.f32.mrf.mxu0
    %v858 = vadd.f32 0.0, %v857
    %859 = vmatprep.mubr.f32.mxu0 0.0
    %860 = vmatmul.mubr.f32.gmra.mxu0 %v716
    %v861 = vpop.f32.mrf.mxu0
    %v862 = vadd.f32 0.0, %v861
    %v863 = vpop.f32.mrf.mxu0
    %v864 = vadd.f32 0.0, %v863
    %865 = vmatprep.mubr.f32.mxu0 0.0
    %866 = vmatmul.mubr.f32.gmra.mxu0 %v717
    %v867 = vpop.f32.mrf.mxu0
    %v868 = vadd.f32 0.0, %v867
    %v869 = vpop.f32.mrf.mxu0
    %v870 = vadd.f32 0.0, %v869
    %871 = vdwg.mxu0
    %872 = vmatprep.subr.mxu0 0.0
    %873 = vmatpush1.msra.mxu0 %v782
    %874 = vmatprep.subr.mxu0 0.0
    %875 = vmatpush1.msra.mxu0 %v779
    %876 = vmatprep.subr.mxu0 0.0
    %877 = vmatpush1.msra.mxu0 %v776
    %878 = vmatprep.subr.mxu0 0.0
    %879 = vmatpush1.msra.mxu0 %v773
    %880 = vmatprep.subr.mxu0 0.0
    %881 = vmatpush1.msra.mxu0 %v770
    %882 = vmatprep.subr.mxu0 0.0
    %883 = vmatpush1.msra.mxu0 %v767
    %884 = vmatprep.subr.mxu0 0.0
    %885 = vmatpush1.msra.mxu0 %v764
    %886 = vmatprep.subr.mxu0 0.0
    %887 = vmatpush1.msra.mxu0 %v761
    %888 = vmatprep.subr.mxu0 0.0
    %889 = vmatpush1.msra.mxu0 %v758
    %890 = vmatprep.subr.mxu0 0.0
    %891 = vmatpush1.msra.mxu0 %v755
    %892 = vmatprep.subr.mxu0 0.0
    %893 = vmatpush1.msra.mxu0 %v752
    %894 = vmatprep.subr.mxu0 0.0
    %895 = vmatpush1.msra.mxu0 %v749
    %896 = vmatprep.subr.mxu0 0.0
    %897 = vmatpush1.msra.mxu0 %v746
    %898 = vmatprep.subr.mxu0 0.0
    %899 = vmatpush1.msra.mxu0 %v743
    %900 = vmatprep.subr.mxu0 0.0
    %901 = vmatpush1.msra.mxu0 %v740
    %902 = vmatprep.subr.mxu0 0.0
    %903 = vmatpush1.msra.mxu0 %v737
    %904 = vmatprep.subr.mxu0 0.0
    %905 = vmatpush2.msra.mxu0 0.0
    %906 = vmatprep.subr.mxu0 0.0
    %907 = vmatpush2.msra.mxu0 0.0
    %908 = vmatprep.subr.mxu0 0.0
    %909 = vmatpush2.msra.mxu0 0.0
    %910 = vmatprep.subr.mxu0 0.0
    %911 = vmatpush2.msra.mxu0 0.0
    %912 = vmatprep.subr.mxu0 0.0
    %913 = vmatpush2.msra.mxu0 0.0
    %914 = vmatprep.subr.mxu0 0.0
    %915 = vmatpush2.msra.mxu0 0.0
    %916 = vmatprep.subr.mxu0 0.0
    %917 = vmatpush2.msra.mxu0 0.0
    %918 = vmatprep.subr.mxu0 0.0
    %919 = vmatpush2.msra.mxu0 0.0
    %920 = vmatprep.subr.mxu0 0.0
    %921 = vmatpush2.msra.mxu0 0.0
    %922 = vmatprep.subr.mxu0 0.0
    %923 = vmatpush2.msra.mxu0 0.0
    %924 = vmatprep.subr.mxu0 0.0
    %925 = vmatpush2.msra.mxu0 0.0
    %926 = vmatprep.subr.mxu0 0.0
    %927 = vmatpush2.msra.mxu0 0.0
    %928 = vmatprep.subr.mxu0 0.0
    %929 = vmatpush2.msra.mxu0 0.0
    %930 = vmatprep.subr.mxu0 0.0
    %931 = vmatpush2.msra.mxu0 0.0
    %932 = vmatprep.subr.mxu0 0.0
    %933 = vmatpush2.msra.mxu0 0.0
    %934 = vmatprep.subr.mxu0 0.0
    %935 = vmatpush2.msra.mxu0 0.0
    %936 = vmatprep.mubr.f32.mxu0 0.0
    %937 = vmatmul.mubr.f32.gmra.mxu0 %v714
    %v938 = vpop.f32.mrf.mxu0
    %v939 = vadd.f32 0.0, %v938
    %v940 = vpop.f32.mrf.mxu0
    %941 = vmatprep.mubr.f32.mxu0 0.0
    %942 = vmatmul.mubr.f32.gmra.mxu0 %v715
    %v943 = vpop.f32.mrf.mxu0
    %v944 = vadd.f32 0.0, %v943
    %v945 = vpop.f32.mrf.mxu0
    %946 = vmatprep.mubr.f32.mxu0 0.0
    %947 = vmatmul.mubr.f32.gmra.mxu0 %v716
    %v948 = vpop.f32.mrf.mxu0
    %v949 = vadd.f32 0.0, %v948
    %v950 = vpop.f32.mrf.mxu0
    %951 = vmatprep.mubr.f32.mxu0 0.0
    %952 = vmatmul.mubr.f32.gmra.mxu0 %v717
    %v953 = vpop.f32.mrf.mxu0
    %v954 = vadd.f32 0.0, %v953
    %v955 = vpop.f32.mrf.mxu0
    %956 = vdwg.mxu0
    %v957 = vadd.f32 %v723, %v850
    %v958 = vadd.f32 %v726, %v856
    %v959 = vadd.f32 %v729, %v862
    %v960 = vadd.f32 %v732, %v868
    %v961 = vxor.u32 %v957, 2147483648
    %v962 = vxor.u32 %v958, 2147483648
    %v963 = vxor.u32 %v959, 2147483648
    %v964 = vxor.u32 %v960, 2147483648
    %v965 = vmul.f32 %v961, 1.442695
    %v966 = vpow.pop %v965
    %v967 = vmul.f32 %v962, 1.442695
    %v968 = vpow.pop %v967
    %v969 = vmul.f32 %v963, 1.442695
    %v970 = vpow.pop %v969
    %v971 = vmul.f32 %v964, 1.442695
    %v972 = vpow.pop %v971
    %v973 = vadd.f32 %v966, 1.0
    %v974 = vadd.f32 %v968, 1.0
    %v975 = vadd.f32 %v970, 1.0
    %v976 = vadd.f32 %v972, 1.0
    %v977 = vrcp.pop %v973
    %v978 = vmul.f32 1.0, %v977
    %v979 = vrcp.pop %v974
    %v980 = vmul.f32 1.0, %v979
    %v981 = vrcp.pop %v975
    %v982 = vmul.f32 1.0, %v981
    %v983 = vrcp.pop %v976
    %v984 = vmul.f32 1.0, %v983
    %v985 = vadd.f32 %v724, %v852
    %v986 = vadd.f32 %v727, %v858
    %v987 = vadd.f32 %v730, %v864
    %v988 = vadd.f32 %v733, %v870
    %v989 = vxor.u32 %v985, 2147483648
    %v990 = vxor.u32 %v986, 2147483648
    %v991 = vxor.u32 %v987, 2147483648
    %v992 = vxor.u32 %v988, 2147483648
    %v993 = vmul.f32 %v989, 1.442695
    %v994 = vpow.pop %v993
    %v995 = vmul.f32 %v990, 1.442695
    %v996 = vpow.pop %v995
    %v997 = vmul.f32 %v991, 1.442695
    %v998 = vpow.pop %v997
    %v999 = vmul.f32 %v992, 1.442695
    %v1000 = vpow.pop %v999
    %v1001 = vadd.f32 %v994, 1.0
    %v1002 = vadd.f32 %v996, 1.0
    %v1003 = vadd.f32 %v998, 1.0
    %v1004 = vadd.f32 %v1000, 1.0
    %v1005 = vrcp.pop %v1001
    %v1006 = vmul.f32 1.0, %v1005
    %v1007 = vrcp.pop %v1002
    %v1008 = vmul.f32 1.0, %v1007
    %v1009 = vrcp.pop %v1003
    %v1010 = vmul.f32 1.0, %v1009
    %v1011 = vrcp.pop %v1004
    %v1012 = vmul.f32 1.0, %v1011
    %v1013 = vadd.f32 %v939, %v67
    %v1014 = vadd.f32 %v944, %v67
    %v1015 = vadd.f32 %v949, %v67
    %v1016 = vadd.f32 %v954, %v67
    %v1017 = vmul.f32 %v978, %v1013
    %v1018 = vmul.f32 %v980, %v1014
    %v1019 = vmul.f32 %v982, %v1015
    %v1020 = vmul.f32 %v984, %v1016
    %v1021 = vadd.f32 %v725, %v1017
    %v1022 = vadd.f32 %v728, %v1018
    %v1023 = vadd.f32 %v731, %v1019
    %v1024 = vadd.f32 %v734, %v1020
    %v1025 = vtanh.pop %v1021
    %v1026 = vtanh.pop %v1022
    %v1027 = vtanh.pop %v1023
    %v1028 = vtanh.pop %v1024
    %v1029 = vsub.f32 1.0, %v1006
    %v1030 = vsub.f32 1.0, %v1008
    %v1031 = vsub.f32 1.0, %v1010
    %v1032 = vsub.f32 1.0, %v1012
    %v1033 = vmul.f32 %v1029, %v1025
    %v1034 = vmul.f32 %v1030, %v1026
    %v1035 = vmul.f32 %v1031, %v1027
    %v1036 = vmul.f32 %v1032, %v1028
    %v1037 = vmul.f32 %v1006, %v714
    %v1038 = vmul.f32 %v1008, %v715
    %v1039 = vmul.f32 %v1010, %v716
    %v1040 = vmul.f32 %v1012, %v717
    %v1041 = vadd.f32 %v1033, %v1037
    %v1042 = vadd.f32 %v1034, %v1038
    %v1043 = vadd.f32 %v1035, %v1039
    %v1044 = vadd.f32 %v1036, %v1040
    %1045 = vst [vmem:[#allocation2 + $0x10] sm:$0xff] %v1041
    %1046 = vst [vmem:[#allocation2 + $0x70] sm:$0xff] %v1042
    %1047 = vst [vmem:[#allocation2 + $0xd0] sm:$0xff] %v1043
    %1048 = vst [vmem:[#allocation2 + $0x130] sm:$0xff] %v1044
    %s1049 = scalar_lea.vmem [#allocation3], 288
    %v1050 = vld [vmem:[%s1049] sm:$0xff]
    %v1051 = vld [vmem:[%s1049 + $0x8] sm:$0xff]
    %v1052 = vld [vmem:[%s1049 + $0x10] sm:$0xff]
    %v1053 = vld [vmem:[%s1049 + $0x18] sm:$0xff]
    %v1054 = vld [vmem:[%s1049 + $0x20] sm:$0xff]
    %v1055 = vld [vmem:[%s1049 + $0x28] sm:$0xff]
    %v1056 = vld [vmem:[%s1049 + $0x30] sm:$0xff]
    %v1057 = vld [vmem:[%s1049 + $0x38] sm:$0xff]
    %v1058 = vld [vmem:[%s1049 + $0x40] sm:$0xff]
    %v1059 = vld [vmem:[%s1049 + $0x48] sm:$0xff]
    %v1060 = vld [vmem:[%s1049 + $0x50] sm:$0xff]
    %v1061 = vld [vmem:[%s1049 + $0x58] sm:$0xff]
    %v1062 = vld [vmem:[#allocation6] sm:$0xff]
    %v1063 = vld [vmem:[#allocation6 + $0x8] sm:$0xff]
    %v1064 = vld [vmem:[#allocation6 + $0x10] sm:$0xff]
    %v1065 = vld [vmem:[#allocation6 + $0x18] sm:$0xff]
    %v1066 = vld [vmem:[#allocation6 + $0x20] sm:$0xff]
    %v1067 = vld [vmem:[#allocation6 + $0x28] sm:$0xff]
    %v1068 = vld [vmem:[#allocation6 + $0x30] sm:$0xff]
    %v1069 = vld [vmem:[#allocation6 + $0x38] sm:$0xff]
    %v1070 = vld [vmem:[#allocation6 + $0x40] sm:$0xff]
    %v1071 = vld [vmem:[#allocation6 + $0x48] sm:$0xff]
    %v1072 = vld [vmem:[#allocation6 + $0x50] sm:$0xff]
    %v1073 = vld [vmem:[#allocation6 + $0x58] sm:$0xff]
    %v1074 = vld [vmem:[#allocation6 + $0x60] sm:$0xff]
    %v1075 = vld [vmem:[#allocation6 + $0x68] sm:$0xff]
    %v1076 = vld [vmem:[#allocation6 + $0x70] sm:$0xff]
    %v1077 = vld [vmem:[#allocation6 + $0x78] sm:$0xff]
    %v1078 = vld [vmem:[#allocation6 + $0x80] sm:$0xff]
    %v1079 = vld [vmem:[#allocation6 + $0x88] sm:$0xff]
    %v1080 = vld [vmem:[#allocation6 + $0x90] sm:$0xff]
    %v1081 = vld [vmem:[#allocation6 + $0x98] sm:$0xff]
    %v1082 = vld [vmem:[#allocation6 + $0xa0] sm:$0xff]
    %v1083 = vld [vmem:[#allocation6 + $0xa8] sm:$0xff]
    %v1084 = vld [vmem:[#allocation6 + $0xb0] sm:$0xff]
    %v1085 = vld [vmem:[#allocation6 + $0xb8] sm:$0xff]
    %v1086 = vld [vmem:[#allocation6 + $0xc0] sm:$0xff]
    %v1087 = vld [vmem:[#allocation6 + $0xc8] sm:$0xff]
    %v1088 = vld [vmem:[#allocation6 + $0xd0] sm:$0xff]
    %v1089 = vld [vmem:[#allocation6 + $0xd8] sm:$0xff]
    %v1090 = vld [vmem:[#allocation6 + $0xe0] sm:$0xff]
    %v1091 = vld [vmem:[#allocation6 + $0xe8] sm:$0xff]
    %v1092 = vld [vmem:[#allocation6 + $0xf0] sm:$0xff]
    %v1093 = vld [vmem:[#allocation6 + $0xf8] sm:$0xff]
    %v1094 = vld [vmem:[#allocation6 + $0x100] sm:$0xff]
    %v1095 = vld [vmem:[#allocation6 + $0x108] sm:$0xff]
    %v1096 = vld [vmem:[#allocation6 + $0x110] sm:$0xff]
    %v1097 = vld [vmem:[#allocation6 + $0x118] sm:$0xff]
    %v1098 = vld [vmem:[#allocation6 + $0x120] sm:$0xff]
    %v1099 = vld [vmem:[#allocation6 + $0x128] sm:$0xff]
    %v1100 = vld [vmem:[#allocation6 + $0x130] sm:$0xff]
    %v1101 = vld [vmem:[#allocation6 + $0x138] sm:$0xff]
    %v1102 = vld [vmem:[#allocation6 + $0x140] sm:$0xff]
    %v1103 = vld [vmem:[#allocation6 + $0x148] sm:$0xff]
    %v1104 = vld [vmem:[#allocation6 + $0x150] sm:$0xff]
    %v1105 = vld [vmem:[#allocation6 + $0x158] sm:$0xff]
    %v1106 = vld [vmem:[#allocation6 + $0x160] sm:$0xff]
    %v1107 = vld [vmem:[#allocation6 + $0x168] sm:$0xff]
    %v1108 = vld [vmem:[#allocation6 + $0x170] sm:$0xff]
    %v1109 = vld [vmem:[#allocation6 + $0x178] sm:$0xff]
    %1110 = vmatprep.subr.mxu0 %v1108
    %1111 = vmatpush1.msra.mxu0 %v1107
    %1112 = vmatprep.subr.mxu0 %v1105
    %1113 = vmatpush1.msra.mxu0 %v1104
    %1114 = vmatprep.subr.mxu0 %v1102
    %1115 = vmatpush1.msra.mxu0 %v1101
    %1116 = vmatprep.subr.mxu0 %v1099
    %1117 = vmatpush1.msra.mxu0 %v1098
    %1118 = vmatprep.subr.mxu0 %v1096
    %1119 = vmatpush1.msra.mxu0 %v1095
    %1120 = vmatprep.subr.mxu0 %v1093
    %1121 = vmatpush1.msra.mxu0 %v1092
    %1122 = vmatprep.subr.mxu0 %v1090
    %1123 = vmatpush1.msra.mxu0 %v1089
    %1124 = vmatprep.subr.mxu0 %v1087
    %1125 = vmatpush1.msra.mxu0 %v1086
    %1126 = vmatprep.subr.mxu0 %v1084
    %1127 = vmatpush1.msra.mxu0 %v1083
    %1128 = vmatprep.subr.mxu0 %v1081
    %1129 = vmatpush1.msra.mxu0 %v1080
    %1130 = vmatprep.subr.mxu0 %v1078
    %1131 = vmatpush1.msra.mxu0 %v1077
    %1132 = vmatprep.subr.mxu0 %v1075
    %1133 = vmatpush1.msra.mxu0 %v1074
    %1134 = vmatprep.subr.mxu0 %v1072
    %1135 = vmatpush1.msra.mxu0 %v1071
    %1136 = vmatprep.subr.mxu0 %v1069
    %1137 = vmatpush1.msra.mxu0 %v1068
    %1138 = vmatprep.subr.mxu0 %v1066
    %1139 = vmatpush1.msra.mxu0 %v1065
    %1140 = vmatprep.subr.mxu0 %v1063
    %1141 = vmatpush1.msra.mxu0 %v1062
    %1142 = vmatprep.subr.mxu0 0.0
    %1143 = vmatpush2.msra.mxu0 0.0
    %1144 = vmatprep.subr.mxu0 0.0
    %1145 = vmatpush2.msra.mxu0 0.0
    %1146 = vmatprep.subr.mxu0 0.0
    %1147 = vmatpush2.msra.mxu0 0.0
    %1148 = vmatprep.subr.mxu0 0.0
    %1149 = vmatpush2.msra.mxu0 0.0
    %1150 = vmatprep.subr.mxu0 0.0
    %1151 = vmatpush2.msra.mxu0 0.0
    %1152 = vmatprep.subr.mxu0 0.0
    %1153 = vmatpush2.msra.mxu0 0.0
    %1154 = vmatprep.subr.mxu0 0.0
    %1155 = vmatpush2.msra.mxu0 0.0
    %1156 = vmatprep.subr.mxu0 0.0
    %1157 = vmatpush2.msra.mxu0 0.0
    %1158 = vmatprep.subr.mxu0 0.0
    %1159 = vmatpush2.msra.mxu0 0.0
    %1160 = vmatprep.subr.mxu0 0.0
    %1161 = vmatpush2.msra.mxu0 0.0
    %1162 = vmatprep.subr.mxu0 0.0
    %1163 = vmatpush2.msra.mxu0 0.0
    %1164 = vmatprep.subr.mxu0 0.0
    %1165 = vmatpush2.msra.mxu0 0.0
    %1166 = vmatprep.subr.mxu0 0.0
    %1167 = vmatpush2.msra.mxu0 0.0
    %1168 = vmatprep.subr.mxu0 0.0
    %1169 = vmatpush2.msra.mxu0 0.0
    %1170 = vmatprep.subr.mxu0 0.0
    %1171 = vmatpush2.msra.mxu0 0.0
    %1172 = vmatprep.subr.mxu0 0.0
    %1173 = vmatpush2.msra.mxu0 0.0
    %1174 = vmatprep.mubr.f32.mxu0 0.0
    %1175 = vmatmul.mubr.f32.gmra.mxu0 %v1041
    %v1176 = vpop.f32.mrf.mxu0
    %v1177 = vadd.f32 0.0, %v1176
    %v1178 = vpop.f32.mrf.mxu0
    %v1179 = vadd.f32 0.0, %v1178
    %1180 = vmatprep.mubr.f32.mxu0 0.0
    %1181 = vmatmul.mubr.f32.gmra.mxu0 %v1042
    %v1182 = vpop.f32.mrf.mxu0
    %v1183 = vadd.f32 0.0, %v1182
    %v1184 = vpop.f32.mrf.mxu0
    %v1185 = vadd.f32 0.0, %v1184
    %1186 = vmatprep.mubr.f32.mxu0 0.0
    %1187 = vmatmul.mubr.f32.gmra.mxu0 %v1043
    %v1188 = vpop.f32.mrf.mxu0
    %v1189 = vadd.f32 0.0, %v1188
    %v1190 = vpop.f32.mrf.mxu0
    %v1191 = vadd.f32 0.0, %v1190
    %1192 = vmatprep.mubr.f32.mxu0 0.0
    %1193 = vmatmul.mubr.f32.gmra.mxu0 %v1044
    %v1194 = vpop.f32.mrf.mxu0
    %v1195 = vadd.f32 0.0, %v1194
    %v1196 = vpop.f32.mrf.mxu0
    %v1197 = vadd.f32 0.0, %v1196
    %1198 = vdwg.mxu0
    %1199 = vmatprep.subr.mxu0 0.0
    %1200 = vmatpush1.msra.mxu0 %v1109
    %1201 = vmatprep.subr.mxu0 0.0
    %1202 = vmatpush1.msra.mxu0 %v1106
    %1203 = vmatprep.subr.mxu0 0.0
    %1204 = vmatpush1.msra.mxu0 %v1103
    %1205 = vmatprep.subr.mxu0 0.0
    %1206 = vmatpush1.msra.mxu0 %v1100
    %1207 = vmatprep.subr.mxu0 0.0
    %1208 = vmatpush1.msra.mxu0 %v1097
    %1209 = vmatprep.subr.mxu0 0.0
    %1210 = vmatpush1.msra.mxu0 %v1094
    %1211 = vmatprep.subr.mxu0 0.0
    %1212 = vmatpush1.msra.mxu0 %v1091
    %1213 = vmatprep.subr.mxu0 0.0
    %1214 = vmatpush1.msra.mxu0 %v1088
    %1215 = vmatprep.subr.mxu0 0.0
    %1216 = vmatpush1.msra.mxu0 %v1085
    %1217 = vmatprep.subr.mxu0 0.0
    %1218 = vmatpush1.msra.mxu0 %v1082
    %1219 = vmatprep.subr.mxu0 0.0
    %1220 = vmatpush1.msra.mxu0 %v1079
    %1221 = vmatprep.subr.mxu0 0.0
    %1222 = vmatpush1.msra.mxu0 %v1076
    %1223 = vmatprep.subr.mxu0 0.0
    %1224 = vmatpush1.msra.mxu0 %v1073
    %1225 = vmatprep.subr.mxu0 0.0
    %1226 = vmatpush1.msra.mxu0 %v1070
    %1227 = vmatprep.subr.mxu0 0.0
    %1228 = vmatpush1.msra.mxu0 %v1067
    %1229 = vmatprep.subr.mxu0 0.0
    %1230 = vmatpush1.msra.mxu0 %v1064
    %1231 = vmatprep.subr.mxu0 0.0
    %1232 = vmatpush2.msra.mxu0 0.0
    %1233 = vmatprep.subr.mxu0 0.0
    %1234 = vmatpush2.msra.mxu0 0.0
    %1235 = vmatprep.subr.mxu0 0.0
    %1236 = vmatpush2.msra.mxu0 0.0
    %1237 = vmatprep.subr.mxu0 0.0
    %1238 = vmatpush2.msra.mxu0 0.0
    %1239 = vmatprep.subr.mxu0 0.0
    %1240 = vmatpush2.msra.mxu0 0.0
    %1241 = vmatprep.subr.mxu0 0.0
    %1242 = vmatpush2.msra.mxu0 0.0
    %1243 = vmatprep.subr.mxu0 0.0
    %1244 = vmatpush2.msra.mxu0 0.0
    %1245 = vmatprep.subr.mxu0 0.0
    %1246 = vmatpush2.msra.mxu0 0.0
    %1247 = vmatprep.subr.mxu0 0.0
    %1248 = vmatpush2.msra.mxu0 0.0
    %1249 = vmatprep.subr.mxu0 0.0
    %1250 = vmatpush2.msra.mxu0 0.0
    %1251 = vmatprep.subr.mxu0 0.0
    %1252 = vmatpush2.msra.mxu0 0.0
    %1253 = vmatprep.subr.mxu0 0.0
    %1254 = vmatpush2.msra.mxu0 0.0
    %1255 = vmatprep.subr.mxu0 0.0
    %1256 = vmatpush2.msra.mxu0 0.0
    %1257 = vmatprep.subr.mxu0 0.0
    %1258 = vmatpush2.msra.mxu0 0.0
    %1259 = vmatprep.subr.mxu0 0.0
    %1260 = vmatpush2.msra.mxu0 0.0
    %1261 = vmatprep.subr.mxu0 0.0
    %1262 = vmatpush2.msra.mxu0 0.0
    %1263 = vmatprep.mubr.f32.mxu0 0.0
    %1264 = vmatmul.mubr.f32.gmra.mxu0 %v1041
    %v1265 = vpop.f32.mrf.mxu0
    %v1266 = vadd.f32 0.0, %v1265
    %v1267 = vpop.f32.mrf.mxu0
    %1268 = vmatprep.mubr.f32.mxu0 0.0
    %1269 = vmatmul.mubr.f32.gmra.mxu0 %v1042
    %v1270 = vpop.f32.mrf.mxu0
    %v1271 = vadd.f32 0.0, %v1270
    %v1272 = vpop.f32.mrf.mxu0
    %1273 = vmatprep.mubr.f32.mxu0 0.0
    %1274 = vmatmul.mubr.f32.gmra.mxu0 %v1043
    %v1275 = vpop.f32.mrf.mxu0
    %v1276 = vadd.f32 0.0, %v1275
    %v1277 = vpop.f32.mrf.mxu0
    %1278 = vmatprep.mubr.f32.mxu0 0.0
    %1279 = vmatmul.mubr.f32.gmra.mxu0 %v1044
    %v1280 = vpop.f32.mrf.mxu0
    %v1281 = vadd.f32 0.0, %v1280
    %v1282 = vpop.f32.mrf.mxu0
    %1283 = vdwg.mxu0
    %v1284 = vadd.f32 %v1050, %v1177
    %v1285 = vadd.f32 %v1053, %v1183
    %v1286 = vadd.f32 %v1056, %v1189
    %v1287 = vadd.f32 %v1059, %v1195
    %v1288 = vxor.u32 %v1284, 2147483648
    %v1289 = vxor.u32 %v1285, 2147483648
    %v1290 = vxor.u32 %v1286, 2147483648
    %v1291 = vxor.u32 %v1287, 2147483648
    %v1292 = vmul.f32 %v1288, 1.442695
    %v1293 = vpow.pop %v1292
    %v1294 = vmul.f32 %v1289, 1.442695
    %v1295 = vpow.pop %v1294
    %v1296 = vmul.f32 %v1290, 1.442695
    %v1297 = vpow.pop %v1296
    %v1298 = vmul.f32 %v1291, 1.442695
    %v1299 = vpow.pop %v1298
    %v1300 = vadd.f32 %v1293, 1.0
    %v1301 = vadd.f32 %v1295, 1.0
    %v1302 = vadd.f32 %v1297, 1.0
    %v1303 = vadd.f32 %v1299, 1.0
    %v1304 = vrcp.pop %v1300
    %v1305 = vmul.f32 1.0, %v1304
    %v1306 = vrcp.pop %v1301
    %v1307 = vmul.f32 1.0, %v1306
    %v1308 = vrcp.pop %v1302
    %v1309 = vmul.f32 1.0, %v1308
    %v1310 = vrcp.pop %v1303
    %v1311 = vmul.f32 1.0, %v1310
    %v1312 = vadd.f32 %v1051, %v1179
    %v1313 = vadd.f32 %v1054, %v1185
    %v1314 = vadd.f32 %v1057, %v1191
    %v1315 = vadd.f32 %v1060, %v1197
    %v1316 = vxor.u32 %v1312, 2147483648
    %v1317 = vxor.u32 %v1313, 2147483648
    %v1318 = vxor.u32 %v1314, 2147483648
    %v1319 = vxor.u32 %v1315, 2147483648
    %v1320 = vmul.f32 %v1316, 1.442695
    %v1321 = vpow.pop %v1320
    %v1322 = vmul.f32 %v1317, 1.442695
    %v1323 = vpow.pop %v1322
    %v1324 = vmul.f32 %v1318, 1.442695
    %v1325 = vpow.pop %v1324
    %v1326 = vmul.f32 %v1319, 1.442695
    %v1327 = vpow.pop %v1326
    %v1328 = vadd.f32 %v1321, 1.0
    %v1329 = vadd.f32 %v1323, 1.0
    %v1330 = vadd.f32 %v1325, 1.0
    %v1331 = vadd.f32 %v1327, 1.0
    %v1332 = vrcp.pop %v1328
    %v1333 = vmul.f32 1.0, %v1332
    %v1334 = vrcp.pop %v1329
    %v1335 = vmul.f32 1.0, %v1334
    %v1336 = vrcp.pop %v1330
    %v1337 = vmul.f32 1.0, %v1336
    %v1338 = vrcp.pop %v1331
    %v1339 = vmul.f32 1.0, %v1338
    %v1340 = vadd.f32 %v1266, %v67
    %v1341 = vadd.f32 %v1271, %v67
    %v1342 = vadd.f32 %v1276, %v67
    %v1343 = vadd.f32 %v1281, %v67
    %v1344 = vmul.f32 %v1305, %v1340
    %v1345 = vmul.f32 %v1307, %v1341
    %v1346 = vmul.f32 %v1309, %v1342
    %v1347 = vmul.f32 %v1311, %v1343
    %v1348 = vadd.f32 %v1052, %v1344
    %v1349 = vadd.f32 %v1055, %v1345
    %v1350 = vadd.f32 %v1058, %v1346
    %v1351 = vadd.f32 %v1061, %v1347
    %v1352 = vtanh.pop %v1348
    %v1353 = vtanh.pop %v1349
    %v1354 = vtanh.pop %v1350
    %v1355 = vtanh.pop %v1351
    %v1356 = vsub.f32 1.0, %v1333
    %v1357 = vsub.f32 1.0, %v1335
    %v1358 = vsub.f32 1.0, %v1337
    %v1359 = vsub.f32 1.0, %v1339
    %v1360 = vmul.f32 %v1356, %v1352
    %v1361 = vmul.f32 %v1357, %v1353
    %v1362 = vmul.f32 %v1358, %v1354
    %v1363 = vmul.f32 %v1359, %v1355
    %v1364 = vmul.f32 %v1333, %v1041
    %v1365 = vmul.f32 %v1335, %v1042
    %v1366 = vmul.f32 %v1337, %v1043
    %v1367 = vmul.f32 %v1339, %v1044
    %v1368 = vadd.f32 %v1360, %v1364
    %v1369 = vadd.f32 %v1361, %v1365
    %v1370 = vadd.f32 %v1362, %v1366
    %v1371 = vadd.f32 %v1363, %v1367
    %1372 = vst [vmem:[#allocation2 + $0x18] sm:$0xff] %v1368
    %1373 = vst [vmem:[#allocation2 + $0x78] sm:$0xff] %v1369
    %1374 = vst [vmem:[#allocation2 + $0xd8] sm:$0xff] %v1370
    %1375 = vst [vmem:[#allocation2 + $0x138] sm:$0xff] %v1371
    %s1376 = scalar_lea.vmem [#allocation3], 384
    %v1377 = vld [vmem:[%s1376] sm:$0xff]
    %v1378 = vld [vmem:[%s1376 + $0x8] sm:$0xff]
    %v1379 = vld [vmem:[%s1376 + $0x10] sm:$0xff]
    %v1380 = vld [vmem:[%s1376 + $0x18] sm:$0xff]
    %v1381 = vld [vmem:[%s1376 + $0x20] sm:$0xff]
    %v1382 = vld [vmem:[%s1376 + $0x28] sm:$0xff]
    %v1383 = vld [vmem:[%s1376 + $0x30] sm:$0xff]
    %v1384 = vld [vmem:[%s1376 + $0x38] sm:$0xff]
    %v1385 = vld [vmem:[%s1376 + $0x40] sm:$0xff]
    %v1386 = vld [vmem:[%s1376 + $0x48] sm:$0xff]
    %v1387 = vld [vmem:[%s1376 + $0x50] sm:$0xff]
    %v1388 = vld [vmem:[%s1376 + $0x58] sm:$0xff]
    %v1389 = vld [vmem:[#allocation6] sm:$0xff]
    %v1390 = vld [vmem:[#allocation6 + $0x8] sm:$0xff]
    %v1391 = vld [vmem:[#allocation6 + $0x10] sm:$0xff]
    %v1392 = vld [vmem:[#allocation6 + $0x18] sm:$0xff]
    %v1393 = vld [vmem:[#allocation6 + $0x20] sm:$0xff]
    %v1394 = vld [vmem:[#allocation6 + $0x28] sm:$0xff]
    %v1395 = vld [vmem:[#allocation6 + $0x30] sm:$0xff]
    %v1396 = vld [vmem:[#allocation6 + $0x38] sm:$0xff]
    %v1397 = vld [vmem:[#allocation6 + $0x40] sm:$0xff]
    %v1398 = vld [vmem:[#allocation6 + $0x48] sm:$0xff]
    %v1399 = vld [vmem:[#allocation6 + $0x50] sm:$0xff]
    %v1400 = vld [vmem:[#allocation6 + $0x58] sm:$0xff]
    %v1401 = vld [vmem:[#allocation6 + $0x60] sm:$0xff]
    %v1402 = vld [vmem:[#allocation6 + $0x68] sm:$0xff]
    %v1403 = vld [vmem:[#allocation6 + $0x70] sm:$0xff]
    %v1404 = vld [vmem:[#allocation6 + $0x78] sm:$0xff]
    %v1405 = vld [vmem:[#allocation6 + $0x80] sm:$0xff]
    %v1406 = vld [vmem:[#allocation6 + $0x88] sm:$0xff]
    %v1407 = vld [vmem:[#allocation6 + $0x90] sm:$0xff]
    %v1408 = vld [vmem:[#allocation6 + $0x98] sm:$0xff]
    %v1409 = vld [vmem:[#allocation6 + $0xa0] sm:$0xff]
    %v1410 = vld [vmem:[#allocation6 + $0xa8] sm:$0xff]
    %v1411 = vld [vmem:[#allocation6 + $0xb0] sm:$0xff]
    %v1412 = vld [vmem:[#allocation6 + $0xb8] sm:$0xff]
    %v1413 = vld [vmem:[#allocation6 + $0xc0] sm:$0xff]
    %v1414 = vld [vmem:[#allocation6 + $0xc8] sm:$0xff]
    %v1415 = vld [vmem:[#allocation6 + $0xd0] sm:$0xff]
    %v1416 = vld [vmem:[#allocation6 + $0xd8] sm:$0xff]
    %v1417 = vld [vmem:[#allocation6 + $0xe0] sm:$0xff]
    %v1418 = vld [vmem:[#allocation6 + $0xe8] sm:$0xff]
    %v1419 = vld [vmem:[#allocation6 + $0xf0] sm:$0xff]
    %v1420 = vld [vmem:[#allocation6 + $0xf8] sm:$0xff]
    %v1421 = vld [vmem:[#allocation6 + $0x100] sm:$0xff]
    %v1422 = vld [vmem:[#allocation6 + $0x108] sm:$0xff]
    %v1423 = vld [vmem:[#allocation6 + $0x110] sm:$0xff]
    %v1424 = vld [vmem:[#allocation6 + $0x118] sm:$0xff]
    %v1425 = vld [vmem:[#allocation6 + $0x120] sm:$0xff]
    %v1426 = vld [vmem:[#allocation6 + $0x128] sm:$0xff]
    %v1427 = vld [vmem:[#allocation6 + $0x130] sm:$0xff]
    %v1428 = vld [vmem:[#allocation6 + $0x138] sm:$0xff]
    %v1429 = vld [vmem:[#allocation6 + $0x140] sm:$0xff]
    %v1430 = vld [vmem:[#allocation6 + $0x148] sm:$0xff]
    %v1431 = vld [vmem:[#allocation6 + $0x150] sm:$0xff]
    %v1432 = vld [vmem:[#allocation6 + $0x158] sm:$0xff]
    %v1433 = vld [vmem:[#allocation6 + $0x160] sm:$0xff]
    %v1434 = vld [vmem:[#allocation6 + $0x168] sm:$0xff]
    %v1435 = vld [vmem:[#allocation6 + $0x170] sm:$0xff]
    %v1436 = vld [vmem:[#allocation6 + $0x178] sm:$0xff]
    %1437 = vmatprep.subr.mxu0 %v1435
    %1438 = vmatpush1.msra.mxu0 %v1434
    %1439 = vmatprep.subr.mxu0 %v1432
    %1440 = vmatpush1.msra.mxu0 %v1431
    %1441 = vmatprep.subr.mxu0 %v1429
    %1442 = vmatpush1.msra.mxu0 %v1428
    %1443 = vmatprep.subr.mxu0 %v1426
    %1444 = vmatpush1.msra.mxu0 %v1425
    %1445 = vmatprep.subr.mxu0 %v1423
    %1446 = vmatpush1.msra.mxu0 %v1422
    %1447 = vmatprep.subr.mxu0 %v1420
    %1448 = vmatpush1.msra.mxu0 %v1419
    %1449 = vmatprep.subr.mxu0 %v1417
    %1450 = vmatpush1.msra.mxu0 %v1416
    %1451 = vmatprep.subr.mxu0 %v1414
    %1452 = vmatpush1.msra.mxu0 %v1413
    %1453 = vmatprep.subr.mxu0 %v1411
    %1454 = vmatpush1.msra.mxu0 %v1410
    %1455 = vmatprep.subr.mxu0 %v1408
    %1456 = vmatpush1.msra.mxu0 %v1407
    %1457 = vmatprep.subr.mxu0 %v1405
    %1458 = vmatpush1.msra.mxu0 %v1404
    %1459 = vmatprep.subr.mxu0 %v1402
    %1460 = vmatpush1.msra.mxu0 %v1401
    %1461 = vmatprep.subr.mxu0 %v1399
    %1462 = vmatpush1.msra.mxu0 %v1398
    %1463 = vmatprep.subr.mxu0 %v1396
    %1464 = vmatpush1.msra.mxu0 %v1395
    %1465 = vmatprep.subr.mxu0 %v1393
    %1466 = vmatpush1.msra.mxu0 %v1392
    %1467 = vmatprep.subr.mxu0 %v1390
    %1468 = vmatpush1.msra.mxu0 %v1389
    %1469 = vmatprep.subr.mxu0 0.0
    %1470 = vmatpush2.msra.mxu0 0.0
    %1471 = vmatprep.subr.mxu0 0.0
    %1472 = vmatpush2.msra.mxu0 0.0
    %1473 = vmatprep.subr.mxu0 0.0
    %1474 = vmatpush2.msra.mxu0 0.0
    %1475 = vmatprep.subr.mxu0 0.0
    %1476 = vmatpush2.msra.mxu0 0.0
    %1477 = vmatprep.subr.mxu0 0.0
    %1478 = vmatpush2.msra.mxu0 0.0
    %1479 = vmatprep.subr.mxu0 0.0
    %1480 = vmatpush2.msra.mxu0 0.0
    %1481 = vmatprep.subr.mxu0 0.0
    %1482 = vmatpush2.msra.mxu0 0.0
    %1483 = vmatprep.subr.mxu0 0.0
    %1484 = vmatpush2.msra.mxu0 0.0
    %1485 = vmatprep.subr.mxu0 0.0
    %1486 = vmatpush2.msra.mxu0 0.0
    %1487 = vmatprep.subr.mxu0 0.0
    %1488 = vmatpush2.msra.mxu0 0.0
    %1489 = vmatprep.subr.mxu0 0.0
    %1490 = vmatpush2.msra.mxu0 0.0
    %1491 = vmatprep.subr.mxu0 0.0
    %1492 = vmatpush2.msra.mxu0 0.0
    %1493 = vmatprep.subr.mxu0 0.0
    %1494 = vmatpush2.msra.mxu0 0.0
    %1495 = vmatprep.subr.mxu0 0.0
    %1496 = vmatpush2.msra.mxu0 0.0
    %1497 = vmatprep.subr.mxu0 0.0
    %1498 = vmatpush2.msra.mxu0 0.0
    %1499 = vmatprep.subr.mxu0 0.0
    %1500 = vmatpush2.msra.mxu0 0.0
    %1501 = vmatprep.mubr.f32.mxu0 0.0
    %1502 = vmatmul.mubr.f32.gmra.mxu0 %v1368
    %v1503 = vpop.f32.mrf.mxu0
    %v1504 = vadd.f32 0.0, %v1503
    %v1505 = vpop.f32.mrf.mxu0
    %v1506 = vadd.f32 0.0, %v1505
    %1507 = vmatprep.mubr.f32.mxu0 0.0
    %1508 = vmatmul.mubr.f32.gmra.mxu0 %v1369
    %v1509 = vpop.f32.mrf.mxu0
    %v1510 = vadd.f32 0.0, %v1509
    %v1511 = vpop.f32.mrf.mxu0
    %v1512 = vadd.f32 0.0, %v1511
    %1513 = vmatprep.mubr.f32.mxu0 0.0
    %1514 = vmatmul.mubr.f32.gmra.mxu0 %v1370
    %v1515 = vpop.f32.mrf.mxu0
    %v1516 = vadd.f32 0.0, %v1515
    %v1517 = vpop.f32.mrf.mxu0
    %v1518 = vadd.f32 0.0, %v1517
    %1519 = vmatprep.mubr.f32.mxu0 0.0
    %1520 = vmatmul.mubr.f32.gmra.mxu0 %v1371
    %v1521 = vpop.f32.mrf.mxu0
    %v1522 = vadd.f32 0.0, %v1521
    %v1523 = vpop.f32.mrf.mxu0
    %v1524 = vadd.f32 0.0, %v1523
    %1525 = vdwg.mxu0
    %1526 = vmatprep.subr.mxu0 0.0
    %1527 = vmatpush1.msra.mxu0 %v1436
    %1528 = vmatprep.subr.mxu0 0.0
    %1529 = vmatpush1.msra.mxu0 %v1433
    %1530 = vmatprep.subr.mxu0 0.0
    %1531 = vmatpush1.msra.mxu0 %v1430
    %1532 = vmatprep.subr.mxu0 0.0
    %1533 = vmatpush1.msra.mxu0 %v1427
    %1534 = vmatprep.subr.mxu0 0.0
    %1535 = vmatpush1.msra.mxu0 %v1424
    %1536 = vmatprep.subr.mxu0 0.0
    %1537 = vmatpush1.msra.mxu0 %v1421
    %1538 = vmatprep.subr.mxu0 0.0
    %1539 = vmatpush1.msra.mxu0 %v1418
    %1540 = vmatprep.subr.mxu0 0.0
    %1541 = vmatpush1.msra.mxu0 %v1415
    %1542 = vmatprep.subr.mxu0 0.0
    %1543 = vmatpush1.msra.mxu0 %v1412
    %1544 = vmatprep.subr.mxu0 0.0
    %1545 = vmatpush1.msra.mxu0 %v1409
    %1546 = vmatprep.subr.mxu0 0.0
    %1547 = vmatpush1.msra.mxu0 %v1406
    %1548 = vmatprep.subr.mxu0 0.0
    %1549 = vmatpush1.msra.mxu0 %v1403
    %1550 = vmatprep.subr.mxu0 0.0
    %1551 = vmatpush1.msra.mxu0 %v1400
    %1552 = vmatprep.subr.mxu0 0.0
    %1553 = vmatpush1.msra.mxu0 %v1397
    %1554 = vmatprep.subr.mxu0 0.0
    %1555 = vmatpush1.msra.mxu0 %v1394
    %1556 = vmatprep.subr.mxu0 0.0
    %1557 = vmatpush1.msra.mxu0 %v1391
    %1558 = vmatprep.subr.mxu0 0.0
    %1559 = vmatpush2.msra.mxu0 0.0
    %1560 = vmatprep.subr.mxu0 0.0
    %1561 = vmatpush2.msra.mxu0 0.0
    %1562 = vmatprep.subr.mxu0 0.0
    %1563 = vmatpush2.msra.mxu0 0.0
    %1564 = vmatprep.subr.mxu0 0.0
    %1565 = vmatpush2.msra.mxu0 0.0
    %1566 = vmatprep.subr.mxu0 0.0
    %1567 = vmatpush2.msra.mxu0 0.0
    %1568 = vmatprep.subr.mxu0 0.0
    %1569 = vmatpush2.msra.mxu0 0.0
    %1570 = vmatprep.subr.mxu0 0.0
    %1571 = vmatpush2.msra.mxu0 0.0
    %1572 = vmatprep.subr.mxu0 0.0
    %1573 = vmatpush2.msra.mxu0 0.0
    %1574 = vmatprep.subr.mxu0 0.0
    %1575 = vmatpush2.msra.mxu0 0.0
    %1576 = vmatprep.subr.mxu0 0.0
    %1577 = vmatpush2.msra.mxu0 0.0
    %1578 = vmatprep.subr.mxu0 0.0
    %1579 = vmatpush2.msra.mxu0 0.0
    %1580 = vmatprep.subr.mxu0 0.0
    %1581 = vmatpush2.msra.mxu0 0.0
    %1582 = vmatprep.subr.mxu0 0.0
    %1583 = vmatpush2.msra.mxu0 0.0
    %1584 = vmatprep.subr.mxu0 0.0
    %1585 = vmatpush2.msra.mxu0 0.0
    %1586 = vmatprep.subr.mxu0 0.0
    %1587 = vmatpush2.msra.mxu0 0.0
    %1588 = vmatprep.subr.mxu0 0.0
    %1589 = vmatpush2.msra.mxu0 0.0
    %1590 = vmatprep.mubr.f32.mxu0 0.0
    %1591 = vmatmul.mubr.f32.gmra.mxu0 %v1368
    %v1592 = vpop.f32.mrf.mxu0
    %v1593 = vadd.f32 0.0, %v1592
    %v1594 = vpop.f32.mrf.mxu0
    %1595 = vmatprep.mubr.f32.mxu0 0.0
    %1596 = vmatmul.mubr.f32.gmra.mxu0 %v1369
    %v1597 = vpop.f32.mrf.mxu0
    %v1598 = vadd.f32 0.0, %v1597
    %v1599 = vpop.f32.mrf.mxu0
    %1600 = vmatprep.mubr.f32.mxu0 0.0
    %1601 = vmatmul.mubr.f32.gmra.mxu0 %v1370
    %v1602 = vpop.f32.mrf.mxu0
    %v1603 = vadd.f32 0.0, %v1602
    %v1604 = vpop.f32.mrf.mxu0
    %1605 = vmatprep.mubr.f32.mxu0 0.0
    %1606 = vmatmul.mubr.f32.gmra.mxu0 %v1371
    %v1607 = vpop.f32.mrf.mxu0
    %v1608 = vadd.f32 0.0, %v1607
    %v1609 = vpop.f32.mrf.mxu0
    %1610 = vdwg.mxu0
    %v1611 = vadd.f32 %v1377, %v1504
    %v1612 = vadd.f32 %v1380, %v1510
    %v1613 = vadd.f32 %v1383, %v1516
    %v1614 = vadd.f32 %v1386, %v1522
    %v1615 = vxor.u32 %v1611, 2147483648
    %v1616 = vxor.u32 %v1612, 2147483648
    %v1617 = vxor.u32 %v1613, 2147483648
    %v1618 = vxor.u32 %v1614, 2147483648
    %v1619 = vmul.f32 %v1615, 1.442695
    %v1620 = vpow.pop %v1619
    %v1621 = vmul.f32 %v1616, 1.442695
    %v1622 = vpow.pop %v1621
    %v1623 = vmul.f32 %v1617, 1.442695
    %v1624 = vpow.pop %v1623
    %v1625 = vmul.f32 %v1618, 1.442695
    %v1626 = vpow.pop %v1625
    %v1627 = vadd.f32 %v1620, 1.0
    %v1628 = vadd.f32 %v1622, 1.0
    %v1629 = vadd.f32 %v1624, 1.0
    %v1630 = vadd.f32 %v1626, 1.0
    %v1631 = vrcp.pop %v1627
    %v1632 = vmul.f32 1.0, %v1631
    %v1633 = vrcp.pop %v1628
    %v1634 = vmul.f32 1.0, %v1633
    %v1635 = vrcp.pop %v1629
    %v1636 = vmul.f32 1.0, %v1635
    %v1637 = vrcp.pop %v1630
    %v1638 = vmul.f32 1.0, %v1637
    %v1639 = vadd.f32 %v1378, %v1506
    %v1640 = vadd.f32 %v1381, %v1512
    %v1641 = vadd.f32 %v1384, %v1518
    %v1642 = vadd.f32 %v1387, %v1524
    %v1643 = vxor.u32 %v1639, 2147483648
    %v1644 = vxor.u32 %v1640, 2147483648
    %v1645 = vxor.u32 %v1641, 2147483648
    %v1646 = vxor.u32 %v1642, 2147483648
    %v1647 = vmul.f32 %v1643, 1.442695
    %v1648 = vpow.pop %v1647
    %v1649 = vmul.f32 %v1644, 1.442695
    %v1650 = vpow.pop %v1649
    %v1651 = vmul.f32 %v1645, 1.442695
    %v1652 = vpow.pop %v1651
    %v1653 = vmul.f32 %v1646, 1.442695
    %v1654 = vpow.pop %v1653
    %v1655 = vadd.f32 %v1648, 1.0
    %v1656 = vadd.f32 %v1650, 1.0
    %v1657 = vadd.f32 %v1652, 1.0
    %v1658 = vadd.f32 %v1654, 1.0
    %v1659 = vrcp.pop %v1655
    %v1660 = vmul.f32 1.0, %v1659
    %v1661 = vrcp.pop %v1656
    %v1662 = vmul.f32 1.0, %v1661
    %v1663 = vrcp.pop %v1657
    %v1664 = vmul.f32 1.0, %v1663
    %v1665 = vrcp.pop %v1658
    %v1666 = vmul.f32 1.0, %v1665
    %v1667 = vadd.f32 %v1593, %v67
    %v1668 = vadd.f32 %v1598, %v67
    %v1669 = vadd.f32 %v1603, %v67
    %v1670 = vadd.f32 %v1608, %v67
    %v1671 = vmul.f32 %v1632, %v1667
    %v1672 = vmul.f32 %v1634, %v1668
    %v1673 = vmul.f32 %v1636, %v1669
    %v1674 = vmul.f32 %v1638, %v1670
    %v1675 = vadd.f32 %v1379, %v1671
    %v1676 = vadd.f32 %v1382, %v1672
    %v1677 = vadd.f32 %v1385, %v1673
    %v1678 = vadd.f32 %v1388, %v1674
    %v1679 = vtanh.pop %v1675
    %v1680 = vtanh.pop %v1676
    %v1681 = vtanh.pop %v1677
    %v1682 = vtanh.pop %v1678
    %v1683 = vsub.f32 1.0, %v1660
    %v1684 = vsub.f32 1.0, %v1662
    %v1685 = vsub.f32 1.0, %v1664
    %v1686 = vsub.f32 1.0, %v1666
    %v1687 = vmul.f32 %v1683, %v1679
    %v1688 = vmul.f32 %v1684, %v1680
    %v1689 = vmul.f32 %v1685, %v1681
    %v1690 = vmul.f32 %v1686, %v1682
    %v1691 = vmul.f32 %v1660, %v1368
    %v1692 = vmul.f32 %v1662, %v1369
    %v1693 = vmul.f32 %v1664, %v1370
    %v1694 = vmul.f32 %v1666, %v1371
    %v1695 = vadd.f32 %v1687, %v1691
    %v1696 = vadd.f32 %v1688, %v1692
    %v1697 = vadd.f32 %v1689, %v1693
    %v1698 = vadd.f32 %v1690, %v1694
    %1699 = vst [vmem:[#allocation2 + $0x20] sm:$0xff] %v1695
    %1700 = vst [vmem:[#allocation2 + $0x80] sm:$0xff] %v1696
    %1701 = vst [vmem:[#allocation2 + $0xe0] sm:$0xff] %v1697
    %1702 = vst [vmem:[#allocation2 + $0x140] sm:$0xff] %v1698
    %s1703 = scalar_lea.vmem [#allocation3], 480
    %v1704 = vld [vmem:[%s1703] sm:$0xff]
    %v1705 = vld [vmem:[%s1703 + $0x8] sm:$0xff]
    %v1706 = vld [vmem:[%s1703 + $0x10] sm:$0xff]
    %v1707 = vld [vmem:[%s1703 + $0x18] sm:$0xff]
    %v1708 = vld [vmem:[%s1703 + $0x20] sm:$0xff]
    %v1709 = vld [vmem:[%s1703 + $0x28] sm:$0xff]
    %v1710 = vld [vmem:[%s1703 + $0x30] sm:$0xff]
    %v1711 = vld [vmem:[%s1703 + $0x38] sm:$0xff]
    %v1712 = vld [vmem:[%s1703 + $0x40] sm:$0xff]
    %v1713 = vld [vmem:[%s1703 + $0x48] sm:$0xff]
    %v1714 = vld [vmem:[%s1703 + $0x50] sm:$0xff]
    %v1715 = vld [vmem:[%s1703 + $0x58] sm:$0xff]
    %v1716 = vld [vmem:[#allocation6] sm:$0xff]
    %v1717 = vld [vmem:[#allocation6 + $0x8] sm:$0xff]
    %v1718 = vld [vmem:[#allocation6 + $0x10] sm:$0xff]
    %v1719 = vld [vmem:[#allocation6 + $0x18] sm:$0xff]
    %v1720 = vld [vmem:[#allocation6 + $0x20] sm:$0xff]
    %v1721 = vld [vmem:[#allocation6 + $0x28] sm:$0xff]
    %v1722 = vld [vmem:[#allocation6 + $0x30] sm:$0xff]
    %v1723 = vld [vmem:[#allocation6 + $0x38] sm:$0xff]
    %v1724 = vld [vmem:[#allocation6 + $0x40] sm:$0xff]
    %v1725 = vld [vmem:[#allocation6 + $0x48] sm:$0xff]
    %v1726 = vld [vmem:[#allocation6 + $0x50] sm:$0xff]
    %v1727 = vld [vmem:[#allocation6 + $0x58] sm:$0xff]
    %v1728 = vld [vmem:[#allocation6 + $0x60] sm:$0xff]
    %v1729 = vld [vmem:[#allocation6 + $0x68] sm:$0xff]
    %v1730 = vld [vmem:[#allocation6 + $0x70] sm:$0xff]
    %v1731 = vld [vmem:[#allocation6 + $0x78] sm:$0xff]
    %v1732 = vld [vmem:[#allocation6 + $0x80] sm:$0xff]
    %v1733 = vld [vmem:[#allocation6 + $0x88] sm:$0xff]
    %v1734 = vld [vmem:[#allocation6 + $0x90] sm:$0xff]
    %v1735 = vld [vmem:[#allocation6 + $0x98] sm:$0xff]
    %v1736 = vld [vmem:[#allocation6 + $0xa0] sm:$0xff]
    %v1737 = vld [vmem:[#allocation6 + $0xa8] sm:$0xff]
    %v1738 = vld [vmem:[#allocation6 + $0xb0] sm:$0xff]
    %v1739 = vld [vmem:[#allocation6 + $0xb8] sm:$0xff]
    %v1740 = vld [vmem:[#allocation6 + $0xc0] sm:$0xff]
    %v1741 = vld [vmem:[#allocation6 + $0xc8] sm:$0xff]
    %v1742 = vld [vmem:[#allocation6 + $0xd0] sm:$0xff]
    %v1743 = vld [vmem:[#allocation6 + $0xd8] sm:$0xff]
    %v1744 = vld [vmem:[#allocation6 + $0xe0] sm:$0xff]
    %v1745 = vld [vmem:[#allocation6 + $0xe8] sm:$0xff]
    %v1746 = vld [vmem:[#allocation6 + $0xf0] sm:$0xff]
    %v1747 = vld [vmem:[#allocation6 + $0xf8] sm:$0xff]
    %v1748 = vld [vmem:[#allocation6 + $0x100] sm:$0xff]
    %v1749 = vld [vmem:[#allocation6 + $0x108] sm:$0xff]
    %v1750 = vld [vmem:[#allocation6 + $0x110] sm:$0xff]
    %v1751 = vld [vmem:[#allocation6 + $0x118] sm:$0xff]
    %v1752 = vld [vmem:[#allocation6 + $0x120] sm:$0xff]
    %v1753 = vld [vmem:[#allocation6 + $0x128] sm:$0xff]
    %v1754 = vld [vmem:[#allocation6 + $0x130] sm:$0xff]
    %v1755 = vld [vmem:[#allocation6 + $0x138] sm:$0xff]
    %v1756 = vld [vmem:[#allocation6 + $0x140] sm:$0xff]
    %v1757 = vld [vmem:[#allocation6 + $0x148] sm:$0xff]
    %v1758 = vld [vmem:[#allocation6 + $0x150] sm:$0xff]
    %v1759 = vld [vmem:[#allocation6 + $0x158] sm:$0xff]
    %v1760 = vld [vmem:[#allocation6 + $0x160] sm:$0xff]
    %v1761 = vld [vmem:[#allocation6 + $0x168] sm:$0xff]
    %v1762 = vld [vmem:[#allocation6 + $0x170] sm:$0xff]
    %v1763 = vld [vmem:[#allocation6 + $0x178] sm:$0xff]
    %1764 = vmatprep.subr.mxu0 %v1762
    %1765 = vmatpush1.msra.mxu0 %v1761
    %1766 = vmatprep.subr.mxu0 %v1759
    %1767 = vmatpush1.msra.mxu0 %v1758
    %1768 = vmatprep.subr.mxu0 %v1756
    %1769 = vmatpush1.msra.mxu0 %v1755
    %1770 = vmatprep.subr.mxu0 %v1753
    %1771 = vmatpush1.msra.mxu0 %v1752
    %1772 = vmatprep.subr.mxu0 %v1750
    %1773 = vmatpush1.msra.mxu0 %v1749
    %1774 = vmatprep.subr.mxu0 %v1747
    %1775 = vmatpush1.msra.mxu0 %v1746
    %1776 = vmatprep.subr.mxu0 %v1744
    %1777 = vmatpush1.msra.mxu0 %v1743
    %1778 = vmatprep.subr.mxu0 %v1741
    %1779 = vmatpush1.msra.mxu0 %v1740
    %1780 = vmatprep.subr.mxu0 %v1738
    %1781 = vmatpush1.msra.mxu0 %v1737
    %1782 = vmatprep.subr.mxu0 %v1735
    %1783 = vmatpush1.msra.mxu0 %v1734
    %1784 = vmatprep.subr.mxu0 %v1732
    %1785 = vmatpush1.msra.mxu0 %v1731
    %1786 = vmatprep.subr.mxu0 %v1729
    %1787 = vmatpush1.msra.mxu0 %v1728
    %1788 = vmatprep.subr.mxu0 %v1726
    %1789 = vmatpush1.msra.mxu0 %v1725
    %1790 = vmatprep.subr.mxu0 %v1723
    %1791 = vmatpush1.msra.mxu0 %v1722
    %1792 = vmatprep.subr.mxu0 %v1720
    %1793 = vmatpush1.msra.mxu0 %v1719
    %1794 = vmatprep.subr.mxu0 %v1717
    %1795 = vmatpush1.msra.mxu0 %v1716
    %1796 = vmatprep.subr.mxu0 0.0
    %1797 = vmatpush2.msra.mxu0 0.0
    %1798 = vmatprep.subr.mxu0 0.0
    %1799 = vmatpush2.msra.mxu0 0.0
    %1800 = vmatprep.subr.mxu0 0.0
    %1801 = vmatpush2.msra.mxu0 0.0
    %1802 = vmatprep.subr.mxu0 0.0
    %1803 = vmatpush2.msra.mxu0 0.0
    %1804 = vmatprep.subr.mxu0 0.0
    %1805 = vmatpush2.msra.mxu0 0.0
    %1806 = vmatprep.subr.mxu0 0.0
    %1807 = vmatpush2.msra.mxu0 0.0
    %1808 = vmatprep.subr.mxu0 0.0
    %1809 = vmatpush2.msra.mxu0 0.0
    %1810 = vmatprep.subr.mxu0 0.0
    %1811 = vmatpush2.msra.mxu0 0.0
    %1812 = vmatprep.subr.mxu0 0.0
    %1813 = vmatpush2.msra.mxu0 0.0
    %1814 = vmatprep.subr.mxu0 0.0
    %1815 = vmatpush2.msra.mxu0 0.0
    %1816 = vmatprep.subr.mxu0 0.0
    %1817 = vmatpush2.msra.mxu0 0.0
    %1818 = vmatprep.subr.mxu0 0.0
    %1819 = vmatpush2.msra.mxu0 0.0
    %1820 = vmatprep.subr.mxu0 0.0
    %1821 = vmatpush2.msra.mxu0 0.0
    %1822 = vmatprep.subr.mxu0 0.0
    %1823 = vmatpush2.msra.mxu0 0.0
    %1824 = vmatprep.subr.mxu0 0.0
    %1825 = vmatpush2.msra.mxu0 0.0
    %1826 = vmatprep.subr.mxu0 0.0
    %1827 = vmatpush2.msra.mxu0 0.0
    %1828 = vmatprep.mubr.f32.mxu0 0.0
    %1829 = vmatmul.mubr.f32.gmra.mxu0 %v1695
    %v1830 = vpop.f32.mrf.mxu0
    %v1831 = vadd.f32 0.0, %v1830
    %v1832 = vpop.f32.mrf.mxu0
    %v1833 = vadd.f32 0.0, %v1832
    %1834 = vmatprep.mubr.f32.mxu0 0.0
    %1835 = vmatmul.mubr.f32.gmra.mxu0 %v1696
    %v1836 = vpop.f32.mrf.mxu0
    %v1837 = vadd.f32 0.0, %v1836
    %v1838 = vpop.f32.mrf.mxu0
    %v1839 = vadd.f32 0.0, %v1838
    %1840 = vmatprep.mubr.f32.mxu0 0.0
    %1841 = vmatmul.mubr.f32.gmra.mxu0 %v1697
    %v1842 = vpop.f32.mrf.mxu0
    %v1843 = vadd.f32 0.0, %v1842
    %v1844 = vpop.f32.mrf.mxu0
    %v1845 = vadd.f32 0.0, %v1844
    %1846 = vmatprep.mubr.f32.mxu0 0.0
    %1847 = vmatmul.mubr.f32.gmra.mxu0 %v1698
    %v1848 = vpop.f32.mrf.mxu0
    %v1849 = vadd.f32 0.0, %v1848
    %v1850 = vpop.f32.mrf.mxu0
    %v1851 = vadd.f32 0.0, %v1850
    %1852 = vdwg.mxu0
    %1853 = vmatprep.subr.mxu0 0.0
    %1854 = vmatpush1.msra.mxu0 %v1763
    %1855 = vmatprep.subr.mxu0 0.0
    %1856 = vmatpush1.msra.mxu0 %v1760
    %1857 = vmatprep.subr.mxu0 0.0
    %1858 = vmatpush1.msra.mxu0 %v1757
    %1859 = vmatprep.subr.mxu0 0.0
    %1860 = vmatpush1.msra.mxu0 %v1754
    %1861 = vmatprep.subr.mxu0 0.0
    %1862 = vmatpush1.msra.mxu0 %v1751
    %1863 = vmatprep.subr.mxu0 0.0
    %1864 = vmatpush1.msra.mxu0 %v1748
    %1865 = vmatprep.subr.mxu0 0.0
    %1866 = vmatpush1.msra.mxu0 %v1745
    %1867 = vmatprep.subr.mxu0 0.0
    %1868 = vmatpush1.msra.mxu0 %v1742
    %1869 = vmatprep.subr.mxu0 0.0
    %1870 = vmatpush1.msra.mxu0 %v1739
    %1871 = vmatprep.subr.mxu0 0.0
    %1872 = vmatpush1.msra.mxu0 %v1736
    %1873 = vmatprep.subr.mxu0 0.0
    %1874 = vmatpush1.msra.mxu0 %v1733
    %1875 = vmatprep.subr.mxu0 0.0
    %1876 = vmatpush1.msra.mxu0 %v1730
    %1877 = vmatprep.subr.mxu0 0.0
    %1878 = vmatpush1.msra.mxu0 %v1727
    %1879 = vmatprep.subr.mxu0 0.0
    %1880 = vmatpush1.msra.mxu0 %v1724
    %1881 = vmatprep.subr.mxu0 0.0
    %1882 = vmatpush1.msra.mxu0 %v1721
    %1883 = vmatprep.subr.mxu0 0.0
    %1884 = vmatpush1.msra.mxu0 %v1718
    %1885 = vmatprep.subr.mxu0 0.0
    %1886 = vmatpush2.msra.mxu0 0.0
    %1887 = vmatprep.subr.mxu0 0.0
    %1888 = vmatpush2.msra.mxu0 0.0
    %1889 = vmatprep.subr.mxu0 0.0
    %1890 = vmatpush2.msra.mxu0 0.0
    %1891 = vmatprep.subr.mxu0 0.0
    %1892 = vmatpush2.msra.mxu0 0.0
    %1893 = vmatprep.subr.mxu0 0.0
    %1894 = vmatpush2.msra.mxu0 0.0
    %1895 = vmatprep.subr.mxu0 0.0
    %1896 = vmatpush2.msra.mxu0 0.0
    %1897 = vmatprep.subr.mxu0 0.0
    %1898 = vmatpush2.msra.mxu0 0.0
    %1899 = vmatprep.subr.mxu0 0.0
    %1900 = vmatpush2.msra.mxu0 0.0
    %1901 = vmatprep.subr.mxu0 0.0
    %1902 = vmatpush2.msra.mxu0 0.0
    %1903 = vmatprep.subr.mxu0 0.0
    %1904 = vmatpush2.msra.mxu0 0.0
    %1905 = vmatprep.subr.mxu0 0.0
    %1906 = vmatpush2.msra.mxu0 0.0
    %1907 = vmatprep.subr.mxu0 0.0
    %1908 = vmatpush2.msra.mxu0 0.0
    %1909 = vmatprep.subr.mxu0 0.0
    %1910 = vmatpush2.msra.mxu0 0.0
    %1911 = vmatprep.subr.mxu0 0.0
    %1912 = vmatpush2.msra.mxu0 0.0
    %1913 = vmatprep.subr.mxu0 0.0
    %1914 = vmatpush2.msra.mxu0 0.0
    %1915 = vmatprep.subr.mxu0 0.0
    %1916 = vmatpush2.msra.mxu0 0.0
    %1917 = vmatprep.mubr.f32.mxu0 0.0
    %1918 = vmatmul.mubr.f32.gmra.mxu0 %v1695
    %v1919 = vpop.f32.mrf.mxu0
    %v1920 = vadd.f32 0.0, %v1919
    %v1921 = vpop.f32.mrf.mxu0
    %1922 = vmatprep.mubr.f32.mxu0 0.0
    %1923 = vmatmul.mubr.f32.gmra.mxu0 %v1696
    %v1924 = vpop.f32.mrf.mxu0
    %v1925 = vadd.f32 0.0, %v1924
    %v1926 = vpop.f32.mrf.mxu0
    %1927 = vmatprep.mubr.f32.mxu0 0.0
    %1928 = vmatmul.mubr.f32.gmra.mxu0 %v1697
    %v1929 = vpop.f32.mrf.mxu0
    %v1930 = vadd.f32 0.0, %v1929
    %v1931 = vpop.f32.mrf.mxu0
    %1932 = vmatprep.mubr.f32.mxu0 0.0
    %1933 = vmatmul.mubr.f32.gmra.mxu0 %v1698
    %v1934 = vpop.f32.mrf.mxu0
    %v1935 = vadd.f32 0.0, %v1934
    %v1936 = vpop.f32.mrf.mxu0
    %1937 = vdwg.mxu0
    %v1938 = vadd.f32 %v1704, %v1831
    %v1939 = vadd.f32 %v1707, %v1837
    %v1940 = vadd.f32 %v1710, %v1843
    %v1941 = vadd.f32 %v1713, %v1849
    %v1942 = vxor.u32 %v1938, 2147483648
    %v1943 = vxor.u32 %v1939, 2147483648
    %v1944 = vxor.u32 %v1940, 2147483648
    %v1945 = vxor.u32 %v1941, 2147483648
    %v1946 = vmul.f32 %v1942, 1.442695
    %v1947 = vpow.pop %v1946
    %v1948 = vmul.f32 %v1943, 1.442695
    %v1949 = vpow.pop %v1948
    %v1950 = vmul.f32 %v1944, 1.442695
    %v1951 = vpow.pop %v1950
    %v1952 = vmul.f32 %v1945, 1.442695
    %v1953 = vpow.pop %v1952
    %v1954 = vadd.f32 %v1947, 1.0
    %v1955 = vadd.f32 %v1949, 1.0
    %v1956 = vadd.f32 %v1951, 1.0
    %v1957 = vadd.f32 %v1953, 1.0
    %v1958 = vrcp.pop %v1954
    %v1959 = vmul.f32 1.0, %v1958
    %v1960 = vrcp.pop %v1955
    %v1961 = vmul.f32 1.0, %v1960
    %v1962 = vrcp.pop %v1956
    %v1963 = vmul.f32 1.0, %v1962
    %v1964 = vrcp.pop %v1957
    %v1965 = vmul.f32 1.0, %v1964
    %v1966 = vadd.f32 %v1705, %v1833
    %v1967 = vadd.f32 %v1708, %v1839
    %v1968 = vadd.f32 %v1711, %v1845
    %v1969 = vadd.f32 %v1714, %v1851
    %v1970 = vxor.u32 %v1966, 2147483648
    %v1971 = vxor.u32 %v1967, 2147483648
    %v1972 = vxor.u32 %v1968, 2147483648
    %v1973 = vxor.u32 %v1969, 2147483648
    %v1974 = vmul.f32 %v1970, 1.442695
    %v1975 = vpow.pop %v1974
    %v1976 = vmul.f32 %v1971, 1.442695
    %v1977 = vpow.pop %v1976
    %v1978 = vmul.f32 %v1972, 1.442695
    %v1979 = vpow.pop %v1978
    %v1980 = vmul.f32 %v1973, 1.442695
    %v1981 = vpow.pop %v1980
    %v1982 = vadd.f32 %v1975, 1.0
    %v1983 = vadd.f32 %v1977, 1.0
    %v1984 = vadd.f32 %v1979, 1.0
    %v1985 = vadd.f32 %v1981, 1.0
    %v1986 = vrcp.pop %v1982
    %v1987 = vmul.f32 1.0, %v1986
    %v1988 = vrcp.pop %v1983
    %v1989 = vmul.f32 1.0, %v1988
    %v1990 = vrcp.pop %v1984
    %v1991 = vmul.f32 1.0, %v1990
    %v1992 = vrcp.pop %v1985
    %v1993 = vmul.f32 1.0, %v1992
    %v1994 = vadd.f32 %v1920, %v67
    %v1995 = vadd.f32 %v1925, %v67
    %v1996 = vadd.f32 %v1930, %v67
    %v1997 = vadd.f32 %v1935, %v67
    %v1998 = vmul.f32 %v1959, %v1994
    %v1999 = vmul.f32 %v1961, %v1995
    %v2000 = vmul.f32 %v1963, %v1996
    %v2001 = vmul.f32 %v1965, %v1997
    %v2002 = vadd.f32 %v1706, %v1998
    %v2003 = vadd.f32 %v1709, %v1999
    %v2004 = vadd.f32 %v1712, %v2000
    %v2005 = vadd.f32 %v1715, %v2001
    %v2006 = vtanh.pop %v2002
    %v2007 = vtanh.pop %v2003
    %v2008 = vtanh.pop %v2004
    %v2009 = vtanh.pop %v2005
    %v2010 = vsub.f32 1.0, %v1987
    %v2011 = vsub.f32 1.0, %v1989
    %v2012 = vsub.f32 1.0, %v1991
    %v2013 = vsub.f32 1.0, %v1993
    %v2014 = vmul.f32 %v2010, %v2006
    %v2015 = vmul.f32 %v2011, %v2007
    %v2016 = vmul.f32 %v2012, %v2008
    %v2017 = vmul.f32 %v2013, %v2009
    %v2018 = vmul.f32 %v1987, %v1695
    %v2019 = vmul.f32 %v1989, %v1696
    %v2020 = vmul.f32 %v1991, %v1697
    %v2021 = vmul.f32 %v1993, %v1698
    %v2022 = vadd.f32 %v2014, %v2018
    %v2023 = vadd.f32 %v2015, %v2019
    %v2024 = vadd.f32 %v2016, %v2020
    %v2025 = vadd.f32 %v2017, %v2021
    %2026 = vst [vmem:[#allocation2 + $0x28] sm:$0xff] %v2022
    %2027 = vst [vmem:[#allocation2 + $0x88] sm:$0xff] %v2023
    %2028 = vst [vmem:[#allocation2 + $0xe8] sm:$0xff] %v2024
    %2029 = vst [vmem:[#allocation2 + $0x148] sm:$0xff] %v2025
    %s2030 = scalar_lea.vmem [#allocation3], 576
    %v2031 = vld [vmem:[%s2030] sm:$0xff]
    %v2032 = vld [vmem:[%s2030 + $0x8] sm:$0xff]
    %v2033 = vld [vmem:[%s2030 + $0x10] sm:$0xff]
    %v2034 = vld [vmem:[%s2030 + $0x18] sm:$0xff]
    %v2035 = vld [vmem:[%s2030 + $0x20] sm:$0xff]
    %v2036 = vld [vmem:[%s2030 + $0x28] sm:$0xff]
    %v2037 = vld [vmem:[%s2030 + $0x30] sm:$0xff]
    %v2038 = vld [vmem:[%s2030 + $0x38] sm:$0xff]
    %v2039 = vld [vmem:[%s2030 + $0x40] sm:$0xff]
    %v2040 = vld [vmem:[%s2030 + $0x48] sm:$0xff]
    %v2041 = vld [vmem:[%s2030 + $0x50] sm:$0xff]
    %v2042 = vld [vmem:[%s2030 + $0x58] sm:$0xff]
    %v2043 = vld [vmem:[#allocation6] sm:$0xff]
    %v2044 = vld [vmem:[#allocation6 + $0x8] sm:$0xff]
    %v2045 = vld [vmem:[#allocation6 + $0x10] sm:$0xff]
    %v2046 = vld [vmem:[#allocation6 + $0x18] sm:$0xff]
    %v2047 = vld [vmem:[#allocation6 + $0x20] sm:$0xff]
    %v2048 = vld [vmem:[#allocation6 + $0x28] sm:$0xff]
    %v2049 = vld [vmem:[#allocation6 + $0x30] sm:$0xff]
    %v2050 = vld [vmem:[#allocation6 + $0x38] sm:$0xff]
    %v2051 = vld [vmem:[#allocation6 + $0x40] sm:$0xff]
    %v2052 = vld [vmem:[#allocation6 + $0x48] sm:$0xff]
    %v2053 = vld [vmem:[#allocation6 + $0x50] sm:$0xff]
    %v2054 = vld [vmem:[#allocation6 + $0x58] sm:$0xff]
    %v2055 = vld [vmem:[#allocation6 + $0x60] sm:$0xff]
    %v2056 = vld [vmem:[#allocation6 + $0x68] sm:$0xff]
    %v2057 = vld [vmem:[#allocation6 + $0x70] sm:$0xff]
    %v2058 = vld [vmem:[#allocation6 + $0x78] sm:$0xff]
    %v2059 = vld [vmem:[#allocation6 + $0x80] sm:$0xff]
    %v2060 = vld [vmem:[#allocation6 + $0x88] sm:$0xff]
    %v2061 = vld [vmem:[#allocation6 + $0x90] sm:$0xff]
    %v2062 = vld [vmem:[#allocation6 + $0x98] sm:$0xff]
    %v2063 = vld [vmem:[#allocation6 + $0xa0] sm:$0xff]
    %v2064 = vld [vmem:[#allocation6 + $0xa8] sm:$0xff]
    %v2065 = vld [vmem:[#allocation6 + $0xb0] sm:$0xff]
    %v2066 = vld [vmem:[#allocation6 + $0xb8] sm:$0xff]
    %v2067 = vld [vmem:[#allocation6 + $0xc0] sm:$0xff]
    %v2068 = vld [vmem:[#allocation6 + $0xc8] sm:$0xff]
    %v2069 = vld [vmem:[#allocation6 + $0xd0] sm:$0xff]
    %v2070 = vld [vmem:[#allocation6 + $0xd8] sm:$0xff]
    %v2071 = vld [vmem:[#allocation6 + $0xe0] sm:$0xff]
    %v2072 = vld [vmem:[#allocation6 + $0xe8] sm:$0xff]
    %v2073 = vld [vmem:[#allocation6 + $0xf0] sm:$0xff]
    %v2074 = vld [vmem:[#allocation6 + $0xf8] sm:$0xff]
    %v2075 = vld [vmem:[#allocation6 + $0x100] sm:$0xff]
    %v2076 = vld [vmem:[#allocation6 + $0x108] sm:$0xff]
    %v2077 = vld [vmem:[#allocation6 + $0x110] sm:$0xff]
    %v2078 = vld [vmem:[#allocation6 + $0x118] sm:$0xff]
    %v2079 = vld [vmem:[#allocation6 + $0x120] sm:$0xff]
    %v2080 = vld [vmem:[#allocation6 + $0x128] sm:$0xff]
    %v2081 = vld [vmem:[#allocation6 + $0x130] sm:$0xff]
    %v2082 = vld [vmem:[#allocation6 + $0x138] sm:$0xff]
    %v2083 = vld [vmem:[#allocation6 + $0x140] sm:$0xff]
    %v2084 = vld [vmem:[#allocation6 + $0x148] sm:$0xff]
    %v2085 = vld [vmem:[#allocation6 + $0x150] sm:$0xff]
    %v2086 = vld [vmem:[#allocation6 + $0x158] sm:$0xff]
    %v2087 = vld [vmem:[#allocation6 + $0x160] sm:$0xff]
    %v2088 = vld [vmem:[#allocation6 + $0x168] sm:$0xff]
    %v2089 = vld [vmem:[#allocation6 + $0x170] sm:$0xff]
    %v2090 = vld [vmem:[#allocation6 + $0x178] sm:$0xff]
    %2091 = vmatprep.subr.mxu0 %v2089
    %2092 = vmatpush1.msra.mxu0 %v2088
    %2093 = vmatprep.subr.mxu0 %v2086
    %2094 = vmatpush1.msra.mxu0 %v2085
    %2095 = vmatprep.subr.mxu0 %v2083
    %2096 = vmatpush1.msra.mxu0 %v2082
    %2097 = vmatprep.subr.mxu0 %v2080
    %2098 = vmatpush1.msra.mxu0 %v2079
    %2099 = vmatprep.subr.mxu0 %v2077
    %2100 = vmatpush1.msra.mxu0 %v2076
    %2101 = vmatprep.subr.mxu0 %v2074
    %2102 = vmatpush1.msra.mxu0 %v2073
    %2103 = vmatprep.subr.mxu0 %v2071
    %2104 = vmatpush1.msra.mxu0 %v2070
    %2105 = vmatprep.subr.mxu0 %v2068
    %2106 = vmatpush1.msra.mxu0 %v2067
    %2107 = vmatprep.subr.mxu0 %v2065
    %2108 = vmatpush1.msra.mxu0 %v2064
    %2109 = vmatprep.subr.mxu0 %v2062
    %2110 = vmatpush1.msra.mxu0 %v2061
    %2111 = vmatprep.subr.mxu0 %v2059
    %2112 = vmatpush1.msra.mxu0 %v2058
    %2113 = vmatprep.subr.mxu0 %v2056
    %2114 = vmatpush1.msra.mxu0 %v2055
    %2115 = vmatprep.subr.mxu0 %v2053
    %2116 = vmatpush1.msra.mxu0 %v2052
    %2117 = vmatprep.subr.mxu0 %v2050
    %2118 = vmatpush1.msra.mxu0 %v2049
    %2119 = vmatprep.subr.mxu0 %v2047
    %2120 = vmatpush1.msra.mxu0 %v2046
    %2121 = vmatprep.subr.mxu0 %v2044
    %2122 = vmatpush1.msra.mxu0 %v2043
    %2123 = vmatprep.subr.mxu0 0.0
    %2124 = vmatpush2.msra.mxu0 0.0
    %2125 = vmatprep.subr.mxu0 0.0
    %2126 = vmatpush2.msra.mxu0 0.0
    %2127 = vmatprep.subr.mxu0 0.0
    %2128 = vmatpush2.msra.mxu0 0.0
    %2129 = vmatprep.subr.mxu0 0.0
    %2130 = vmatpush2.msra.mxu0 0.0
    %2131 = vmatprep.subr.mxu0 0.0
    %2132 = vmatpush2.msra.mxu0 0.0
    %2133 = vmatprep.subr.mxu0 0.0
    %2134 = vmatpush2.msra.mxu0 0.0
    %2135 = vmatprep.subr.mxu0 0.0
    %2136 = vmatpush2.msra.mxu0 0.0
    %2137 = vmatprep.subr.mxu0 0.0
    %2138 = vmatpush2.msra.mxu0 0.0
    %2139 = vmatprep.subr.mxu0 0.0
    %2140 = vmatpush2.msra.mxu0 0.0
    %2141 = vmatprep.subr.mxu0 0.0
    %2142 = vmatpush2.msra.mxu0 0.0
    %2143 = vmatprep.subr.mxu0 0.0
    %2144 = vmatpush2.msra.mxu0 0.0
    %2145 = vmatprep.subr.mxu0 0.0
    %2146 = vmatpush2.msra.mxu0 0.0
    %2147 = vmatprep.subr.mxu0 0.0
    %2148 = vmatpush2.msra.mxu0 0.0
    %2149 = vmatprep.subr.mxu0 0.0
    %2150 = vmatpush2.msra.mxu0 0.0
    %2151 = vmatprep.subr.mxu0 0.0
    %2152 = vmatpush2.msra.mxu0 0.0
    %2153 = vmatprep.subr.mxu0 0.0
    %2154 = vmatpush2.msra.mxu0 0.0
    %2155 = vmatprep.mubr.f32.mxu0 0.0
    %2156 = vmatmul.mubr.f32.gmra.mxu0 %v2022
    %v2157 = vpop.f32.mrf.mxu0
    %v2158 = vadd.f32 0.0, %v2157
    %v2159 = vpop.f32.mrf.mxu0
    %v2160 = vadd.f32 0.0, %v2159
    %2161 = vmatprep.mubr.f32.mxu0 0.0
    %2162 = vmatmul.mubr.f32.gmra.mxu0 %v2023
    %v2163 = vpop.f32.mrf.mxu0
    %v2164 = vadd.f32 0.0, %v2163
    %v2165 = vpop.f32.mrf.mxu0
    %v2166 = vadd.f32 0.0, %v2165
    %2167 = vmatprep.mubr.f32.mxu0 0.0
    %2168 = vmatmul.mubr.f32.gmra.mxu0 %v2024
    %v2169 = vpop.f32.mrf.mxu0
    %v2170 = vadd.f32 0.0, %v2169
    %v2171 = vpop.f32.mrf.mxu0
    %v2172 = vadd.f32 0.0, %v2171
    %2173 = vmatprep.mubr.f32.mxu0 0.0
    %2174 = vmatmul.mubr.f32.gmra.mxu0 %v2025
    %v2175 = vpop.f32.mrf.mxu0
    %v2176 = vadd.f32 0.0, %v2175
    %v2177 = vpop.f32.mrf.mxu0
    %v2178 = vadd.f32 0.0, %v2177
    %2179 = vdwg.mxu0
    %2180 = vmatprep.subr.mxu0 0.0
    %2181 = vmatpush1.msra.mxu0 %v2090
    %2182 = vmatprep.subr.mxu0 0.0
    %2183 = vmatpush1.msra.mxu0 %v2087
    %2184 = vmatprep.subr.mxu0 0.0
    %2185 = vmatpush1.msra.mxu0 %v2084
    %2186 = vmatprep.subr.mxu0 0.0
    %2187 = vmatpush1.msra.mxu0 %v2081
    %2188 = vmatprep.subr.mxu0 0.0
    %2189 = vmatpush1.msra.mxu0 %v2078
    %2190 = vmatprep.subr.mxu0 0.0
    %2191 = vmatpush1.msra.mxu0 %v2075
    %2192 = vmatprep.subr.mxu0 0.0
    %2193 = vmatpush1.msra.mxu0 %v2072
    %2194 = vmatprep.subr.mxu0 0.0
    %2195 = vmatpush1.msra.mxu0 %v2069
    %2196 = vmatprep.subr.mxu0 0.0
    %2197 = vmatpush1.msra.mxu0 %v2066
    %2198 = vmatprep.subr.mxu0 0.0
    %2199 = vmatpush1.msra.mxu0 %v2063
    %2200 = vmatprep.subr.mxu0 0.0
    %2201 = vmatpush1.msra.mxu0 %v2060
    %2202 = vmatprep.subr.mxu0 0.0
    %2203 = vmatpush1.msra.mxu0 %v2057
    %2204 = vmatprep.subr.mxu0 0.0
    %2205 = vmatpush1.msra.mxu0 %v2054
    %2206 = vmatprep.subr.mxu0 0.0
    %2207 = vmatpush1.msra.mxu0 %v2051
    %2208 = vmatprep.subr.mxu0 0.0
    %2209 = vmatpush1.msra.mxu0 %v2048
    %2210 = vmatprep.subr.mxu0 0.0
    %2211 = vmatpush1.msra.mxu0 %v2045
    %2212 = vmatprep.subr.mxu0 0.0
    %2213 = vmatpush2.msra.mxu0 0.0
    %2214 = vmatprep.subr.mxu0 0.0
    %2215 = vmatpush2.msra.mxu0 0.0
    %2216 = vmatprep.subr.mxu0 0.0
    %2217 = vmatpush2.msra.mxu0 0.0
    %2218 = vmatprep.subr.mxu0 0.0
    %2219 = vmatpush2.msra.mxu0 0.0
    %2220 = vmatprep.subr.mxu0 0.0
    %2221 = vmatpush2.msra.mxu0 0.0
    %2222 = vmatprep.subr.mxu0 0.0
    %2223 = vmatpush2.msra.mxu0 0.0
    %2224 = vmatprep.subr.mxu0 0.0
    %2225 = vmatpush2.msra.mxu0 0.0
    %2226 = vmatprep.subr.mxu0 0.0
    %2227 = vmatpush2.msra.mxu0 0.0
    %2228 = vmatprep.subr.mxu0 0.0
    %2229 = vmatpush2.msra.mxu0 0.0
    %2230 = vmatprep.subr.mxu0 0.0
    %2231 = vmatpush2.msra.mxu0 0.0
    %2232 = vmatprep.subr.mxu0 0.0
    %2233 = vmatpush2.msra.mxu0 0.0
    %2234 = vmatprep.subr.mxu0 0.0
    %2235 = vmatpush2.msra.mxu0 0.0
    %2236 = vmatprep.subr.mxu0 0.0
    %2237 = vmatpush2.msra.mxu0 0.0
    %2238 = vmatprep.subr.mxu0 0.0
    %2239 = vmatpush2.msra.mxu0 0.0
    %2240 = vmatprep.subr.mxu0 0.0
    %2241 = vmatpush2.msra.mxu0 0.0
    %2242 = vmatprep.subr.mxu0 0.0
    %2243 = vmatpush2.msra.mxu0 0.0
    %2244 = vmatprep.mubr.f32.mxu0 0.0
    %2245 = vmatmul.mubr.f32.gmra.mxu0 %v2022
    %v2246 = vpop.f32.mrf.mxu0
    %v2247 = vadd.f32 0.0, %v2246
    %v2248 = vpop.f32.mrf.mxu0
    %2249 = vmatprep.mubr.f32.mxu0 0.0
    %2250 = vmatmul.mubr.f32.gmra.mxu0 %v2023
    %v2251 = vpop.f32.mrf.mxu0
    %v2252 = vadd.f32 0.0, %v2251
    %v2253 = vpop.f32.mrf.mxu0
    %2254 = vmatprep.mubr.f32.mxu0 0.0
    %2255 = vmatmul.mubr.f32.gmra.mxu0 %v2024
    %v2256 = vpop.f32.mrf.mxu0
    %v2257 = vadd.f32 0.0, %v2256
    %v2258 = vpop.f32.mrf.mxu0
    %2259 = vmatprep.mubr.f32.mxu0 0.0
    %2260 = vmatmul.mubr.f32.gmra.mxu0 %v2025
    %v2261 = vpop.f32.mrf.mxu0
    %v2262 = vadd.f32 0.0, %v2261
    %v2263 = vpop.f32.mrf.mxu0
    %2264 = vdwg.mxu0
    %v2265 = vadd.f32 %v2031, %v2158
    %v2266 = vadd.f32 %v2034, %v2164
    %v2267 = vadd.f32 %v2037, %v2170
    %v2268 = vadd.f32 %v2040, %v2176
    %v2269 = vxor.u32 %v2265, 2147483648
    %v2270 = vxor.u32 %v2266, 2147483648
    %v2271 = vxor.u32 %v2267, 2147483648
    %v2272 = vxor.u32 %v2268, 2147483648
    %v2273 = vmul.f32 %v2269, 1.442695
    %v2274 = vpow.pop %v2273
    %v2275 = vmul.f32 %v2270, 1.442695
    %v2276 = vpow.pop %v2275
    %v2277 = vmul.f32 %v2271, 1.442695
    %v2278 = vpow.pop %v2277
    %v2279 = vmul.f32 %v2272, 1.442695
    %v2280 = vpow.pop %v2279
    %v2281 = vadd.f32 %v2274, 1.0
    %v2282 = vadd.f32 %v2276, 1.0
    %v2283 = vadd.f32 %v2278, 1.0
    %v2284 = vadd.f32 %v2280, 1.0
    %v2285 = vrcp.pop %v2281
    %v2286 = vmul.f32 1.0, %v2285
    %v2287 = vrcp.pop %v2282
    %v2288 = vmul.f32 1.0, %v2287
    %v2289 = vrcp.pop %v2283
    %v2290 = vmul.f32 1.0, %v2289
    %v2291 = vrcp.pop %v2284
    %v2292 = vmul.f32 1.0, %v2291
    %v2293 = vadd.f32 %v2032, %v2160
    %v2294 = vadd.f32 %v2035, %v2166
    %v2295 = vadd.f32 %v2038, %v2172
    %v2296 = vadd.f32 %v2041, %v2178
    %v2297 = vxor.u32 %v2293, 2147483648
    %v2298 = vxor.u32 %v2294, 2147483648
    %v2299 = vxor.u32 %v2295, 2147483648
    %v2300 = vxor.u32 %v2296, 2147483648
    %v2301 = vmul.f32 %v2297, 1.442695
    %v2302 = vpow.pop %v2301
    %v2303 = vmul.f32 %v2298, 1.442695
    %v2304 = vpow.pop %v2303
    %v2305 = vmul.f32 %v2299, 1.442695
    %v2306 = vpow.pop %v2305
    %v2307 = vmul.f32 %v2300, 1.442695
    %v2308 = vpow.pop %v2307
    %v2309 = vadd.f32 %v2302, 1.0
    %v2310 = vadd.f32 %v2304, 1.0
    %v2311 = vadd.f32 %v2306, 1.0
    %v2312 = vadd.f32 %v2308, 1.0
    %v2313 = vrcp.pop %v2309
    %v2314 = vmul.f32 1.0, %v2313
    %v2315 = vrcp.pop %v2310
    %v2316 = vmul.f32 1.0, %v2315
    %v2317 = vrcp.pop %v2311
    %v2318 = vmul.f32 1.0, %v2317
    %v2319 = vrcp.pop %v2312
    %v2320 = vmul.f32 1.0, %v2319
    %v2321 = vadd.f32 %v2247, %v67
    %v2322 = vadd.f32 %v2252, %v67
    %v2323 = vadd.f32 %v2257, %v67
    %v2324 = vadd.f32 %v2262, %v67
    %v2325 = vmul.f32 %v2286, %v2321
    %v2326 = vmul.f32 %v2288, %v2322
    %v2327 = vmul.f32 %v2290, %v2323
    %v2328 = vmul.f32 %v2292, %v2324
    %v2329 = vadd.f32 %v2033, %v2325
    %v2330 = vadd.f32 %v2036, %v2326
    %v2331 = vadd.f32 %v2039, %v2327
    %v2332 = vadd.f32 %v2042, %v2328
    %v2333 = vtanh.pop %v2329
    %v2334 = vtanh.pop %v2330
    %v2335 = vtanh.pop %v2331
    %v2336 = vtanh.pop %v2332
    %v2337 = vsub.f32 1.0, %v2314
    %v2338 = vsub.f32 1.0, %v2316
    %v2339 = vsub.f32 1.0, %v2318
    %v2340 = vsub.f32 1.0, %v2320
    %v2341 = vmul.f32 %v2337, %v2333
    %v2342 = vmul.f32 %v2338, %v2334
    %v2343 = vmul.f32 %v2339, %v2335
    %v2344 = vmul.f32 %v2340, %v2336
    %v2345 = vmul.f32 %v2314, %v2022
    %v2346 = vmul.f32 %v2316, %v2023
    %v2347 = vmul.f32 %v2318, %v2024
    %v2348 = vmul.f32 %v2320, %v2025
    %v2349 = vadd.f32 %v2341, %v2345
    %v2350 = vadd.f32 %v2342, %v2346
    %v2351 = vadd.f32 %v2343, %v2347
    %v2352 = vadd.f32 %v2344, %v2348
    %2353 = vst [vmem:[#allocation2 + $0x30] sm:$0xff] %v2349
    %2354 = vst [vmem:[#allocation2 + $0x90] sm:$0xff] %v2350
    %2355 = vst [vmem:[#allocation2 + $0xf0] sm:$0xff] %v2351
    %2356 = vst [vmem:[#allocation2 + $0x150] sm:$0xff] %v2352
    %s2357 = scalar_lea.vmem [#allocation3], 672
    %v2358 = vld [vmem:[%s2357] sm:$0xff]
    %v2359 = vld [vmem:[%s2357 + $0x8] sm:$0xff]
    %v2360 = vld [vmem:[%s2357 + $0x10] sm:$0xff]
    %v2361 = vld [vmem:[%s2357 + $0x18] sm:$0xff]
    %v2362 = vld [vmem:[%s2357 + $0x20] sm:$0xff]
    %v2363 = vld [vmem:[%s2357 + $0x28] sm:$0xff]
    %v2364 = vld [vmem:[%s2357 + $0x30] sm:$0xff]
    %v2365 = vld [vmem:[%s2357 + $0x38] sm:$0xff]
    %v2366 = vld [vmem:[%s2357 + $0x40] sm:$0xff]
    %v2367 = vld [vmem:[%s2357 + $0x48] sm:$0xff]
    %v2368 = vld [vmem:[%s2357 + $0x50] sm:$0xff]
    %v2369 = vld [vmem:[%s2357 + $0x58] sm:$0xff]
    %v2370 = vld [vmem:[#allocation6] sm:$0xff]
    %v2371 = vld [vmem:[#allocation6 + $0x8] sm:$0xff]
    %v2372 = vld [vmem:[#allocation6 + $0x10] sm:$0xff]
    %v2373 = vld [vmem:[#allocation6 + $0x18] sm:$0xff]
    %v2374 = vld [vmem:[#allocation6 + $0x20] sm:$0xff]
    %v2375 = vld [vmem:[#allocation6 + $0x28] sm:$0xff]
    %v2376 = vld [vmem:[#allocation6 + $0x30] sm:$0xff]
    %v2377 = vld [vmem:[#allocation6 + $0x38] sm:$0xff]
    %v2378 = vld [vmem:[#allocation6 + $0x40] sm:$0xff]
    %v2379 = vld [vmem:[#allocation6 + $0x48] sm:$0xff]
    %v2380 = vld [vmem:[#allocation6 + $0x50] sm:$0xff]
    %v2381 = vld [vmem:[#allocation6 + $0x58] sm:$0xff]
    %v2382 = vld [vmem:[#allocation6 + $0x60] sm:$0xff]
    %v2383 = vld [vmem:[#allocation6 + $0x68] sm:$0xff]
    %v2384 = vld [vmem:[#allocation6 + $0x70] sm:$0xff]
    %v2385 = vld [vmem:[#allocation6 + $0x78] sm:$0xff]
    %v2386 = vld [vmem:[#allocation6 + $0x80] sm:$0xff]
    %v2387 = vld [vmem:[#allocation6 + $0x88] sm:$0xff]
    %v2388 = vld [vmem:[#allocation6 + $0x90] sm:$0xff]
    %v2389 = vld [vmem:[#allocation6 + $0x98] sm:$0xff]
    %v2390 = vld [vmem:[#allocation6 + $0xa0] sm:$0xff]
    %v2391 = vld [vmem:[#allocation6 + $0xa8] sm:$0xff]
    %v2392 = vld [vmem:[#allocation6 + $0xb0] sm:$0xff]
    %v2393 = vld [vmem:[#allocation6 + $0xb8] sm:$0xff]
    %v2394 = vld [vmem:[#allocation6 + $0xc0] sm:$0xff]
    %v2395 = vld [vmem:[#allocation6 + $0xc8] sm:$0xff]
    %v2396 = vld [vmem:[#allocation6 + $0xd0] sm:$0xff]
    %v2397 = vld [vmem:[#allocation6 + $0xd8] sm:$0xff]
    %v2398 = vld [vmem:[#allocation6 + $0xe0] sm:$0xff]
    %v2399 = vld [vmem:[#allocation6 + $0xe8] sm:$0xff]
    %v2400 = vld [vmem:[#allocation6 + $0xf0] sm:$0xff]
    %v2401 = vld [vmem:[#allocation6 + $0xf8] sm:$0xff]
    %v2402 = vld [vmem:[#allocation6 + $0x100] sm:$0xff]
    %v2403 = vld [vmem:[#allocation6 + $0x108] sm:$0xff]
    %v2404 = vld [vmem:[#allocation6 + $0x110] sm:$0xff]
    %v2405 = vld [vmem:[#allocation6 + $0x118] sm:$0xff]
    %v2406 = vld [vmem:[#allocation6 + $0x120] sm:$0xff]
    %v2407 = vld [vmem:[#allocation6 + $0x128] sm:$0xff]
    %v2408 = vld [vmem:[#allocation6 + $0x130] sm:$0xff]
    %v2409 = vld [vmem:[#allocation6 + $0x138] sm:$0xff]
    %v2410 = vld [vmem:[#allocation6 + $0x140] sm:$0xff]
    %v2411 = vld [vmem:[#allocation6 + $0x148] sm:$0xff]
    %v2412 = vld [vmem:[#allocation6 + $0x150] sm:$0xff]
    %v2413 = vld [vmem:[#allocation6 + $0x158] sm:$0xff]
    %v2414 = vld [vmem:[#allocation6 + $0x160] sm:$0xff]
    %v2415 = vld [vmem:[#allocation6 + $0x168] sm:$0xff]
    %v2416 = vld [vmem:[#allocation6 + $0x170] sm:$0xff]
    %v2417 = vld [vmem:[#allocation6 + $0x178] sm:$0xff]
    %2418 = vmatprep.subr.mxu0 %v2416
    %2419 = vmatpush1.msra.mxu0 %v2415
    %2420 = vmatprep.subr.mxu0 %v2413
    %2421 = vmatpush1.msra.mxu0 %v2412
    %2422 = vmatprep.subr.mxu0 %v2410
    %2423 = vmatpush1.msra.mxu0 %v2409
    %2424 = vmatprep.subr.mxu0 %v2407
    %2425 = vmatpush1.msra.mxu0 %v2406
    %2426 = vmatprep.subr.mxu0 %v2404
    %2427 = vmatpush1.msra.mxu0 %v2403
    %2428 = vmatprep.subr.mxu0 %v2401
    %2429 = vmatpush1.msra.mxu0 %v2400
    %2430 = vmatprep.subr.mxu0 %v2398
    %2431 = vmatpush1.msra.mxu0 %v2397
    %2432 = vmatprep.subr.mxu0 %v2395
    %2433 = vmatpush1.msra.mxu0 %v2394
    %2434 = vmatprep.subr.mxu0 %v2392
    %2435 = vmatpush1.msra.mxu0 %v2391
    %2436 = vmatprep.subr.mxu0 %v2389
    %2437 = vmatpush1.msra.mxu0 %v2388
    %2438 = vmatprep.subr.mxu0 %v2386
    %2439 = vmatpush1.msra.mxu0 %v2385
    %2440 = vmatprep.subr.mxu0 %v2383
    %2441 = vmatpush1.msra.mxu0 %v2382
    %2442 = vmatprep.subr.mxu0 %v2380
    %2443 = vmatpush1.msra.mxu0 %v2379
    %2444 = vmatprep.subr.mxu0 %v2377
    %2445 = vmatpush1.msra.mxu0 %v2376
    %2446 = vmatprep.subr.mxu0 %v2374
    %2447 = vmatpush1.msra.mxu0 %v2373
    %2448 = vmatprep.subr.mxu0 %v2371
    %2449 = vmatpush1.msra.mxu0 %v2370
    %2450 = vmatprep.subr.mxu0 0.0
    %2451 = vmatpush2.msra.mxu0 0.0
    %2452 = vmatprep.subr.mxu0 0.0
    %2453 = vmatpush2.msra.mxu0 0.0
    %2454 = vmatprep.subr.mxu0 0.0
    %2455 = vmatpush2.msra.mxu0 0.0
    %2456 = vmatprep.subr.mxu0 0.0
    %2457 = vmatpush2.msra.mxu0 0.0
    %2458 = vmatprep.subr.mxu0 0.0
    %2459 = vmatpush2.msra.mxu0 0.0
    %2460 = vmatprep.subr.mxu0 0.0
    %2461 = vmatpush2.msra.mxu0 0.0
    %2462 = vmatprep.subr.mxu0 0.0
    %2463 = vmatpush2.msra.mxu0 0.0
    %2464 = vmatprep.subr.mxu0 0.0
    %2465 = vmatpush2.msra.mxu0 0.0
    %2466 = vmatprep.subr.mxu0 0.0
    %2467 = vmatpush2.msra.mxu0 0.0
    %2468 = vmatprep.subr.mxu0 0.0
    %2469 = vmatpush2.msra.mxu0 0.0
    %2470 = vmatprep.subr.mxu0 0.0
    %2471 = vmatpush2.msra.mxu0 0.0
    %2472 = vmatprep.subr.mxu0 0.0
    %2473 = vmatpush2.msra.mxu0 0.0
    %2474 = vmatprep.subr.mxu0 0.0
    %2475 = vmatpush2.msra.mxu0 0.0
    %2476 = vmatprep.subr.mxu0 0.0
    %2477 = vmatpush2.msra.mxu0 0.0
    %2478 = vmatprep.subr.mxu0 0.0
    %2479 = vmatpush2.msra.mxu0 0.0
    %2480 = vmatprep.subr.mxu0 0.0
    %2481 = vmatpush2.msra.mxu0 0.0
    %2482 = vmatprep.mubr.f32.mxu0 0.0
    %2483 = vmatmul.mubr.f32.gmra.mxu0 %v2349
    %v2484 = vpop.f32.mrf.mxu0
    %v2485 = vadd.f32 0.0, %v2484
    %v2486 = vpop.f32.mrf.mxu0
    %v2487 = vadd.f32 0.0, %v2486
    %2488 = vmatprep.mubr.f32.mxu0 0.0
    %2489 = vmatmul.mubr.f32.gmra.mxu0 %v2350
    %v2490 = vpop.f32.mrf.mxu0
    %v2491 = vadd.f32 0.0, %v2490
    %v2492 = vpop.f32.mrf.mxu0
    %v2493 = vadd.f32 0.0, %v2492
    %2494 = vmatprep.mubr.f32.mxu0 0.0
    %2495 = vmatmul.mubr.f32.gmra.mxu0 %v2351
    %v2496 = vpop.f32.mrf.mxu0
    %v2497 = vadd.f32 0.0, %v2496
    %v2498 = vpop.f32.mrf.mxu0
    %v2499 = vadd.f32 0.0, %v2498
    %2500 = vmatprep.mubr.f32.mxu0 0.0
    %2501 = vmatmul.mubr.f32.gmra.mxu0 %v2352
    %v2502 = vpop.f32.mrf.mxu0
    %v2503 = vadd.f32 0.0, %v2502
    %v2504 = vpop.f32.mrf.mxu0
    %v2505 = vadd.f32 0.0, %v2504
    %2506 = vdwg.mxu0
    %2507 = vmatprep.subr.mxu0 0.0
    %2508 = vmatpush1.msra.mxu0 %v2417
    %2509 = vmatprep.subr.mxu0 0.0
    %2510 = vmatpush1.msra.mxu0 %v2414
    %2511 = vmatprep.subr.mxu0 0.0
    %2512 = vmatpush1.msra.mxu0 %v2411
    %2513 = vmatprep.subr.mxu0 0.0
    %2514 = vmatpush1.msra.mxu0 %v2408
    %2515 = vmatprep.subr.mxu0 0.0
    %2516 = vmatpush1.msra.mxu0 %v2405
    %2517 = vmatprep.subr.mxu0 0.0
    %2518 = vmatpush1.msra.mxu0 %v2402
    %2519 = vmatprep.subr.mxu0 0.0
    %2520 = vmatpush1.msra.mxu0 %v2399
    %2521 = vmatprep.subr.mxu0 0.0
    %2522 = vmatpush1.msra.mxu0 %v2396
    %2523 = vmatprep.subr.mxu0 0.0
    %2524 = vmatpush1.msra.mxu0 %v2393
    %2525 = vmatprep.subr.mxu0 0.0
    %2526 = vmatpush1.msra.mxu0 %v2390
    %2527 = vmatprep.subr.mxu0 0.0
    %2528 = vmatpush1.msra.mxu0 %v2387
    %2529 = vmatprep.subr.mxu0 0.0
    %2530 = vmatpush1.msra.mxu0 %v2384
    %2531 = vmatprep.subr.mxu0 0.0
    %2532 = vmatpush1.msra.mxu0 %v2381
    %2533 = vmatprep.subr.mxu0 0.0
    %2534 = vmatpush1.msra.mxu0 %v2378
    %2535 = vmatprep.subr.mxu0 0.0
    %2536 = vmatpush1.msra.mxu0 %v2375
    %2537 = vmatprep.subr.mxu0 0.0
    %2538 = vmatpush1.msra.mxu0 %v2372
    %2539 = vmatprep.subr.mxu0 0.0
    %2540 = vmatpush2.msra.mxu0 0.0
    %2541 = vmatprep.subr.mxu0 0.0
    %2542 = vmatpush2.msra.mxu0 0.0
    %2543 = vmatprep.subr.mxu0 0.0
    %2544 = vmatpush2.msra.mxu0 0.0
    %2545 = vmatprep.subr.mxu0 0.0
    %2546 = vmatpush2.msra.mxu0 0.0
    %2547 = vmatprep.subr.mxu0 0.0
    %2548 = vmatpush2.msra.mxu0 0.0
    %2549 = vmatprep.subr.mxu0 0.0
    %2550 = vmatpush2.msra.mxu0 0.0
    %2551 = vmatprep.subr.mxu0 0.0
    %2552 = vmatpush2.msra.mxu0 0.0
    %2553 = vmatprep.subr.mxu0 0.0
    %2554 = vmatpush2.msra.mxu0 0.0
    %2555 = vmatprep.subr.mxu0 0.0
    %2556 = vmatpush2.msra.mxu0 0.0
    %2557 = vmatprep.subr.mxu0 0.0
    %2558 = vmatpush2.msra.mxu0 0.0
    %2559 = vmatprep.subr.mxu0 0.0
    %2560 = vmatpush2.msra.mxu0 0.0
    %2561 = vmatprep.subr.mxu0 0.0
    %2562 = vmatpush2.msra.mxu0 0.0
    %2563 = vmatprep.subr.mxu0 0.0
    %2564 = vmatpush2.msra.mxu0 0.0
    %2565 = vmatprep.subr.mxu0 0.0
    %2566 = vmatpush2.msra.mxu0 0.0
    %2567 = vmatprep.subr.mxu0 0.0
    %2568 = vmatpush2.msra.mxu0 0.0
    %2569 = vmatprep.subr.mxu0 0.0
    %2570 = vmatpush2.msra.mxu0 0.0
    %2571 = vmatprep.mubr.f32.mxu0 0.0
    %2572 = vmatmul.mubr.f32.gmra.mxu0 %v2349
    %v2573 = vpop.f32.mrf.mxu0
    %v2574 = vadd.f32 0.0, %v2573
    %v2575 = vpop.f32.mrf.mxu0
    %2576 = vmatprep.mubr.f32.mxu0 0.0
    %2577 = vmatmul.mubr.f32.gmra.mxu0 %v2350
    %v2578 = vpop.f32.mrf.mxu0
    %v2579 = vadd.f32 0.0, %v2578
    %v2580 = vpop.f32.mrf.mxu0
    %2581 = vmatprep.mubr.f32.mxu0 0.0
    %2582 = vmatmul.mubr.f32.gmra.mxu0 %v2351
    %v2583 = vpop.f32.mrf.mxu0
    %v2584 = vadd.f32 0.0, %v2583
    %v2585 = vpop.f32.mrf.mxu0
    %2586 = vmatprep.mubr.f32.mxu0 0.0
    %2587 = vmatmul.mubr.f32.gmra.mxu0 %v2352
    %v2588 = vpop.f32.mrf.mxu0
    %v2589 = vadd.f32 0.0, %v2588
    %v2590 = vpop.f32.mrf.mxu0
    %2591 = vdwg.mxu0
    %v2592 = vadd.f32 %v2358, %v2485
    %v2593 = vadd.f32 %v2361, %v2491
    %v2594 = vadd.f32 %v2364, %v2497
    %v2595 = vadd.f32 %v2367, %v2503
    %v2596 = vxor.u32 %v2592, 2147483648
    %v2597 = vxor.u32 %v2593, 2147483648
    %v2598 = vxor.u32 %v2594, 2147483648
    %v2599 = vxor.u32 %v2595, 2147483648
    %v2600 = vmul.f32 %v2596, 1.442695
    %v2601 = vpow.pop %v2600
    %v2602 = vmul.f32 %v2597, 1.442695
    %v2603 = vpow.pop %v2602
    %v2604 = vmul.f32 %v2598, 1.442695
    %v2605 = vpow.pop %v2604
    %v2606 = vmul.f32 %v2599, 1.442695
    %v2607 = vpow.pop %v2606
    %v2608 = vadd.f32 %v2601, 1.0
    %v2609 = vadd.f32 %v2603, 1.0
    %v2610 = vadd.f32 %v2605, 1.0
    %v2611 = vadd.f32 %v2607, 1.0
    %v2612 = vrcp.pop %v2608
    %v2613 = vmul.f32 1.0, %v2612
    %v2614 = vrcp.pop %v2609
    %v2615 = vmul.f32 1.0, %v2614
    %v2616 = vrcp.pop %v2610
    %v2617 = vmul.f32 1.0, %v2616
    %v2618 = vrcp.pop %v2611
    %v2619 = vmul.f32 1.0, %v2618
    %v2620 = vadd.f32 %v2359, %v2487
    %v2621 = vadd.f32 %v2362, %v2493
    %v2622 = vadd.f32 %v2365, %v2499
    %v2623 = vadd.f32 %v2368, %v2505
    %v2624 = vxor.u32 %v2620, 2147483648
    %v2625 = vxor.u32 %v2621, 2147483648
    %v2626 = vxor.u32 %v2622, 2147483648
    %v2627 = vxor.u32 %v2623, 2147483648
    %v2628 = vmul.f32 %v2624, 1.442695
    %v2629 = vpow.pop %v2628
    %v2630 = vmul.f32 %v2625, 1.442695
    %v2631 = vpow.pop %v2630
    %v2632 = vmul.f32 %v2626, 1.442695
    %v2633 = vpow.pop %v2632
    %v2634 = vmul.f32 %v2627, 1.442695
    %v2635 = vpow.pop %v2634
    %v2636 = vadd.f32 %v2629, 1.0
    %v2637 = vadd.f32 %v2631, 1.0
    %v2638 = vadd.f32 %v2633, 1.0
    %v2639 = vadd.f32 %v2635, 1.0
    %v2640 = vrcp.pop %v2636
    %v2641 = vmul.f32 1.0, %v2640
    %v2642 = vrcp.pop %v2637
    %v2643 = vmul.f32 1.0, %v2642
    %v2644 = vrcp.pop %v2638
    %v2645 = vmul.f32 1.0, %v2644
    %v2646 = vrcp.pop %v2639
    %v2647 = vmul.f32 1.0, %v2646
    %v2648 = vadd.f32 %v2574, %v67
    %v2649 = vadd.f32 %v2579, %v67
    %v2650 = vadd.f32 %v2584, %v67
    %v2651 = vadd.f32 %v2589, %v67
    %v2652 = vmul.f32 %v2613, %v2648
    %v2653 = vmul.f32 %v2615, %v2649
    %v2654 = vmul.f32 %v2617, %v2650
    %v2655 = vmul.f32 %v2619, %v2651
    %v2656 = vadd.f32 %v2360, %v2652
    %v2657 = vadd.f32 %v2363, %v2653
    %v2658 = vadd.f32 %v2366, %v2654
    %v2659 = vadd.f32 %v2369, %v2655
    %v2660 = vtanh.pop %v2656
    %v2661 = vtanh.pop %v2657
    %v2662 = vtanh.pop %v2658
    %v2663 = vtanh.pop %v2659
    %v2664 = vsub.f32 1.0, %v2641
    %v2665 = vsub.f32 1.0, %v2643
    %v2666 = vsub.f32 1.0, %v2645
    %v2667 = vsub.f32 1.0, %v2647
    %v2668 = vmul.f32 %v2664, %v2660
    %v2669 = vmul.f32 %v2665, %v2661
    %v2670 = vmul.f32 %v2666, %v2662
    %v2671 = vmul.f32 %v2667, %v2663
    %v2672 = vmul.f32 %v2641, %v2349
    %v2673 = vmul.f32 %v2643, %v2350
    %v2674 = vmul.f32 %v2645, %v2351
    %v2675 = vmul.f32 %v2647, %v2352
    %v2676 = vadd.f32 %v2668, %v2672
    %v2677 = vadd.f32 %v2669, %v2673
    %v2678 = vadd.f32 %v2670, %v2674
    %v2679 = vadd.f32 %v2671, %v2675
    %2680 = vst [vmem:[#allocation2 + $0x38] sm:$0xff] %v2676
    %2681 = vst [vmem:[#allocation2 + $0x98] sm:$0xff] %v2677
    %2682 = vst [vmem:[#allocation2 + $0xf8] sm:$0xff] %v2678
    %2683 = vst [vmem:[#allocation2 + $0x158] sm:$0xff] %v2679
    %s2684 = scalar_lea.vmem [#allocation3], 768
    %v2685 = vld [vmem:[%s2684] sm:$0xff]
    %v2686 = vld [vmem:[%s2684 + $0x8] sm:$0xff]
    %v2687 = vld [vmem:[%s2684 + $0x10] sm:$0xff]
    %v2688 = vld [vmem:[%s2684 + $0x18] sm:$0xff]
    %v2689 = vld [vmem:[%s2684 + $0x20] sm:$0xff]
    %v2690 = vld [vmem:[%s2684 + $0x28] sm:$0xff]
    %v2691 = vld [vmem:[%s2684 + $0x30] sm:$0xff]
    %v2692 = vld [vmem:[%s2684 + $0x38] sm:$0xff]
    %v2693 = vld [vmem:[%s2684 + $0x40] sm:$0xff]
    %v2694 = vld [vmem:[%s2684 + $0x48] sm:$0xff]
    %v2695 = vld [vmem:[%s2684 + $0x50] sm:$0xff]
    %v2696 = vld [vmem:[%s2684 + $0x58] sm:$0xff]
    %v2697 = vld [vmem:[#allocation6] sm:$0xff]
    %v2698 = vld [vmem:[#allocation6 + $0x8] sm:$0xff]
    %v2699 = vld [vmem:[#allocation6 + $0x10] sm:$0xff]
    %v2700 = vld [vmem:[#allocation6 + $0x18] sm:$0xff]
    %v2701 = vld [vmem:[#allocation6 + $0x20] sm:$0xff]
    %v2702 = vld [vmem:[#allocation6 + $0x28] sm:$0xff]
    %v2703 = vld [vmem:[#allocation6 + $0x30] sm:$0xff]
    %v2704 = vld [vmem:[#allocation6 + $0x38] sm:$0xff]
    %v2705 = vld [vmem:[#allocation6 + $0x40] sm:$0xff]
    %v2706 = vld [vmem:[#allocation6 + $0x48] sm:$0xff]
    %v2707 = vld [vmem:[#allocation6 + $0x50] sm:$0xff]
    %v2708 = vld [vmem:[#allocation6 + $0x58] sm:$0xff]
    %v2709 = vld [vmem:[#allocation6 + $0x60] sm:$0xff]
    %v2710 = vld [vmem:[#allocation6 + $0x68] sm:$0xff]
    %v2711 = vld [vmem:[#allocation6 + $0x70] sm:$0xff]
    %v2712 = vld [vmem:[#allocation6 + $0x78] sm:$0xff]
    %v2713 = vld [vmem:[#allocation6 + $0x80] sm:$0xff]
    %v2714 = vld [vmem:[#allocation6 + $0x88] sm:$0xff]
    %v2715 = vld [vmem:[#allocation6 + $0x90] sm:$0xff]
    %v2716 = vld [vmem:[#allocation6 + $0x98] sm:$0xff]
    %v2717 = vld [vmem:[#allocation6 + $0xa0] sm:$0xff]
    %v2718 = vld [vmem:[#allocation6 + $0xa8] sm:$0xff]
    %v2719 = vld [vmem:[#allocation6 + $0xb0] sm:$0xff]
    %v2720 = vld [vmem:[#allocation6 + $0xb8] sm:$0xff]
    %v2721 = vld [vmem:[#allocation6 + $0xc0] sm:$0xff]
    %v2722 = vld [vmem:[#allocation6 + $0xc8] sm:$0xff]
    %v2723 = vld [vmem:[#allocation6 + $0xd0] sm:$0xff]
    %v2724 = vld [vmem:[#allocation6 + $0xd8] sm:$0xff]
    %v2725 = vld [vmem:[#allocation6 + $0xe0] sm:$0xff]
    %v2726 = vld [vmem:[#allocation6 + $0xe8] sm:$0xff]
    %v2727 = vld [vmem:[#allocation6 + $0xf0] sm:$0xff]
    %v2728 = vld [vmem:[#allocation6 + $0xf8] sm:$0xff]
    %v2729 = vld [vmem:[#allocation6 + $0x100] sm:$0xff]
    %v2730 = vld [vmem:[#allocation6 + $0x108] sm:$0xff]
    %v2731 = vld [vmem:[#allocation6 + $0x110] sm:$0xff]
    %v2732 = vld [vmem:[#allocation6 + $0x118] sm:$0xff]
    %v2733 = vld [vmem:[#allocation6 + $0x120] sm:$0xff]
    %v2734 = vld [vmem:[#allocation6 + $0x128] sm:$0xff]
    %v2735 = vld [vmem:[#allocation6 + $0x130] sm:$0xff]
    %v2736 = vld [vmem:[#allocation6 + $0x138] sm:$0xff]
    %v2737 = vld [vmem:[#allocation6 + $0x140] sm:$0xff]
    %v2738 = vld [vmem:[#allocation6 + $0x148] sm:$0xff]
    %v2739 = vld [vmem:[#allocation6 + $0x150] sm:$0xff]
    %v2740 = vld [vmem:[#allocation6 + $0x158] sm:$0xff]
    %v2741 = vld [vmem:[#allocation6 + $0x160] sm:$0xff]
    %v2742 = vld [vmem:[#allocation6 + $0x168] sm:$0xff]
    %v2743 = vld [vmem:[#allocation6 + $0x170] sm:$0xff]
    %v2744 = vld [vmem:[#allocation6 + $0x178] sm:$0xff]
    %2745 = vmatprep.subr.mxu0 %v2743
    %2746 = vmatpush1.msra.mxu0 %v2742
    %2747 = vmatprep.subr.mxu0 %v2740
    %2748 = vmatpush1.msra.mxu0 %v2739
    %2749 = vmatprep.subr.mxu0 %v2737
    %2750 = vmatpush1.msra.mxu0 %v2736
    %2751 = vmatprep.subr.mxu0 %v2734
    %2752 = vmatpush1.msra.mxu0 %v2733
    %2753 = vmatprep.subr.mxu0 %v2731
    %2754 = vmatpush1.msra.mxu0 %v2730
    %2755 = vmatprep.subr.mxu0 %v2728
    %2756 = vmatpush1.msra.mxu0 %v2727
    %2757 = vmatprep.subr.mxu0 %v2725
    %2758 = vmatpush1.msra.mxu0 %v2724
    %2759 = vmatprep.subr.mxu0 %v2722
    %2760 = vmatpush1.msra.mxu0 %v2721
    %2761 = vmatprep.subr.mxu0 %v2719
    %2762 = vmatpush1.msra.mxu0 %v2718
    %2763 = vmatprep.subr.mxu0 %v2716
    %2764 = vmatpush1.msra.mxu0 %v2715
    %2765 = vmatprep.subr.mxu0 %v2713
    %2766 = vmatpush1.msra.mxu0 %v2712
    %2767 = vmatprep.subr.mxu0 %v2710
    %2768 = vmatpush1.msra.mxu0 %v2709
    %2769 = vmatprep.subr.mxu0 %v2707
    %2770 = vmatpush1.msra.mxu0 %v2706
    %2771 = vmatprep.subr.mxu0 %v2704
    %2772 = vmatpush1.msra.mxu0 %v2703
    %2773 = vmatprep.subr.mxu0 %v2701
    %2774 = vmatpush1.msra.mxu0 %v2700
    %2775 = vmatprep.subr.mxu0 %v2698
    %2776 = vmatpush1.msra.mxu0 %v2697
    %2777 = vmatprep.subr.mxu0 0.0
    %2778 = vmatpush2.msra.mxu0 0.0
    %2779 = vmatprep.subr.mxu0 0.0
    %2780 = vmatpush2.msra.mxu0 0.0
    %2781 = vmatprep.subr.mxu0 0.0
    %2782 = vmatpush2.msra.mxu0 0.0
    %2783 = vmatprep.subr.mxu0 0.0
    %2784 = vmatpush2.msra.mxu0 0.0
    %2785 = vmatprep.subr.mxu0 0.0
    %2786 = vmatpush2.msra.mxu0 0.0
    %2787 = vmatprep.subr.mxu0 0.0
    %2788 = vmatpush2.msra.mxu0 0.0
    %2789 = vmatprep.subr.mxu0 0.0
    %2790 = vmatpush2.msra.mxu0 0.0
    %2791 = vmatprep.subr.mxu0 0.0
    %2792 = vmatpush2.msra.mxu0 0.0
    %2793 = vmatprep.subr.mxu0 0.0
    %2794 = vmatpush2.msra.mxu0 0.0
    %2795 = vmatprep.subr.mxu0 0.0
    %2796 = vmatpush2.msra.mxu0 0.0
    %2797 = vmatprep.subr.mxu0 0.0
    %2798 = vmatpush2.msra.mxu0 0.0
    %2799 = vmatprep.subr.mxu0 0.0
    %2800 = vmatpush2.msra.mxu0 0.0
    %2801 = vmatprep.subr.mxu0 0.0
    %2802 = vmatpush2.msra.mxu0 0.0
    %2803 = vmatprep.subr.mxu0 0.0
    %2804 = vmatpush2.msra.mxu0 0.0
    %2805 = vmatprep.subr.mxu0 0.0
    %2806 = vmatpush2.msra.mxu0 0.0
    %2807 = vmatprep.subr.mxu0 0.0
    %2808 = vmatpush2.msra.mxu0 0.0
    %2809 = vmatprep.mubr.f32.mxu0 0.0
    %2810 = vmatmul.mubr.f32.gmra.mxu0 %v2676
    %v2811 = vpop.f32.mrf.mxu0
    %v2812 = vadd.f32 0.0, %v2811
    %v2813 = vpop.f32.mrf.mxu0
    %v2814 = vadd.f32 0.0, %v2813
    %2815 = vmatprep.mubr.f32.mxu0 0.0
    %2816 = vmatmul.mubr.f32.gmra.mxu0 %v2677
    %v2817 = vpop.f32.mrf.mxu0
    %v2818 = vadd.f32 0.0, %v2817
    %v2819 = vpop.f32.mrf.mxu0
    %v2820 = vadd.f32 0.0, %v2819
    %2821 = vmatprep.mubr.f32.mxu0 0.0
    %2822 = vmatmul.mubr.f32.gmra.mxu0 %v2678
    %v2823 = vpop.f32.mrf.mxu0
    %v2824 = vadd.f32 0.0, %v2823
    %v2825 = vpop.f32.mrf.mxu0
    %v2826 = vadd.f32 0.0, %v2825
    %2827 = vmatprep.mubr.f32.mxu0 0.0
    %2828 = vmatmul.mubr.f32.gmra.mxu0 %v2679
    %v2829 = vpop.f32.mrf.mxu0
    %v2830 = vadd.f32 0.0, %v2829
    %v2831 = vpop.f32.mrf.mxu0
    %v2832 = vadd.f32 0.0, %v2831
    %2833 = vdwg.mxu0
    %2834 = vmatprep.subr.mxu0 0.0
    %2835 = vmatpush1.msra.mxu0 %v2744
    %2836 = vmatprep.subr.mxu0 0.0
    %2837 = vmatpush1.msra.mxu0 %v2741
    %2838 = vmatprep.subr.mxu0 0.0
    %2839 = vmatpush1.msra.mxu0 %v2738
    %2840 = vmatprep.subr.mxu0 0.0
    %2841 = vmatpush1.msra.mxu0 %v2735
    %2842 = vmatprep.subr.mxu0 0.0
    %2843 = vmatpush1.msra.mxu0 %v2732
    %2844 = vmatprep.subr.mxu0 0.0
    %2845 = vmatpush1.msra.mxu0 %v2729
    %2846 = vmatprep.subr.mxu0 0.0
    %2847 = vmatpush1.msra.mxu0 %v2726
    %2848 = vmatprep.subr.mxu0 0.0
    %2849 = vmatpush1.msra.mxu0 %v2723
    %2850 = vmatprep.subr.mxu0 0.0
    %2851 = vmatpush1.msra.mxu0 %v2720
    %2852 = vmatprep.subr.mxu0 0.0
    %2853 = vmatpush1.msra.mxu0 %v2717
    %2854 = vmatprep.subr.mxu0 0.0
    %2855 = vmatpush1.msra.mxu0 %v2714
    %2856 = vmatprep.subr.mxu0 0.0
    %2857 = vmatpush1.msra.mxu0 %v2711
    %2858 = vmatprep.subr.mxu0 0.0
    %2859 = vmatpush1.msra.mxu0 %v2708
    %2860 = vmatprep.subr.mxu0 0.0
    %2861 = vmatpush1.msra.mxu0 %v2705
    %2862 = vmatprep.subr.mxu0 0.0
    %2863 = vmatpush1.msra.mxu0 %v2702
    %2864 = vmatprep.subr.mxu0 0.0
    %2865 = vmatpush1.msra.mxu0 %v2699
    %2866 = vmatprep.subr.mxu0 0.0
    %2867 = vmatpush2.msra.mxu0 0.0
    %2868 = vmatprep.subr.mxu0 0.0
    %2869 = vmatpush2.msra.mxu0 0.0
    %2870 = vmatprep.subr.mxu0 0.0
    %2871 = vmatpush2.msra.mxu0 0.0
    %2872 = vmatprep.subr.mxu0 0.0
    %2873 = vmatpush2.msra.mxu0 0.0
    %2874 = vmatprep.subr.mxu0 0.0
    %2875 = vmatpush2.msra.mxu0 0.0
    %2876 = vmatprep.subr.mxu0 0.0
    %2877 = vmatpush2.msra.mxu0 0.0
    %2878 = vmatprep.subr.mxu0 0.0
    %2879 = vmatpush2.msra.mxu0 0.0
    %2880 = vmatprep.subr.mxu0 0.0
    %2881 = vmatpush2.msra.mxu0 0.0
    %2882 = vmatprep.subr.mxu0 0.0
    %2883 = vmatpush2.msra.mxu0 0.0
    %2884 = vmatprep.subr.mxu0 0.0
    %2885 = vmatpush2.msra.mxu0 0.0
    %2886 = vmatprep.subr.mxu0 0.0
    %2887 = vmatpush2.msra.mxu0 0.0
    %2888 = vmatprep.subr.mxu0 0.0
    %2889 = vmatpush2.msra.mxu0 0.0
    %2890 = vmatprep.subr.mxu0 0.0
    %2891 = vmatpush2.msra.mxu0 0.0
    %2892 = vmatprep.subr.mxu0 0.0
    %2893 = vmatpush2.msra.mxu0 0.0
    %2894 = vmatprep.subr.mxu0 0.0
    %2895 = vmatpush2.msra.mxu0 0.0
    %2896 = vmatprep.subr.mxu0 0.0
    %2897 = vmatpush2.msra.mxu0 0.0
    %2898 = vmatprep.mubr.f32.mxu0 0.0
    %2899 = vmatmul.mubr.f32.gmra.mxu0 %v2676
    %v2900 = vpop.f32.mrf.mxu0
    %v2901 = vadd.f32 0.0, %v2900
    %v2902 = vpop.f32.mrf.mxu0
    %2903 = vmatprep.mubr.f32.mxu0 0.0
    %2904 = vmatmul.mubr.f32.gmra.mxu0 %v2677
    %v2905 = vpop.f32.mrf.mxu0
    %v2906 = vadd.f32 0.0, %v2905
    %v2907 = vpop.f32.mrf.mxu0
    %2908 = vmatprep.mubr.f32.mxu0 0.0
    %2909 = vmatmul.mubr.f32.gmra.mxu0 %v2678
    %v2910 = vpop.f32.mrf.mxu0
    %v2911 = vadd.f32 0.0, %v2910
    %v2912 = vpop.f32.mrf.mxu0
    %2913 = vmatprep.mubr.f32.mxu0 0.0
    %2914 = vmatmul.mubr.f32.gmra.mxu0 %v2679
    %v2915 = vpop.f32.mrf.mxu0
    %v2916 = vadd.f32 0.0, %v2915
    %v2917 = vpop.f32.mrf.mxu0
    %2918 = vdwg.mxu0
    %v2919 = vadd.f32 %v2685, %v2812
    %v2920 = vadd.f32 %v2688, %v2818
    %v2921 = vadd.f32 %v2691, %v2824
    %v2922 = vadd.f32 %v2694, %v2830
    %v2923 = vxor.u32 %v2919, 2147483648
    %v2924 = vxor.u32 %v2920, 2147483648
    %v2925 = vxor.u32 %v2921, 2147483648
    %v2926 = vxor.u32 %v2922, 2147483648
    %v2927 = vmul.f32 %v2923, 1.442695
    %v2928 = vpow.pop %v2927
    %v2929 = vmul.f32 %v2924, 1.442695
    %v2930 = vpow.pop %v2929
    %v2931 = vmul.f32 %v2925, 1.442695
    %v2932 = vpow.pop %v2931
    %v2933 = vmul.f32 %v2926, 1.442695
    %v2934 = vpow.pop %v2933
    %v2935 = vadd.f32 %v2928, 1.0
    %v2936 = vadd.f32 %v2930, 1.0
    %v2937 = vadd.f32 %v2932, 1.0
    %v2938 = vadd.f32 %v2934, 1.0
    %v2939 = vrcp.pop %v2935
    %v2940 = vmul.f32 1.0, %v2939
    %v2941 = vrcp.pop %v2936
    %v2942 = vmul.f32 1.0, %v2941
    %v2943 = vrcp.pop %v2937
    %v2944 = vmul.f32 1.0, %v2943
    %v2945 = vrcp.pop %v2938
    %v2946 = vmul.f32 1.0, %v2945
    %v2947 = vadd.f32 %v2686, %v2814
    %v2948 = vadd.f32 %v2689, %v2820
    %v2949 = vadd.f32 %v2692, %v2826
    %v2950 = vadd.f32 %v2695, %v2832
    %v2951 = vxor.u32 %v2947, 2147483648
    %v2952 = vxor.u32 %v2948, 2147483648
    %v2953 = vxor.u32 %v2949, 2147483648
    %v2954 = vxor.u32 %v2950, 2147483648
    %v2955 = vmul.f32 %v2951, 1.442695
    %v2956 = vpow.pop %v2955
    %v2957 = vmul.f32 %v2952, 1.442695
    %v2958 = vpow.pop %v2957
    %v2959 = vmul.f32 %v2953, 1.442695
    %v2960 = vpow.pop %v2959
    %v2961 = vmul.f32 %v2954, 1.442695
    %v2962 = vpow.pop %v2961
    %v2963 = vadd.f32 %v2956, 1.0
    %v2964 = vadd.f32 %v2958, 1.0
    %v2965 = vadd.f32 %v2960, 1.0
    %v2966 = vadd.f32 %v2962, 1.0
    %v2967 = vrcp.pop %v2963
    %v2968 = vmul.f32 1.0, %v2967
    %v2969 = vrcp.pop %v2964
    %v2970 = vmul.f32 1.0, %v2969
    %v2971 = vrcp.pop %v2965
    %v2972 = vmul.f32 1.0, %v2971
    %v2973 = vrcp.pop %v2966
    %v2974 = vmul.f32 1.0, %v2973
    %v2975 = vadd.f32 %v2901, %v67
    %v2976 = vadd.f32 %v2906, %v67
    %v2977 = vadd.f32 %v2911, %v67
    %v2978 = vadd.f32 %v2916, %v67
    %v2979 = vmul.f32 %v2940, %v2975
    %v2980 = vmul.f32 %v2942, %v2976
    %v2981 = vmul.f32 %v2944, %v2977
    %v2982 = vmul.f32 %v2946, %v2978
    %v2983 = vadd.f32 %v2687, %v2979
    %v2984 = vadd.f32 %v2690, %v2980
    %v2985 = vadd.f32 %v2693, %v2981
    %v2986 = vadd.f32 %v2696, %v2982
    %v2987 = vtanh.pop %v2983
    %v2988 = vtanh.pop %v2984
    %v2989 = vtanh.pop %v2985
    %v2990 = vtanh.pop %v2986
    %v2991 = vsub.f32 1.0, %v2968
    %v2992 = vsub.f32 1.0, %v2970
    %v2993 = vsub.f32 1.0, %v2972
    %v2994 = vsub.f32 1.0, %v2974
    %v2995 = vmul.f32 %v2991, %v2987
    %v2996 = vmul.f32 %v2992, %v2988
    %v2997 = vmul.f32 %v2993, %v2989
    %v2998 = vmul.f32 %v2994, %v2990
    %v2999 = vmul.f32 %v2968, %v2676
    %v3000 = vmul.f32 %v2970, %v2677
    %v3001 = vmul.f32 %v2972, %v2678
    %v3002 = vmul.f32 %v2974, %v2679
    %v3003 = vadd.f32 %v2995, %v2999
    %v3004 = vadd.f32 %v2996, %v3000
    %v3005 = vadd.f32 %v2997, %v3001
    %v3006 = vadd.f32 %v2998, %v3002
    %3007 = vst [vmem:[#allocation2 + $0x40] sm:$0xff] %v3003
    %3008 = vst [vmem:[#allocation2 + $0xa0] sm:$0xff] %v3004
    %3009 = vst [vmem:[#allocation2 + $0x100] sm:$0xff] %v3005
    %3010 = vst [vmem:[#allocation2 + $0x160] sm:$0xff] %v3006
    %s3011 = scalar_lea.vmem [#allocation3], 864
    %v3012 = vld [vmem:[%s3011] sm:$0xff]
    %v3013 = vld [vmem:[%s3011 + $0x8] sm:$0xff]
    %v3014 = vld [vmem:[%s3011 + $0x10] sm:$0xff]
    %v3015 = vld [vmem:[%s3011 + $0x18] sm:$0xff]
    %v3016 = vld [vmem:[%s3011 + $0x20] sm:$0xff]
    %v3017 = vld [vmem:[%s3011 + $0x28] sm:$0xff]
    %v3018 = vld [vmem:[%s3011 + $0x30] sm:$0xff]
    %v3019 = vld [vmem:[%s3011 + $0x38] sm:$0xff]
    %v3020 = vld [vmem:[%s3011 + $0x40] sm:$0xff]
    %v3021 = vld [vmem:[%s3011 + $0x48] sm:$0xff]
    %v3022 = vld [vmem:[%s3011 + $0x50] sm:$0xff]
    %v3023 = vld [vmem:[%s3011 + $0x58] sm:$0xff]
    %v3024 = vld [vmem:[#allocation6] sm:$0xff]
    %v3025 = vld [vmem:[#allocation6 + $0x8] sm:$0xff]
    %v3026 = vld [vmem:[#allocation6 + $0x10] sm:$0xff]
    %v3027 = vld [vmem:[#allocation6 + $0x18] sm:$0xff]
    %v3028 = vld [vmem:[#allocation6 + $0x20] sm:$0xff]
    %v3029 = vld [vmem:[#allocation6 + $0x28] sm:$0xff]
    %v3030 = vld [vmem:[#allocation6 + $0x30] sm:$0xff]
    %v3031 = vld [vmem:[#allocation6 + $0x38] sm:$0xff]
    %v3032 = vld [vmem:[#allocation6 + $0x40] sm:$0xff]
    %v3033 = vld [vmem:[#allocation6 + $0x48] sm:$0xff]
    %v3034 = vld [vmem:[#allocation6 + $0x50] sm:$0xff]
    %v3035 = vld [vmem:[#allocation6 + $0x58] sm:$0xff]
    %v3036 = vld [vmem:[#allocation6 + $0x60] sm:$0xff]
    %v3037 = vld [vmem:[#allocation6 + $0x68] sm:$0xff]
    %v3038 = vld [vmem:[#allocation6 + $0x70] sm:$0xff]
    %v3039 = vld [vmem:[#allocation6 + $0x78] sm:$0xff]
    %v3040 = vld [vmem:[#allocation6 + $0x80] sm:$0xff]
    %v3041 = vld [vmem:[#allocation6 + $0x88] sm:$0xff]
    %v3042 = vld [vmem:[#allocation6 + $0x90] sm:$0xff]
    %v3043 = vld [vmem:[#allocation6 + $0x98] sm:$0xff]
    %v3044 = vld [vmem:[#allocation6 + $0xa0] sm:$0xff]
    %v3045 = vld [vmem:[#allocation6 + $0xa8] sm:$0xff]
    %v3046 = vld [vmem:[#allocation6 + $0xb0] sm:$0xff]
    %v3047 = vld [vmem:[#allocation6 + $0xb8] sm:$0xff]
    %v3048 = vld [vmem:[#allocation6 + $0xc0] sm:$0xff]
    %v3049 = vld [vmem:[#allocation6 + $0xc8] sm:$0xff]
    %v3050 = vld [vmem:[#allocation6 + $0xd0] sm:$0xff]
    %v3051 = vld [vmem:[#allocation6 + $0xd8] sm:$0xff]
    %v3052 = vld [vmem:[#allocation6 + $0xe0] sm:$0xff]
    %v3053 = vld [vmem:[#allocation6 + $0xe8] sm:$0xff]
    %v3054 = vld [vmem:[#allocation6 + $0xf0] sm:$0xff]
    %v3055 = vld [vmem:[#allocation6 + $0xf8] sm:$0xff]
    %v3056 = vld [vmem:[#allocation6 + $0x100] sm:$0xff]
    %v3057 = vld [vmem:[#allocation6 + $0x108] sm:$0xff]
    %v3058 = vld [vmem:[#allocation6 + $0x110] sm:$0xff]
    %v3059 = vld [vmem:[#allocation6 + $0x118] sm:$0xff]
    %v3060 = vld [vmem:[#allocation6 + $0x120] sm:$0xff]
    %v3061 = vld [vmem:[#allocation6 + $0x128] sm:$0xff]
    %v3062 = vld [vmem:[#allocation6 + $0x130] sm:$0xff]
    %v3063 = vld [vmem:[#allocation6 + $0x138] sm:$0xff]
    %v3064 = vld [vmem:[#allocation6 + $0x140] sm:$0xff]
    %v3065 = vld [vmem:[#allocation6 + $0x148] sm:$0xff]
    %v3066 = vld [vmem:[#allocation6 + $0x150] sm:$0xff]
    %v3067 = vld [vmem:[#allocation6 + $0x158] sm:$0xff]
    %v3068 = vld [vmem:[#allocation6 + $0x160] sm:$0xff]
    %v3069 = vld [vmem:[#allocation6 + $0x168] sm:$0xff]
    %v3070 = vld [vmem:[#allocation6 + $0x170] sm:$0xff]
    %v3071 = vld [vmem:[#allocation6 + $0x178] sm:$0xff]
    %3072 = vmatprep.subr.mxu0 %v3070
    %3073 = vmatpush1.msra.mxu0 %v3069
    %3074 = vmatprep.subr.mxu0 %v3067
    %3075 = vmatpush1.msra.mxu0 %v3066
    %3076 = vmatprep.subr.mxu0 %v3064
    %3077 = vmatpush1.msra.mxu0 %v3063
    %3078 = vmatprep.subr.mxu0 %v3061
    %3079 = vmatpush1.msra.mxu0 %v3060
    %3080 = vmatprep.subr.mxu0 %v3058
    %3081 = vmatpush1.msra.mxu0 %v3057
    %3082 = vmatprep.subr.mxu0 %v3055
    %3083 = vmatpush1.msra.mxu0 %v3054
    %3084 = vmatprep.subr.mxu0 %v3052
    %3085 = vmatpush1.msra.mxu0 %v3051
    %3086 = vmatprep.subr.mxu0 %v3049
    %3087 = vmatpush1.msra.mxu0 %v3048
    %3088 = vmatprep.subr.mxu0 %v3046
    %3089 = vmatpush1.msra.mxu0 %v3045
    %3090 = vmatprep.subr.mxu0 %v3043
    %3091 = vmatpush1.msra.mxu0 %v3042
    %3092 = vmatprep.subr.mxu0 %v3040
    %3093 = vmatpush1.msra.mxu0 %v3039
    %3094 = vmatprep.subr.mxu0 %v3037
    %3095 = vmatpush1.msra.mxu0 %v3036
    %3096 = vmatprep.subr.mxu0 %v3034
    %3097 = vmatpush1.msra.mxu0 %v3033
    %3098 = vmatprep.subr.mxu0 %v3031
    %3099 = vmatpush1.msra.mxu0 %v3030
    %3100 = vmatprep.subr.mxu0 %v3028
    %3101 = vmatpush1.msra.mxu0 %v3027
    %3102 = vmatprep.subr.mxu0 %v3025
    %3103 = vmatpush1.msra.mxu0 %v3024
    %3104 = vmatprep.subr.mxu0 0.0
    %3105 = vmatpush2.msra.mxu0 0.0
    %3106 = vmatprep.subr.mxu0 0.0
    %3107 = vmatpush2.msra.mxu0 0.0
    %3108 = vmatprep.subr.mxu0 0.0
    %3109 = vmatpush2.msra.mxu0 0.0
    %3110 = vmatprep.subr.mxu0 0.0
    %3111 = vmatpush2.msra.mxu0 0.0
    %3112 = vmatprep.subr.mxu0 0.0
    %3113 = vmatpush2.msra.mxu0 0.0
    %3114 = vmatprep.subr.mxu0 0.0
    %3115 = vmatpush2.msra.mxu0 0.0
    %3116 = vmatprep.subr.mxu0 0.0
    %3117 = vmatpush2.msra.mxu0 0.0
    %3118 = vmatprep.subr.mxu0 0.0
    %3119 = vmatpush2.msra.mxu0 0.0
    %3120 = vmatprep.subr.mxu0 0.0
    %3121 = vmatpush2.msra.mxu0 0.0
    %3122 = vmatprep.subr.mxu0 0.0
    %3123 = vmatpush2.msra.mxu0 0.0
    %3124 = vmatprep.subr.mxu0 0.0
    %3125 = vmatpush2.msra.mxu0 0.0
    %3126 = vmatprep.subr.mxu0 0.0
    %3127 = vmatpush2.msra.mxu0 0.0
    %3128 = vmatprep.subr.mxu0 0.0
    %3129 = vmatpush2.msra.mxu0 0.0
    %3130 = vmatprep.subr.mxu0 0.0
    %3131 = vmatpush2.msra.mxu0 0.0
    %3132 = vmatprep.subr.mxu0 0.0
    %3133 = vmatpush2.msra.mxu0 0.0
    %3134 = vmatprep.subr.mxu0 0.0
    %3135 = vmatpush2.msra.mxu0 0.0
    %3136 = vmatprep.mubr.f32.mxu0 0.0
    %3137 = vmatmul.mubr.f32.gmra.mxu0 %v3003
    %v3138 = vpop.f32.mrf.mxu0
    %v3139 = vadd.f32 0.0, %v3138
    %v3140 = vpop.f32.mrf.mxu0
    %v3141 = vadd.f32 0.0, %v3140
    %3142 = vmatprep.mubr.f32.mxu0 0.0
    %3143 = vmatmul.mubr.f32.gmra.mxu0 %v3004
    %v3144 = vpop.f32.mrf.mxu0
    %v3145 = vadd.f32 0.0, %v3144
    %v3146 = vpop.f32.mrf.mxu0
    %v3147 = vadd.f32 0.0, %v3146
    %3148 = vmatprep.mubr.f32.mxu0 0.0
    %3149 = vmatmul.mubr.f32.gmra.mxu0 %v3005
    %v3150 = vpop.f32.mrf.mxu0
    %v3151 = vadd.f32 0.0, %v3150
    %v3152 = vpop.f32.mrf.mxu0
    %v3153 = vadd.f32 0.0, %v3152
    %3154 = vmatprep.mubr.f32.mxu0 0.0
    %3155 = vmatmul.mubr.f32.gmra.mxu0 %v3006
    %v3156 = vpop.f32.mrf.mxu0
    %v3157 = vadd.f32 0.0, %v3156
    %v3158 = vpop.f32.mrf.mxu0
    %v3159 = vadd.f32 0.0, %v3158
    %3160 = vdwg.mxu0
    %3161 = vmatprep.subr.mxu0 0.0
    %3162 = vmatpush1.msra.mxu0 %v3071
    %3163 = vmatprep.subr.mxu0 0.0
    %3164 = vmatpush1.msra.mxu0 %v3068
    %3165 = vmatprep.subr.mxu0 0.0
    %3166 = vmatpush1.msra.mxu0 %v3065
    %3167 = vmatprep.subr.mxu0 0.0
    %3168 = vmatpush1.msra.mxu0 %v3062
    %3169 = vmatprep.subr.mxu0 0.0
    %3170 = vmatpush1.msra.mxu0 %v3059
    %3171 = vmatprep.subr.mxu0 0.0
    %3172 = vmatpush1.msra.mxu0 %v3056
    %3173 = vmatprep.subr.mxu0 0.0
    %3174 = vmatpush1.msra.mxu0 %v3053
    %3175 = vmatprep.subr.mxu0 0.0
    %3176 = vmatpush1.msra.mxu0 %v3050
    %3177 = vmatprep.subr.mxu0 0.0
    %3178 = vmatpush1.msra.mxu0 %v3047
    %3179 = vmatprep.subr.mxu0 0.0
    %3180 = vmatpush1.msra.mxu0 %v3044
    %3181 = vmatprep.subr.mxu0 0.0
    %3182 = vmatpush1.msra.mxu0 %v3041
    %3183 = vmatprep.subr.mxu0 0.0
    %3184 = vmatpush1.msra.mxu0 %v3038
    %3185 = vmatprep.subr.mxu0 0.0
    %3186 = vmatpush1.msra.mxu0 %v3035
    %3187 = vmatprep.subr.mxu0 0.0
    %3188 = vmatpush1.msra.mxu0 %v3032
    %3189 = vmatprep.subr.mxu0 0.0
    %3190 = vmatpush1.msra.mxu0 %v3029
    %3191 = vmatprep.subr.mxu0 0.0
    %3192 = vmatpush1.msra.mxu0 %v3026
    %3193 = vmatprep.subr.mxu0 0.0
    %3194 = vmatpush2.msra.mxu0 0.0
    %3195 = vmatprep.subr.mxu0 0.0
    %3196 = vmatpush2.msra.mxu0 0.0
    %3197 = vmatprep.subr.mxu0 0.0
    %3198 = vmatpush2.msra.mxu0 0.0
    %3199 = vmatprep.subr.mxu0 0.0
    %3200 = vmatpush2.msra.mxu0 0.0
    %3201 = vmatprep.subr.mxu0 0.0
    %3202 = vmatpush2.msra.mxu0 0.0
    %3203 = vmatprep.subr.mxu0 0.0
    %3204 = vmatpush2.msra.mxu0 0.0
    %3205 = vmatprep.subr.mxu0 0.0
    %3206 = vmatpush2.msra.mxu0 0.0
    %3207 = vmatprep.subr.mxu0 0.0
    %3208 = vmatpush2.msra.mxu0 0.0
    %3209 = vmatprep.subr.mxu0 0.0
    %3210 = vmatpush2.msra.mxu0 0.0
    %3211 = vmatprep.subr.mxu0 0.0
    %3212 = vmatpush2.msra.mxu0 0.0
    %3213 = vmatprep.subr.mxu0 0.0
    %3214 = vmatpush2.msra.mxu0 0.0
    %3215 = vmatprep.subr.mxu0 0.0
    %3216 = vmatpush2.msra.mxu0 0.0
    %3217 = vmatprep.subr.mxu0 0.0
    %3218 = vmatpush2.msra.mxu0 0.0
    %3219 = vmatprep.subr.mxu0 0.0
    %3220 = vmatpush2.msra.mxu0 0.0
    %3221 = vmatprep.subr.mxu0 0.0
    %3222 = vmatpush2.msra.mxu0 0.0
    %3223 = vmatprep.subr.mxu0 0.0
    %3224 = vmatpush2.msra.mxu0 0.0
    %3225 = vmatprep.mubr.f32.mxu0 0.0
    %3226 = vmatmul.mubr.f32.gmra.mxu0 %v3003
    %v3227 = vpop.f32.mrf.mxu0
    %v3228 = vadd.f32 0.0, %v3227
    %v3229 = vpop.f32.mrf.mxu0
    %3230 = vmatprep.mubr.f32.mxu0 0.0
    %3231 = vmatmul.mubr.f32.gmra.mxu0 %v3004
    %v3232 = vpop.f32.mrf.mxu0
    %v3233 = vadd.f32 0.0, %v3232
    %v3234 = vpop.f32.mrf.mxu0
    %3235 = vmatprep.mubr.f32.mxu0 0.0
    %3236 = vmatmul.mubr.f32.gmra.mxu0 %v3005
    %v3237 = vpop.f32.mrf.mxu0
    %v3238 = vadd.f32 0.0, %v3237
    %v3239 = vpop.f32.mrf.mxu0
    %3240 = vmatprep.mubr.f32.mxu0 0.0
    %3241 = vmatmul.mubr.f32.gmra.mxu0 %v3006
    %v3242 = vpop.f32.mrf.mxu0
    %v3243 = vadd.f32 0.0, %v3242
    %v3244 = vpop.f32.mrf.mxu0
    %3245 = vdwg.mxu0
    %v3246 = vadd.f32 %v3012, %v3139
    %v3247 = vadd.f32 %v3015, %v3145
    %v3248 = vadd.f32 %v3018, %v3151
    %v3249 = vadd.f32 %v3021, %v3157
    %v3250 = vxor.u32 %v3246, 2147483648
    %v3251 = vxor.u32 %v3247, 2147483648
    %v3252 = vxor.u32 %v3248, 2147483648
    %v3253 = vxor.u32 %v3249, 2147483648
    %v3254 = vmul.f32 %v3250, 1.442695
    %v3255 = vpow.pop %v3254
    %v3256 = vmul.f32 %v3251, 1.442695
    %v3257 = vpow.pop %v3256
    %v3258 = vmul.f32 %v3252, 1.442695
    %v3259 = vpow.pop %v3258
    %v3260 = vmul.f32 %v3253, 1.442695
    %v3261 = vpow.pop %v3260
    %v3262 = vadd.f32 %v3255, 1.0
    %v3263 = vadd.f32 %v3257, 1.0
    %v3264 = vadd.f32 %v3259, 1.0
    %v3265 = vadd.f32 %v3261, 1.0
    %v3266 = vrcp.pop %v3262
    %v3267 = vmul.f32 1.0, %v3266
    %v3268 = vrcp.pop %v3263
    %v3269 = vmul.f32 1.0, %v3268
    %v3270 = vrcp.pop %v3264
    %v3271 = vmul.f32 1.0, %v3270
    %v3272 = vrcp.pop %v3265
    %v3273 = vmul.f32 1.0, %v3272
    %v3274 = vadd.f32 %v3013, %v3141
    %v3275 = vadd.f32 %v3016, %v3147
    %v3276 = vadd.f32 %v3019, %v3153
    %v3277 = vadd.f32 %v3022, %v3159
    %v3278 = vxor.u32 %v3274, 2147483648
    %v3279 = vxor.u32 %v3275, 2147483648
    %v3280 = vxor.u32 %v3276, 2147483648
    %v3281 = vxor.u32 %v3277, 2147483648
    %v3282 = vmul.f32 %v3278, 1.442695
    %v3283 = vpow.pop %v3282
    %v3284 = vmul.f32 %v3279, 1.442695
    %v3285 = vpow.pop %v3284
    %v3286 = vmul.f32 %v3280, 1.442695
    %v3287 = vpow.pop %v3286
    %v3288 = vmul.f32 %v3281, 1.442695
    %v3289 = vpow.pop %v3288
    %v3290 = vadd.f32 %v3283, 1.0
    %v3291 = vadd.f32 %v3285, 1.0
    %v3292 = vadd.f32 %v3287, 1.0
    %v3293 = vadd.f32 %v3289, 1.0
    %v3294 = vrcp.pop %v3290
    %v3295 = vmul.f32 1.0, %v3294
    %v3296 = vrcp.pop %v3291
    %v3297 = vmul.f32 1.0, %v3296
    %v3298 = vrcp.pop %v3292
    %v3299 = vmul.f32 1.0, %v3298
    %v3300 = vrcp.pop %v3293
    %v3301 = vmul.f32 1.0, %v3300
    %v3302 = vadd.f32 %v3228, %v67
    %v3303 = vadd.f32 %v3233, %v67
    %v3304 = vadd.f32 %v3238, %v67
    %v3305 = vadd.f32 %v3243, %v67
    %v3306 = vmul.f32 %v3267, %v3302
    %v3307 = vmul.f32 %v3269, %v3303
    %v3308 = vmul.f32 %v3271, %v3304
    %v3309 = vmul.f32 %v3273, %v3305
    %v3310 = vadd.f32 %v3014, %v3306
    %v3311 = vadd.f32 %v3017, %v3307
    %v3312 = vadd.f32 %v3020, %v3308
    %v3313 = vadd.f32 %v3023, %v3309
    %v3314 = vtanh.pop %v3310
    %v3315 = vtanh.pop %v3311
    %v3316 = vtanh.pop %v3312
    %v3317 = vtanh.pop %v3313
    %v3318 = vsub.f32 1.0, %v3295
    %v3319 = vsub.f32 1.0, %v3297
    %v3320 = vsub.f32 1.0, %v3299
    %v3321 = vsub.f32 1.0, %v3301
    %v3322 = vmul.f32 %v3318, %v3314
    %v3323 = vmul.f32 %v3319, %v3315
    %v3324 = vmul.f32 %v3320, %v3316
    %v3325 = vmul.f32 %v3321, %v3317
    %v3326 = vmul.f32 %v3295, %v3003
    %v3327 = vmul.f32 %v3297, %v3004
    %v3328 = vmul.f32 %v3299, %v3005
    %v3329 = vmul.f32 %v3301, %v3006
    %v3330 = vadd.f32 %v3322, %v3326
    %v3331 = vadd.f32 %v3323, %v3327
    %v3332 = vadd.f32 %v3324, %v3328
    %v3333 = vadd.f32 %v3325, %v3329
    %3334 = vst [vmem:[#allocation2 + $0x48] sm:$0xff] %v3330
    %3335 = vst [vmem:[#allocation2 + $0xa8] sm:$0xff] %v3331
    %3336 = vst [vmem:[#allocation2 + $0x108] sm:$0xff] %v3332
    %3337 = vst [vmem:[#allocation2 + $0x168] sm:$0xff] %v3333
    %s3338 = scalar_lea.vmem [#allocation3], 960
    %v3339 = vld [vmem:[%s3338] sm:$0xff]
    %v3340 = vld [vmem:[%s3338 + $0x8] sm:$0xff]
    %v3341 = vld [vmem:[%s3338 + $0x10] sm:$0xff]
    %v3342 = vld [vmem:[%s3338 + $0x18] sm:$0xff]
    %v3343 = vld [vmem:[%s3338 + $0x20] sm:$0xff]
    %v3344 = vld [vmem:[%s3338 + $0x28] sm:$0xff]
    %v3345 = vld [vmem:[%s3338 + $0x30] sm:$0xff]
    %v3346 = vld [vmem:[%s3338 + $0x38] sm:$0xff]
    %v3347 = vld [vmem:[%s3338 + $0x40] sm:$0xff]
    %v3348 = vld [vmem:[%s3338 + $0x48] sm:$0xff]
    %v3349 = vld [vmem:[%s3338 + $0x50] sm:$0xff]
    %v3350 = vld [vmem:[%s3338 + $0x58] sm:$0xff]
    %v3351 = vld [vmem:[#allocation6] sm:$0xff]
    %v3352 = vld [vmem:[#allocation6 + $0x8] sm:$0xff]
    %v3353 = vld [vmem:[#allocation6 + $0x10] sm:$0xff]
    %v3354 = vld [vmem:[#allocation6 + $0x18] sm:$0xff]
    %v3355 = vld [vmem:[#allocation6 + $0x20] sm:$0xff]
    %v3356 = vld [vmem:[#allocation6 + $0x28] sm:$0xff]
    %v3357 = vld [vmem:[#allocation6 + $0x30] sm:$0xff]
    %v3358 = vld [vmem:[#allocation6 + $0x38] sm:$0xff]
    %v3359 = vld [vmem:[#allocation6 + $0x40] sm:$0xff]
    %v3360 = vld [vmem:[#allocation6 + $0x48] sm:$0xff]
    %v3361 = vld [vmem:[#allocation6 + $0x50] sm:$0xff]
    %v3362 = vld [vmem:[#allocation6 + $0x58] sm:$0xff]
    %v3363 = vld [vmem:[#allocation6 + $0x60] sm:$0xff]
    %v3364 = vld [vmem:[#allocation6 + $0x68] sm:$0xff]
    %v3365 = vld [vmem:[#allocation6 + $0x70] sm:$0xff]
    %v3366 = vld [vmem:[#allocation6 + $0x78] sm:$0xff]
    %v3367 = vld [vmem:[#allocation6 + $0x80] sm:$0xff]
    %v3368 = vld [vmem:[#allocation6 + $0x88] sm:$0xff]
    %v3369 = vld [vmem:[#allocation6 + $0x90] sm:$0xff]
    %v3370 = vld [vmem:[#allocation6 + $0x98] sm:$0xff]
    %v3371 = vld [vmem:[#allocation6 + $0xa0] sm:$0xff]
    %v3372 = vld [vmem:[#allocation6 + $0xa8] sm:$0xff]
    %v3373 = vld [vmem:[#allocation6 + $0xb0] sm:$0xff]
    %v3374 = vld [vmem:[#allocation6 + $0xb8] sm:$0xff]
    %v3375 = vld [vmem:[#allocation6 + $0xc0] sm:$0xff]
    %v3376 = vld [vmem:[#allocation6 + $0xc8] sm:$0xff]
    %v3377 = vld [vmem:[#allocation6 + $0xd0] sm:$0xff]
    %v3378 = vld [vmem:[#allocation6 + $0xd8] sm:$0xff]
    %v3379 = vld [vmem:[#allocation6 + $0xe0] sm:$0xff]
    %v3380 = vld [vmem:[#allocation6 + $0xe8] sm:$0xff]
    %v3381 = vld [vmem:[#allocation6 + $0xf0] sm:$0xff]
    %v3382 = vld [vmem:[#allocation6 + $0xf8] sm:$0xff]
    %v3383 = vld [vmem:[#allocation6 + $0x100] sm:$0xff]
    %v3384 = vld [vmem:[#allocation6 + $0x108] sm:$0xff]
    %v3385 = vld [vmem:[#allocation6 + $0x110] sm:$0xff]
    %v3386 = vld [vmem:[#allocation6 + $0x118] sm:$0xff]
    %v3387 = vld [vmem:[#allocation6 + $0x120] sm:$0xff]
    %v3388 = vld [vmem:[#allocation6 + $0x128] sm:$0xff]
    %v3389 = vld [vmem:[#allocation6 + $0x130] sm:$0xff]
    %v3390 = vld [vmem:[#allocation6 + $0x138] sm:$0xff]
    %v3391 = vld [vmem:[#allocation6 + $0x140] sm:$0xff]
    %v3392 = vld [vmem:[#allocation6 + $0x148] sm:$0xff]
    %v3393 = vld [vmem:[#allocation6 + $0x150] sm:$0xff]
    %v3394 = vld [vmem:[#allocation6 + $0x158] sm:$0xff]
    %v3395 = vld [vmem:[#allocation6 + $0x160] sm:$0xff]
    %v3396 = vld [vmem:[#allocation6 + $0x168] sm:$0xff]
    %v3397 = vld [vmem:[#allocation6 + $0x170] sm:$0xff]
    %v3398 = vld [vmem:[#allocation6 + $0x178] sm:$0xff]
    %3399 = vmatprep.subr.mxu0 %v3397
    %3400 = vmatpush1.msra.mxu0 %v3396
    %3401 = vmatprep.subr.mxu0 %v3394
    %3402 = vmatpush1.msra.mxu0 %v3393
    %3403 = vmatprep.subr.mxu0 %v3391
    %3404 = vmatpush1.msra.mxu0 %v3390
    %3405 = vmatprep.subr.mxu0 %v3388
    %3406 = vmatpush1.msra.mxu0 %v3387
    %3407 = vmatprep.subr.mxu0 %v3385
    %3408 = vmatpush1.msra.mxu0 %v3384
    %3409 = vmatprep.subr.mxu0 %v3382
    %3410 = vmatpush1.msra.mxu0 %v3381
    %3411 = vmatprep.subr.mxu0 %v3379
    %3412 = vmatpush1.msra.mxu0 %v3378
    %3413 = vmatprep.subr.mxu0 %v3376
    %3414 = vmatpush1.msra.mxu0 %v3375
    %3415 = vmatprep.subr.mxu0 %v3373
    %3416 = vmatpush1.msra.mxu0 %v3372
    %3417 = vmatprep.subr.mxu0 %v3370
    %3418 = vmatpush1.msra.mxu0 %v3369
    %3419 = vmatprep.subr.mxu0 %v3367
    %3420 = vmatpush1.msra.mxu0 %v3366
    %3421 = vmatprep.subr.mxu0 %v3364
    %3422 = vmatpush1.msra.mxu0 %v3363
    %3423 = vmatprep.subr.mxu0 %v3361
    %3424 = vmatpush1.msra.mxu0 %v3360
    %3425 = vmatprep.subr.mxu0 %v3358
    %3426 = vmatpush1.msra.mxu0 %v3357
    %3427 = vmatprep.subr.mxu0 %v3355
    %3428 = vmatpush1.msra.mxu0 %v3354
    %3429 = vmatprep.subr.mxu0 %v3352
    %3430 = vmatpush1.msra.mxu0 %v3351
    %3431 = vmatprep.subr.mxu0 0.0
    %3432 = vmatpush2.msra.mxu0 0.0
    %3433 = vmatprep.subr.mxu0 0.0
    %3434 = vmatpush2.msra.mxu0 0.0
    %3435 = vmatprep.subr.mxu0 0.0
    %3436 = vmatpush2.msra.mxu0 0.0
    %3437 = vmatprep.subr.mxu0 0.0
    %3438 = vmatpush2.msra.mxu0 0.0
    %3439 = vmatprep.subr.mxu0 0.0
    %3440 = vmatpush2.msra.mxu0 0.0
    %3441 = vmatprep.subr.mxu0 0.0
    %3442 = vmatpush2.msra.mxu0 0.0
    %3443 = vmatprep.subr.mxu0 0.0
    %3444 = vmatpush2.msra.mxu0 0.0
    %3445 = vmatprep.subr.mxu0 0.0
    %3446 = vmatpush2.msra.mxu0 0.0
    %3447 = vmatprep.subr.mxu0 0.0
    %3448 = vmatpush2.msra.mxu0 0.0
    %3449 = vmatprep.subr.mxu0 0.0
    %3450 = vmatpush2.msra.mxu0 0.0
    %3451 = vmatprep.subr.mxu0 0.0
    %3452 = vmatpush2.msra.mxu0 0.0
    %3453 = vmatprep.subr.mxu0 0.0
    %3454 = vmatpush2.msra.mxu0 0.0
    %3455 = vmatprep.subr.mxu0 0.0
    %3456 = vmatpush2.msra.mxu0 0.0
    %3457 = vmatprep.subr.mxu0 0.0
    %3458 = vmatpush2.msra.mxu0 0.0
    %3459 = vmatprep.subr.mxu0 0.0
    %3460 = vmatpush2.msra.mxu0 0.0
    %3461 = vmatprep.subr.mxu0 0.0
    %3462 = vmatpush2.msra.mxu0 0.0
    %3463 = vmatprep.mubr.f32.mxu0 0.0
    %3464 = vmatmul.mubr.f32.gmra.mxu0 %v3330
    %v3465 = vpop.f32.mrf.mxu0
    %v3466 = vadd.f32 0.0, %v3465
    %v3467 = vpop.f32.mrf.mxu0
    %v3468 = vadd.f32 0.0, %v3467
    %3469 = vmatprep.mubr.f32.mxu0 0.0
    %3470 = vmatmul.mubr.f32.gmra.mxu0 %v3331
    %v3471 = vpop.f32.mrf.mxu0
    %v3472 = vadd.f32 0.0, %v3471
    %v3473 = vpop.f32.mrf.mxu0
    %v3474 = vadd.f32 0.0, %v3473
    %3475 = vmatprep.mubr.f32.mxu0 0.0
    %3476 = vmatmul.mubr.f32.gmra.mxu0 %v3332
    %v3477 = vpop.f32.mrf.mxu0
    %v3478 = vadd.f32 0.0, %v3477
    %v3479 = vpop.f32.mrf.mxu0
    %v3480 = vadd.f32 0.0, %v3479
    %3481 = vmatprep.mubr.f32.mxu0 0.0
    %3482 = vmatmul.mubr.f32.gmra.mxu0 %v3333
    %v3483 = vpop.f32.mrf.mxu0
    %v3484 = vadd.f32 0.0, %v3483
    %v3485 = vpop.f32.mrf.mxu0
    %v3486 = vadd.f32 0.0, %v3485
    %3487 = vdwg.mxu0
    %3488 = vmatprep.subr.mxu0 0.0
    %3489 = vmatpush1.msra.mxu0 %v3398
    %3490 = vmatprep.subr.mxu0 0.0
    %3491 = vmatpush1.msra.mxu0 %v3395
    %3492 = vmatprep.subr.mxu0 0.0
    %3493 = vmatpush1.msra.mxu0 %v3392
    %3494 = vmatprep.subr.mxu0 0.0
    %3495 = vmatpush1.msra.mxu0 %v3389
    %3496 = vmatprep.subr.mxu0 0.0
    %3497 = vmatpush1.msra.mxu0 %v3386
    %3498 = vmatprep.subr.mxu0 0.0
    %3499 = vmatpush1.msra.mxu0 %v3383
    %3500 = vmatprep.subr.mxu0 0.0
    %3501 = vmatpush1.msra.mxu0 %v3380
    %3502 = vmatprep.subr.mxu0 0.0
    %3503 = vmatpush1.msra.mxu0 %v3377
    %3504 = vmatprep.subr.mxu0 0.0
    %3505 = vmatpush1.msra.mxu0 %v3374
    %3506 = vmatprep.subr.mxu0 0.0
    %3507 = vmatpush1.msra.mxu0 %v3371
    %3508 = vmatprep.subr.mxu0 0.0
    %3509 = vmatpush1.msra.mxu0 %v3368
    %3510 = vmatprep.subr.mxu0 0.0
    %3511 = vmatpush1.msra.mxu0 %v3365
    %3512 = vmatprep.subr.mxu0 0.0
    %3513 = vmatpush1.msra.mxu0 %v3362
    %3514 = vmatprep.subr.mxu0 0.0
    %3515 = vmatpush1.msra.mxu0 %v3359
    %3516 = vmatprep.subr.mxu0 0.0
    %3517 = vmatpush1.msra.mxu0 %v3356
    %3518 = vmatprep.subr.mxu0 0.0
    %3519 = vmatpush1.msra.mxu0 %v3353
    %3520 = vmatprep.subr.mxu0 0.0
    %3521 = vmatpush2.msra.mxu0 0.0
    %3522 = vmatprep.subr.mxu0 0.0
    %3523 = vmatpush2.msra.mxu0 0.0
    %3524 = vmatprep.subr.mxu0 0.0
    %3525 = vmatpush2.msra.mxu0 0.0
    %3526 = vmatprep.subr.mxu0 0.0
    %3527 = vmatpush2.msra.mxu0 0.0
    %3528 = vmatprep.subr.mxu0 0.0
    %3529 = vmatpush2.msra.mxu0 0.0
    %3530 = vmatprep.subr.mxu0 0.0
    %3531 = vmatpush2.msra.mxu0 0.0
    %3532 = vmatprep.subr.mxu0 0.0
    %3533 = vmatpush2.msra.mxu0 0.0
    %3534 = vmatprep.subr.mxu0 0.0
    %3535 = vmatpush2.msra.mxu0 0.0
    %3536 = vmatprep.subr.mxu0 0.0
    %3537 = vmatpush2.msra.mxu0 0.0
    %3538 = vmatprep.subr.mxu0 0.0
    %3539 = vmatpush2.msra.mxu0 0.0
    %3540 = vmatprep.subr.mxu0 0.0
    %3541 = vmatpush2.msra.mxu0 0.0
    %3542 = vmatprep.subr.mxu0 0.0
    %3543 = vmatpush2.msra.mxu0 0.0
    %3544 = vmatprep.subr.mxu0 0.0
    %3545 = vmatpush2.msra.mxu0 0.0
    %3546 = vmatprep.subr.mxu0 0.0
    %3547 = vmatpush2.msra.mxu0 0.0
    %3548 = vmatprep.subr.mxu0 0.0
    %3549 = vmatpush2.msra.mxu0 0.0
    %3550 = vmatprep.subr.mxu0 0.0
    %3551 = vmatpush2.msra.mxu0 0.0
    %3552 = vmatprep.mubr.f32.mxu0 0.0
    %3553 = vmatmul.mubr.f32.gmra.mxu0 %v3330
    %v3554 = vpop.f32.mrf.mxu0
    %v3555 = vadd.f32 0.0, %v3554
    %v3556 = vpop.f32.mrf.mxu0
    %3557 = vmatprep.mubr.f32.mxu0 0.0
    %3558 = vmatmul.mubr.f32.gmra.mxu0 %v3331
    %v3559 = vpop.f32.mrf.mxu0
    %v3560 = vadd.f32 0.0, %v3559
    %v3561 = vpop.f32.mrf.mxu0
    %3562 = vmatprep.mubr.f32.mxu0 0.0
    %3563 = vmatmul.mubr.f32.gmra.mxu0 %v3332
    %v3564 = vpop.f32.mrf.mxu0
    %v3565 = vadd.f32 0.0, %v3564
    %v3566 = vpop.f32.mrf.mxu0
    %3567 = vmatprep.mubr.f32.mxu0 0.0
    %3568 = vmatmul.mubr.f32.gmra.mxu0 %v3333
    %v3569 = vpop.f32.mrf.mxu0
    %v3570 = vadd.f32 0.0, %v3569
    %v3571 = vpop.f32.mrf.mxu0
    %3572 = vdwg.mxu0
    %v3573 = vadd.f32 %v3339, %v3466
    %v3574 = vadd.f32 %v3342, %v3472
    %v3575 = vadd.f32 %v3345, %v3478
    %v3576 = vadd.f32 %v3348, %v3484
    %v3577 = vxor.u32 %v3573, 2147483648
    %v3578 = vxor.u32 %v3574, 2147483648
    %v3579 = vxor.u32 %v3575, 2147483648
    %v3580 = vxor.u32 %v3576, 2147483648
    %v3581 = vmul.f32 %v3577, 1.442695
    %v3582 = vpow.pop %v3581
    %v3583 = vmul.f32 %v3578, 1.442695
    %v3584 = vpow.pop %v3583
    %v3585 = vmul.f32 %v3579, 1.442695
    %v3586 = vpow.pop %v3585
    %v3587 = vmul.f32 %v3580, 1.442695
    %v3588 = vpow.pop %v3587
    %v3589 = vadd.f32 %v3582, 1.0
    %v3590 = vadd.f32 %v3584, 1.0
    %v3591 = vadd.f32 %v3586, 1.0
    %v3592 = vadd.f32 %v3588, 1.0
    %v3593 = vrcp.pop %v3589
    %v3594 = vmul.f32 1.0, %v3593
    %v3595 = vrcp.pop %v3590
    %v3596 = vmul.f32 1.0, %v3595
    %v3597 = vrcp.pop %v3591
    %v3598 = vmul.f32 1.0, %v3597
    %v3599 = vrcp.pop %v3592
    %v3600 = vmul.f32 1.0, %v3599
    %v3601 = vadd.f32 %v3340, %v3468
    %v3602 = vadd.f32 %v3343, %v3474
    %v3603 = vadd.f32 %v3346, %v3480
    %v3604 = vadd.f32 %v3349, %v3486
    %v3605 = vxor.u32 %v3601, 2147483648
    %v3606 = vxor.u32 %v3602, 2147483648
    %v3607 = vxor.u32 %v3603, 2147483648
    %v3608 = vxor.u32 %v3604, 2147483648
    %v3609 = vmul.f32 %v3605, 1.442695
    %v3610 = vpow.pop %v3609
    %v3611 = vmul.f32 %v3606, 1.442695
    %v3612 = vpow.pop %v3611
    %v3613 = vmul.f32 %v3607, 1.442695
    %v3614 = vpow.pop %v3613
    %v3615 = vmul.f32 %v3608, 1.442695
    %v3616 = vpow.pop %v3615
    %v3617 = vadd.f32 %v3610, 1.0
    %v3618 = vadd.f32 %v3612, 1.0
    %v3619 = vadd.f32 %v3614, 1.0
    %v3620 = vadd.f32 %v3616, 1.0
    %v3621 = vrcp.pop %v3617
    %v3622 = vmul.f32 1.0, %v3621
    %v3623 = vrcp.pop %v3618
    %v3624 = vmul.f32 1.0, %v3623
    %v3625 = vrcp.pop %v3619
    %v3626 = vmul.f32 1.0, %v3625
    %v3627 = vrcp.pop %v3620
    %v3628 = vmul.f32 1.0, %v3627
    %v3629 = vadd.f32 %v3555, %v67
    %v3630 = vadd.f32 %v3560, %v67
    %v3631 = vadd.f32 %v3565, %v67
    %v3632 = vadd.f32 %v3570, %v67
    %v3633 = vmul.f32 %v3594, %v3629
    %v3634 = vmul.f32 %v3596, %v3630
    %v3635 = vmul.f32 %v3598, %v3631
    %v3636 = vmul.f32 %v3600, %v3632
    %v3637 = vadd.f32 %v3341, %v3633
    %v3638 = vadd.f32 %v3344, %v3634
    %v3639 = vadd.f32 %v3347, %v3635
    %v3640 = vadd.f32 %v3350, %v3636
    %v3641 = vtanh.pop %v3637
    %v3642 = vtanh.pop %v3638
    %v3643 = vtanh.pop %v3639
    %v3644 = vtanh.pop %v3640
    %v3645 = vsub.f32 1.0, %v3622
    %v3646 = vsub.f32 1.0, %v3624
    %v3647 = vsub.f32 1.0, %v3626
    %v3648 = vsub.f32 1.0, %v3628
    %v3649 = vmul.f32 %v3645, %v3641
    %v3650 = vmul.f32 %v3646, %v3642
    %v3651 = vmul.f32 %v3647, %v3643
    %v3652 = vmul.f32 %v3648, %v3644
    %v3653 = vmul.f32 %v3622, %v3330
    %v3654 = vmul.f32 %v3624, %v3331
    %v3655 = vmul.f32 %v3626, %v3332
    %v3656 = vmul.f32 %v3628, %v3333
    %v3657 = vadd.f32 %v3649, %v3653
    %v3658 = vadd.f32 %v3650, %v3654
    %v3659 = vadd.f32 %v3651, %v3655
    %v3660 = vadd.f32 %v3652, %v3656
    %3661 = vst [vmem:[#allocation2 + $0x50] sm:$0xff] %v3657
    %3662 = vst [vmem:[#allocation2 + $0xb0] sm:$0xff] %v3658
    %3663 = vst [vmem:[#allocation2 + $0x110] sm:$0xff] %v3659
    %3664 = vst [vmem:[#allocation2 + $0x170] sm:$0xff] %v3660
    %s3665 = scalar_lea.vmem [#allocation3], 1056
    %v3666 = vld [vmem:[%s3665] sm:$0xff]
    %v3667 = vld [vmem:[%s3665 + $0x8] sm:$0xff]
    %v3668 = vld [vmem:[%s3665 + $0x10] sm:$0xff]
    %v3669 = vld [vmem:[%s3665 + $0x18] sm:$0xff]
    %v3670 = vld [vmem:[%s3665 + $0x20] sm:$0xff]
    %v3671 = vld [vmem:[%s3665 + $0x28] sm:$0xff]
    %v3672 = vld [vmem:[%s3665 + $0x30] sm:$0xff]
    %v3673 = vld [vmem:[%s3665 + $0x38] sm:$0xff]
    %v3674 = vld [vmem:[%s3665 + $0x40] sm:$0xff]
    %v3675 = vld [vmem:[%s3665 + $0x48] sm:$0xff]
    %v3676 = vld [vmem:[%s3665 + $0x50] sm:$0xff]
    %v3677 = vld [vmem:[%s3665 + $0x58] sm:$0xff]
    %v3678 = vld [vmem:[#allocation6] sm:$0xff]
    %v3679 = vld [vmem:[#allocation6 + $0x8] sm:$0xff]
    %v3680 = vld [vmem:[#allocation6 + $0x10] sm:$0xff]
    %v3681 = vld [vmem:[#allocation6 + $0x18] sm:$0xff]
    %v3682 = vld [vmem:[#allocation6 + $0x20] sm:$0xff]
    %v3683 = vld [vmem:[#allocation6 + $0x28] sm:$0xff]
    %v3684 = vld [vmem:[#allocation6 + $0x30] sm:$0xff]
    %v3685 = vld [vmem:[#allocation6 + $0x38] sm:$0xff]
    %v3686 = vld [vmem:[#allocation6 + $0x40] sm:$0xff]
    %v3687 = vld [vmem:[#allocation6 + $0x48] sm:$0xff]
    %v3688 = vld [vmem:[#allocation6 + $0x50] sm:$0xff]
    %v3689 = vld [vmem:[#allocation6 + $0x58] sm:$0xff]
    %v3690 = vld [vmem:[#allocation6 + $0x60] sm:$0xff]
    %v3691 = vld [vmem:[#allocation6 + $0x68] sm:$0xff]
    %v3692 = vld [vmem:[#allocation6 + $0x70] sm:$0xff]
    %v3693 = vld [vmem:[#allocation6 + $0x78] sm:$0xff]
    %v3694 = vld [vmem:[#allocation6 + $0x80] sm:$0xff]
    %v3695 = vld [vmem:[#allocation6 + $0x88] sm:$0xff]
    %v3696 = vld [vmem:[#allocation6 + $0x90] sm:$0xff]
    %v3697 = vld [vmem:[#allocation6 + $0x98] sm:$0xff]
    %v3698 = vld [vmem:[#allocation6 + $0xa0] sm:$0xff]
    %v3699 = vld [vmem:[#allocation6 + $0xa8] sm:$0xff]
    %v3700 = vld [vmem:[#allocation6 + $0xb0] sm:$0xff]
    %v3701 = vld [vmem:[#allocation6 + $0xb8] sm:$0xff]
    %v3702 = vld [vmem:[#allocation6 + $0xc0] sm:$0xff]
    %v3703 = vld [vmem:[#allocation6 + $0xc8] sm:$0xff]
    %v3704 = vld [vmem:[#allocation6 + $0xd0] sm:$0xff]
    %v3705 = vld [vmem:[#allocation6 + $0xd8] sm:$0xff]
    %v3706 = vld [vmem:[#allocation6 + $0xe0] sm:$0xff]
    %v3707 = vld [vmem:[#allocation6 + $0xe8] sm:$0xff]
    %v3708 = vld [vmem:[#allocation6 + $0xf0] sm:$0xff]
    %v3709 = vld [vmem:[#allocation6 + $0xf8] sm:$0xff]
    %v3710 = vld [vmem:[#allocation6 + $0x100] sm:$0xff]
    %v3711 = vld [vmem:[#allocation6 + $0x108] sm:$0xff]
    %v3712 = vld [vmem:[#allocation6 + $0x110] sm:$0xff]
    %v3713 = vld [vmem:[#allocation6 + $0x118] sm:$0xff]
    %v3714 = vld [vmem:[#allocation6 + $0x120] sm:$0xff]
    %v3715 = vld [vmem:[#allocation6 + $0x128] sm:$0xff]
    %v3716 = vld [vmem:[#allocation6 + $0x130] sm:$0xff]
    %v3717 = vld [vmem:[#allocation6 + $0x138] sm:$0xff]
    %v3718 = vld [vmem:[#allocation6 + $0x140] sm:$0xff]
    %v3719 = vld [vmem:[#allocation6 + $0x148] sm:$0xff]
    %v3720 = vld [vmem:[#allocation6 + $0x150] sm:$0xff]
    %v3721 = vld [vmem:[#allocation6 + $0x158] sm:$0xff]
    %v3722 = vld [vmem:[#allocation6 + $0x160] sm:$0xff]
    %v3723 = vld [vmem:[#allocation6 + $0x168] sm:$0xff]
    %v3724 = vld [vmem:[#allocation6 + $0x170] sm:$0xff]
    %v3725 = vld [vmem:[#allocation6 + $0x178] sm:$0xff]
    %3726 = vmatprep.subr.mxu0 %v3724
    %3727 = vmatpush1.msra.mxu0 %v3723
    %3728 = vmatprep.subr.mxu0 %v3721
    %3729 = vmatpush1.msra.mxu0 %v3720
    %3730 = vmatprep.subr.mxu0 %v3718
    %3731 = vmatpush1.msra.mxu0 %v3717
    %3732 = vmatprep.subr.mxu0 %v3715
    %3733 = vmatpush1.msra.mxu0 %v3714
    %3734 = vmatprep.subr.mxu0 %v3712
    %3735 = vmatpush1.msra.mxu0 %v3711
    %3736 = vmatprep.subr.mxu0 %v3709
    %3737 = vmatpush1.msra.mxu0 %v3708
    %3738 = vmatprep.subr.mxu0 %v3706
    %3739 = vmatpush1.msra.mxu0 %v3705
    %3740 = vmatprep.subr.mxu0 %v3703
    %3741 = vmatpush1.msra.mxu0 %v3702
    %3742 = vmatprep.subr.mxu0 %v3700
    %3743 = vmatpush1.msra.mxu0 %v3699
    %3744 = vmatprep.subr.mxu0 %v3697
    %3745 = vmatpush1.msra.mxu0 %v3696
    %3746 = vmatprep.subr.mxu0 %v3694
    %3747 = vmatpush1.msra.mxu0 %v3693
    %3748 = vmatprep.subr.mxu0 %v3691
    %3749 = vmatpush1.msra.mxu0 %v3690
    %3750 = vmatprep.subr.mxu0 %v3688
    %3751 = vmatpush1.msra.mxu0 %v3687
    %3752 = vmatprep.subr.mxu0 %v3685
    %3753 = vmatpush1.msra.mxu0 %v3684
    %3754 = vmatprep.subr.mxu0 %v3682
    %3755 = vmatpush1.msra.mxu0 %v3681
    %3756 = vmatprep.subr.mxu0 %v3679
    %3757 = vmatpush1.msra.mxu0 %v3678
    %3758 = vmatprep.subr.mxu0 0.0
    %3759 = vmatpush2.msra.mxu0 0.0
    %3760 = vmatprep.subr.mxu0 0.0
    %3761 = vmatpush2.msra.mxu0 0.0
    %3762 = vmatprep.subr.mxu0 0.0
    %3763 = vmatpush2.msra.mxu0 0.0
    %3764 = vmatprep.subr.mxu0 0.0
    %3765 = vmatpush2.msra.mxu0 0.0
    %3766 = vmatprep.subr.mxu0 0.0
    %3767 = vmatpush2.msra.mxu0 0.0
    %3768 = vmatprep.subr.mxu0 0.0
    %3769 = vmatpush2.msra.mxu0 0.0
    %3770 = vmatprep.subr.mxu0 0.0
    %3771 = vmatpush2.msra.mxu0 0.0
    %3772 = vmatprep.subr.mxu0 0.0
    %3773 = vmatpush2.msra.mxu0 0.0
    %3774 = vmatprep.subr.mxu0 0.0
    %3775 = vmatpush2.msra.mxu0 0.0
    %3776 = vmatprep.subr.mxu0 0.0
    %3777 = vmatpush2.msra.mxu0 0.0
    %3778 = vmatprep.subr.mxu0 0.0
    %3779 = vmatpush2.msra.mxu0 0.0
    %3780 = vmatprep.subr.mxu0 0.0
    %3781 = vmatpush2.msra.mxu0 0.0
    %3782 = vmatprep.subr.mxu0 0.0
    %3783 = vmatpush2.msra.mxu0 0.0
    %3784 = vmatprep.subr.mxu0 0.0
    %3785 = vmatpush2.msra.mxu0 0.0
    %3786 = vmatprep.subr.mxu0 0.0
    %3787 = vmatpush2.msra.mxu0 0.0
    %3788 = vmatprep.subr.mxu0 0.0
    %3789 = vmatpush2.msra.mxu0 0.0
    %3790 = vmatprep.mubr.f32.mxu0 0.0
    %3791 = vmatmul.mubr.f32.gmra.mxu0 %v3657
    %v3792 = vpop.f32.mrf.mxu0
    %v3793 = vadd.f32 0.0, %v3792
    %v3794 = vpop.f32.mrf.mxu0
    %v3795 = vadd.f32 0.0, %v3794
    %3796 = vmatprep.mubr.f32.mxu0 0.0
    %3797 = vmatmul.mubr.f32.gmra.mxu0 %v3658
    %v3798 = vpop.f32.mrf.mxu0
    %v3799 = vadd.f32 0.0, %v3798
    %v3800 = vpop.f32.mrf.mxu0
    %v3801 = vadd.f32 0.0, %v3800
    %3802 = vmatprep.mubr.f32.mxu0 0.0
    %3803 = vmatmul.mubr.f32.gmra.mxu0 %v3659
    %v3804 = vpop.f32.mrf.mxu0
    %v3805 = vadd.f32 0.0, %v3804
    %v3806 = vpop.f32.mrf.mxu0
    %v3807 = vadd.f32 0.0, %v3806
    %3808 = vmatprep.mubr.f32.mxu0 0.0
    %3809 = vmatmul.mubr.f32.gmra.mxu0 %v3660
    %v3810 = vpop.f32.mrf.mxu0
    %v3811 = vadd.f32 0.0, %v3810
    %v3812 = vpop.f32.mrf.mxu0
    %v3813 = vadd.f32 0.0, %v3812
    %3814 = vdwg.mxu0
    %3815 = vmatprep.subr.mxu0 0.0
    %3816 = vmatpush1.msra.mxu0 %v3725
    %3817 = vmatprep.subr.mxu0 0.0
    %3818 = vmatpush1.msra.mxu0 %v3722
    %3819 = vmatprep.subr.mxu0 0.0
    %3820 = vmatpush1.msra.mxu0 %v3719
    %3821 = vmatprep.subr.mxu0 0.0
    %3822 = vmatpush1.msra.mxu0 %v3716
    %3823 = vmatprep.subr.mxu0 0.0
    %3824 = vmatpush1.msra.mxu0 %v3713
    %3825 = vmatprep.subr.mxu0 0.0
    %3826 = vmatpush1.msra.mxu0 %v3710
    %3827 = vmatprep.subr.mxu0 0.0
    %3828 = vmatpush1.msra.mxu0 %v3707
    %3829 = vmatprep.subr.mxu0 0.0
    %3830 = vmatpush1.msra.mxu0 %v3704
    %3831 = vmatprep.subr.mxu0 0.0
    %3832 = vmatpush1.msra.mxu0 %v3701
    %3833 = vmatprep.subr.mxu0 0.0
    %3834 = vmatpush1.msra.mxu0 %v3698
    %3835 = vmatprep.subr.mxu0 0.0
    %3836 = vmatpush1.msra.mxu0 %v3695
    %3837 = vmatprep.subr.mxu0 0.0
    %3838 = vmatpush1.msra.mxu0 %v3692
    %3839 = vmatprep.subr.mxu0 0.0
    %3840 = vmatpush1.msra.mxu0 %v3689
    %3841 = vmatprep.subr.mxu0 0.0
    %3842 = vmatpush1.msra.mxu0 %v3686
    %3843 = vmatprep.subr.mxu0 0.0
    %3844 = vmatpush1.msra.mxu0 %v3683
    %3845 = vmatprep.subr.mxu0 0.0
    %3846 = vmatpush1.msra.mxu0 %v3680
    %3847 = vmatprep.subr.mxu0 0.0
    %3848 = vmatpush2.msra.mxu0 0.0
    %3849 = vmatprep.subr.mxu0 0.0
    %3850 = vmatpush2.msra.mxu0 0.0
    %3851 = vmatprep.subr.mxu0 0.0
    %3852 = vmatpush2.msra.mxu0 0.0
    %3853 = vmatprep.subr.mxu0 0.0
    %3854 = vmatpush2.msra.mxu0 0.0
    %3855 = vmatprep.subr.mxu0 0.0
    %3856 = vmatpush2.msra.mxu0 0.0
    %3857 = vmatprep.subr.mxu0 0.0
    %3858 = vmatpush2.msra.mxu0 0.0
    %3859 = vmatprep.subr.mxu0 0.0
    %3860 = vmatpush2.msra.mxu0 0.0
    %3861 = vmatprep.subr.mxu0 0.0
    %3862 = vmatpush2.msra.mxu0 0.0
    %3863 = vmatprep.subr.mxu0 0.0
    %3864 = vmatpush2.msra.mxu0 0.0
    %3865 = vmatprep.subr.mxu0 0.0
    %3866 = vmatpush2.msra.mxu0 0.0
    %3867 = vmatprep.subr.mxu0 0.0
    %3868 = vmatpush2.msra.mxu0 0.0
    %3869 = vmatprep.subr.mxu0 0.0
    %3870 = vmatpush2.msra.mxu0 0.0
    %3871 = vmatprep.subr.mxu0 0.0
    %3872 = vmatpush2.msra.mxu0 0.0
    %3873 = vmatprep.subr.mxu0 0.0
    %3874 = vmatpush2.msra.mxu0 0.0
    %3875 = vmatprep.subr.mxu0 0.0
    %3876 = vmatpush2.msra.mxu0 0.0
    %3877 = vmatprep.subr.mxu0 0.0
    %3878 = vmatpush2.msra.mxu0 0.0
    %3879 = vmatprep.mubr.f32.mxu0 0.0
    %3880 = vmatmul.mubr.f32.gmra.mxu0 %v3657
    %v3881 = vpop.f32.mrf.mxu0
    %v3882 = vadd.f32 0.0, %v3881
    %v3883 = vpop.f32.mrf.mxu0
    %3884 = vmatprep.mubr.f32.mxu0 0.0
    %3885 = vmatmul.mubr.f32.gmra.mxu0 %v3658
    %v3886 = vpop.f32.mrf.mxu0
    %v3887 = vadd.f32 0.0, %v3886
    %v3888 = vpop.f32.mrf.mxu0
    %3889 = vmatprep.mubr.f32.mxu0 0.0
    %3890 = vmatmul.mubr.f32.gmra.mxu0 %v3659
    %v3891 = vpop.f32.mrf.mxu0
    %v3892 = vadd.f32 0.0, %v3891
    %v3893 = vpop.f32.mrf.mxu0
    %3894 = vmatprep.mubr.f32.mxu0 0.0
    %3895 = vmatmul.mubr.f32.gmra.mxu0 %v3660
    %v3896 = vpop.f32.mrf.mxu0
    %v3897 = vadd.f32 0.0, %v3896
    %v3898 = vpop.f32.mrf.mxu0
    %3899 = vdwg.mxu0
    %v3900 = vadd.f32 %v3666, %v3793
    %v3901 = vadd.f32 %v3669, %v3799
    %v3902 = vadd.f32 %v3672, %v3805
    %v3903 = vadd.f32 %v3675, %v3811
    %v3904 = vxor.u32 %v3900, 2147483648
    %v3905 = vxor.u32 %v3901, 2147483648
    %v3906 = vxor.u32 %v3902, 2147483648
    %v3907 = vxor.u32 %v3903, 2147483648
    %v3908 = vmul.f32 %v3904, 1.442695
    %v3909 = vpow.pop %v3908
    %v3910 = vmul.f32 %v3905, 1.442695
    %v3911 = vpow.pop %v3910
    %v3912 = vmul.f32 %v3906, 1.442695
    %v3913 = vpow.pop %v3912
    %v3914 = vmul.f32 %v3907, 1.442695
    %v3915 = vpow.pop %v3914
    %v3916 = vadd.f32 %v3909, 1.0
    %v3917 = vadd.f32 %v3911, 1.0
    %v3918 = vadd.f32 %v3913, 1.0
    %v3919 = vadd.f32 %v3915, 1.0
    %v3920 = vrcp.pop %v3916
    %v3921 = vmul.f32 1.0, %v3920
    %v3922 = vrcp.pop %v3917
    %v3923 = vmul.f32 1.0, %v3922
    %v3924 = vrcp.pop %v3918
    %v3925 = vmul.f32 1.0, %v3924
    %v3926 = vrcp.pop %v3919
    %v3927 = vmul.f32 1.0, %v3926
    %v3928 = vadd.f32 %v3667, %v3795
    %v3929 = vadd.f32 %v3670, %v3801
    %v3930 = vadd.f32 %v3673, %v3807
    %v3931 = vadd.f32 %v3676, %v3813
    %v3932 = vxor.u32 %v3928, 2147483648
    %v3933 = vxor.u32 %v3929, 2147483648
    %v3934 = vxor.u32 %v3930, 2147483648
    %v3935 = vxor.u32 %v3931, 2147483648
    %v3936 = vmul.f32 %v3932, 1.442695
    %v3937 = vpow.pop %v3936
    %v3938 = vmul.f32 %v3933, 1.442695
    %v3939 = vpow.pop %v3938
    %v3940 = vmul.f32 %v3934, 1.442695
    %v3941 = vpow.pop %v3940
    %v3942 = vmul.f32 %v3935, 1.442695
    %v3943 = vpow.pop %v3942
    %v3944 = vadd.f32 %v3937, 1.0
    %v3945 = vadd.f32 %v3939, 1.0
    %v3946 = vadd.f32 %v3941, 1.0
    %v3947 = vadd.f32 %v3943, 1.0
    %v3948 = vrcp.pop %v3944
    %v3949 = vmul.f32 1.0, %v3948
    %v3950 = vrcp.pop %v3945
    %v3951 = vmul.f32 1.0, %v3950
    %v3952 = vrcp.pop %v3946
    %v3953 = vmul.f32 1.0, %v3952
    %v3954 = vrcp.pop %v3947
    %v3955 = vmul.f32 1.0, %v3954
    %v3956 = vadd.f32 %v3882, %v67
    %v3957 = vadd.f32 %v3887, %v67
    %v3958 = vadd.f32 %v3892, %v67
    %v3959 = vadd.f32 %v3897, %v67
    %v3960 = vmul.f32 %v3921, %v3956
    %v3961 = vmul.f32 %v3923, %v3957
    %v3962 = vmul.f32 %v3925, %v3958
    %v3963 = vmul.f32 %v3927, %v3959
    %v3964 = vadd.f32 %v3668, %v3960
    %v3965 = vadd.f32 %v3671, %v3961
    %v3966 = vadd.f32 %v3674, %v3962
    %v3967 = vadd.f32 %v3677, %v3963
    %v3968 = vtanh.pop %v3964
    %v3969 = vtanh.pop %v3965
    %v3970 = vtanh.pop %v3966
    %v3971 = vtanh.pop %v3967
    %v3972 = vsub.f32 1.0, %v3949
    %v3973 = vsub.f32 1.0, %v3951
    %v3974 = vsub.f32 1.0, %v3953
    %v3975 = vsub.f32 1.0, %v3955
    %v3976 = vmul.f32 %v3972, %v3968
    %v3977 = vmul.f32 %v3973, %v3969
    %v3978 = vmul.f32 %v3974, %v3970
    %v3979 = vmul.f32 %v3975, %v3971
    %v3980 = vmul.f32 %v3949, %v3657
    %v3981 = vmul.f32 %v3951, %v3658
    %v3982 = vmul.f32 %v3953, %v3659
    %v3983 = vmul.f32 %v3955, %v3660
    %v3984 = vadd.f32 %v3976, %v3980
    %v3985 = vadd.f32 %v3977, %v3981
    %v3986 = vadd.f32 %v3978, %v3982
    %v3987 = vadd.f32 %v3979, %v3983
    %3988 = vst [vmem:[#allocation2 + $0x58] sm:$0xff] %v3984
    %3989 = vst [vmem:[#allocation2 + $0xb8] sm:$0xff] %v3985
    %3990 = vst [vmem:[#allocation2 + $0x118] sm:$0xff] %v3986
    %3991 = vst [vmem:[#allocation2 + $0x178] sm:$0xff] %v3987
    %v3992 = vld [vmem:[#allocation2] sm:$0xff]
    %v3993 = vld [vmem:[#allocation2 + $0x8] sm:$0xff]
    %v3994 = vld [vmem:[#allocation2 + $0x10] sm:$0xff]
    %v3995 = vld [vmem:[#allocation2 + $0x18] sm:$0xff]
    %v3996 = vld [vmem:[#allocation2 + $0x20] sm:$0xff]
    %v3997 = vld [vmem:[#allocation2 + $0x28] sm:$0xff]
    %v3998 = vld [vmem:[#allocation2 + $0x30] sm:$0xff]
    %v3999 = vld [vmem:[#allocation2 + $0x38] sm:$0xff]
    %v4000 = vld [vmem:[#allocation2 + $0x40] sm:$0xff]
    %v4001 = vld [vmem:[#allocation2 + $0x48] sm:$0xff]
    %v4002 = vld [vmem:[#allocation2 + $0x50] sm:$0xff]
    %v4003 = vld [vmem:[#allocation2 + $0x58] sm:$0xff]
    %v4004 = vld [vmem:[#allocation2 + $0x60] sm:$0xff]
    %v4005 = vld [vmem:[#allocation2 + $0x68] sm:$0xff]
    %v4006 = vld [vmem:[#allocation2 + $0x70] sm:$0xff]
    %v4007 = vld [vmem:[#allocation2 + $0x78] sm:$0xff]
    %v4008 = vld [vmem:[#allocation2 + $0x80] sm:$0xff]
    %v4009 = vld [vmem:[#allocation2 + $0x88] sm:$0xff]
    %v4010 = vld [vmem:[#allocation2 + $0x90] sm:$0xff]
    %v4011 = vld [vmem:[#allocation2 + $0x98] sm:$0xff]
    %v4012 = vld [vmem:[#allocation2 + $0xa0] sm:$0xff]
    %v4013 = vld [vmem:[#allocation2 + $0xa8] sm:$0xff]
    %v4014 = vld [vmem:[#allocation2 + $0xb0] sm:$0xff]
    %v4015 = vld [vmem:[#allocation2 + $0xb8] sm:$0xff]
    %v4016 = vld [vmem:[#allocation2 + $0xc0] sm:$0xff]
    %v4017 = vld [vmem:[#allocation2 + $0xc8] sm:$0xff]
    %v4018 = vld [vmem:[#allocation2 + $0xd0] sm:$0xff]
    %v4019 = vld [vmem:[#allocation2 + $0xd8] sm:$0xff]
    %v4020 = vld [vmem:[#allocation2 + $0xe0] sm:$0xff]
    %v4021 = vld [vmem:[#allocation2 + $0xe8] sm:$0xff]
    %v4022 = vld [vmem:[#allocation2 + $0xf0] sm:$0xff]
    %v4023 = vld [vmem:[#allocation2 + $0xf8] sm:$0xff]
    %v4024 = vld [vmem:[#allocation2 + $0x100] sm:$0xff]
    %v4025 = vld [vmem:[#allocation2 + $0x108] sm:$0xff]
    %v4026 = vld [vmem:[#allocation2 + $0x110] sm:$0xff]
    %v4027 = vld [vmem:[#allocation2 + $0x118] sm:$0xff]
    %v4028 = vld [vmem:[#allocation2 + $0x120] sm:$0xff]
    %v4029 = vld [vmem:[#allocation2 + $0x128] sm:$0xff]
    %v4030 = vld [vmem:[#allocation2 + $0x130] sm:$0xff]
    %v4031 = vld [vmem:[#allocation2 + $0x138] sm:$0xff]
    %v4032 = vld [vmem:[#allocation2 + $0x140] sm:$0xff]
    %v4033 = vld [vmem:[#allocation2 + $0x148] sm:$0xff]
    %v4034 = vld [vmem:[#allocation2 + $0x150] sm:$0xff]
    %v4035 = vld [vmem:[#allocation2 + $0x158] sm:$0xff]
    %v4036 = vld [vmem:[#allocation2 + $0x160] sm:$0xff]
    %v4037 = vld [vmem:[#allocation2 + $0x168] sm:$0xff]
    %v4038 = vld [vmem:[#allocation2 + $0x170] sm:$0xff]
    %v4039 = vld [vmem:[#allocation2 + $0x178] sm:$0xff]
    %v4040 = vld [vmem:[#allocation8] sm:$0xff]
    %v4041 = vld [vmem:[#allocation8 + $0x8] sm:$0xff]
    %v4042 = vld [vmem:[#allocation8 + $0x10] sm:$0xff]
    %v4043 = vld [vmem:[#allocation8 + $0x18] sm:$0xff]
    %v4044 = vld [vmem:[#allocation8 + $0x20] sm:$0xff]
    %v4045 = vld [vmem:[#allocation8 + $0x28] sm:$0xff]
    %v4046 = vld [vmem:[#allocation8 + $0x30] sm:$0xff]
    %v4047 = vld [vmem:[#allocation8 + $0x38] sm:$0xff]
    %v4048 = vld [vmem:[#allocation8 + $0x40] sm:$0xff]
    %v4049 = vld [vmem:[#allocation8 + $0x48] sm:$0xff]
    %v4050 = vld [vmem:[#allocation8 + $0x50] sm:$0xff]
    %v4051 = vld [vmem:[#allocation8 + $0x58] sm:$0xff]
    %v4052 = vld [vmem:[#allocation8 + $0x60] sm:$0xff]
    %v4053 = vld [vmem:[#allocation8 + $0x68] sm:$0xff]
    %v4054 = vld [vmem:[#allocation8 + $0x70] sm:$0xff]
    %v4055 = vld [vmem:[#allocation8 + $0x78] sm:$0xff]
    %v4056 = vld [vmem:[#allocation8 + $0x80] sm:$0xff]
    %v4057 = vld [vmem:[#allocation8 + $0x88] sm:$0xff]
    %v4058 = vld [vmem:[#allocation8 + $0x90] sm:$0xff]
    %v4059 = vld [vmem:[#allocation8 + $0x98] sm:$0xff]
    %v4060 = vld [vmem:[#allocation8 + $0xa0] sm:$0xff]
    %v4061 = vld [vmem:[#allocation8 + $0xa8] sm:$0xff]
    %v4062 = vld [vmem:[#allocation8 + $0xb0] sm:$0xff]
    %v4063 = vld [vmem:[#allocation8 + $0xb8] sm:$0xff]
    %v4064 = vld [vmem:[#allocation8 + $0xc0] sm:$0xff]
    %v4065 = vld [vmem:[#allocation8 + $0xc8] sm:$0xff]
    %v4066 = vld [vmem:[#allocation8 + $0xd0] sm:$0xff]
    %v4067 = vld [vmem:[#allocation8 + $0xd8] sm:$0xff]
    %v4068 = vld [vmem:[#allocation8 + $0xe0] sm:$0xff]
    %v4069 = vld [vmem:[#allocation8 + $0xe8] sm:$0xff]
    %v4070 = vld [vmem:[#allocation8 + $0xf0] sm:$0xff]
    %v4071 = vld [vmem:[#allocation8 + $0xf8] sm:$0xff]
    %v4072 = vld [vmem:[#allocation8 + $0x100] sm:$0xff]
    %v4073 = vld [vmem:[#allocation8 + $0x108] sm:$0xff]
    %v4074 = vld [vmem:[#allocation8 + $0x110] sm:$0xff]
    %v4075 = vld [vmem:[#allocation8 + $0x118] sm:$0xff]
    %v4076 = vld [vmem:[#allocation8 + $0x120] sm:$0xff]
    %v4077 = vld [vmem:[#allocation8 + $0x128] sm:$0xff]
    %v4078 = vld [vmem:[#allocation8 + $0x130] sm:$0xff]
    %v4079 = vld [vmem:[#allocation8 + $0x138] sm:$0xff]
    %v4080 = vld [vmem:[#allocation8 + $0x140] sm:$0xff]
    %v4081 = vld [vmem:[#allocation8 + $0x148] sm:$0xff]
    %v4082 = vld [vmem:[#allocation8 + $0x150] sm:$0xff]
    %v4083 = vld [vmem:[#allocation8 + $0x158] sm:$0xff]
    %v4084 = vld [vmem:[#allocation8 + $0x160] sm:$0xff]
    %v4085 = vld [vmem:[#allocation8 + $0x168] sm:$0xff]
    %v4086 = vld [vmem:[#allocation8 + $0x170] sm:$0xff]
    %v4087 = vld [vmem:[#allocation8 + $0x178] sm:$0xff]
    %v4088 = vld [vmem:[#allocation8 + $0x180] sm:$0xff]
    %v4089 = vld [vmem:[#allocation8 + $0x188] sm:$0xff]
    %v4090 = vld [vmem:[#allocation8 + $0x190] sm:$0xff]
    %v4091 = vld [vmem:[#allocation8 + $0x198] sm:$0xff]
    %v4092 = vld [vmem:[#allocation8 + $0x1a0] sm:$0xff]
    %v4093 = vld [vmem:[#allocation8 + $0x1a8] sm:$0xff]
    %v4094 = vld [vmem:[#allocation8 + $0x1b0] sm:$0xff]
    %v4095 = vld [vmem:[#allocation8 + $0x1b8] sm:$0xff]
    %v4096 = vld [vmem:[#allocation8 + $0x1c0] sm:$0xff]
    %v4097 = vld [vmem:[#allocation8 + $0x1c8] sm:$0xff]
    %v4098 = vld [vmem:[#allocation8 + $0x1d0] sm:$0xff]
    %v4099 = vld [vmem:[#allocation8 + $0x1d8] sm:$0xff]
    %v4100 = vld [vmem:[#allocation8 + $0x1e0] sm:$0xff]
    %v4101 = vld [vmem:[#allocation8 + $0x1e8] sm:$0xff]
    %v4102 = vld [vmem:[#allocation8 + $0x1f0] sm:$0xff]
    %v4103 = vld [vmem:[#allocation8 + $0x1f8] sm:$0xff]
    %v4104 = vld [vmem:[#allocation8 + $0x200] sm:$0xff]
    %v4105 = vld [vmem:[#allocation8 + $0x208] sm:$0xff]
    %v4106 = vld [vmem:[#allocation8 + $0x210] sm:$0xff]
    %v4107 = vld [vmem:[#allocation8 + $0x218] sm:$0xff]
    %v4108 = vld [vmem:[#allocation8 + $0x220] sm:$0xff]
    %v4109 = vld [vmem:[#allocation8 + $0x228] sm:$0xff]
    %v4110 = vld [vmem:[#allocation8 + $0x230] sm:$0xff]
    %v4111 = vld [vmem:[#allocation8 + $0x238] sm:$0xff]
    %v4112 = vld [vmem:[#allocation8 + $0x240] sm:$0xff]
    %v4113 = vld [vmem:[#allocation8 + $0x248] sm:$0xff]
    %v4114 = vld [vmem:[#allocation8 + $0x250] sm:$0xff]
    %v4115 = vld [vmem:[#allocation8 + $0x258] sm:$0xff]
    %v4116 = vld [vmem:[#allocation8 + $0x260] sm:$0xff]
    %v4117 = vld [vmem:[#allocation8 + $0x268] sm:$0xff]
    %v4118 = vld [vmem:[#allocation8 + $0x270] sm:$0xff]
    %v4119 = vld [vmem:[#allocation8 + $0x278] sm:$0xff]
    %v4120 = vld [vmem:[#allocation8 + $0x280] sm:$0xff]
    %v4121 = vld [vmem:[#allocation8 + $0x288] sm:$0xff]
    %v4122 = vld [vmem:[#allocation8 + $0x290] sm:$0xff]
    %v4123 = vld [vmem:[#allocation8 + $0x298] sm:$0xff]
    %v4124 = vld [vmem:[#allocation8 + $0x2a0] sm:$0xff]
    %v4125 = vld [vmem:[#allocation8 + $0x2a8] sm:$0xff]
    %v4126 = vld [vmem:[#allocation8 + $0x2b0] sm:$0xff]
    %v4127 = vld [vmem:[#allocation8 + $0x2b8] sm:$0xff]
    %v4128 = vld [vmem:[#allocation8 + $0x2c0] sm:$0xff]
    %v4129 = vld [vmem:[#allocation8 + $0x2c8] sm:$0xff]
    %v4130 = vld [vmem:[#allocation8 + $0x2d0] sm:$0xff]
    %v4131 = vld [vmem:[#allocation8 + $0x2d8] sm:$0xff]
    %v4132 = vld [vmem:[#allocation8 + $0x2e0] sm:$0xff]
    %v4133 = vld [vmem:[#allocation8 + $0x2e8] sm:$0xff]
    %v4134 = vld [vmem:[#allocation8 + $0x2f0] sm:$0xff]
    %v4135 = vld [vmem:[#allocation8 + $0x2f8] sm:$0xff]
    %v4136 = vld [vmem:[#allocation8 + $0x300] sm:$0xff]
    %v4137 = vld [vmem:[#allocation8 + $0x308] sm:$0xff]
    %v4138 = vld [vmem:[#allocation8 + $0x310] sm:$0xff]
    %v4139 = vld [vmem:[#allocation8 + $0x318] sm:$0xff]
    %v4140 = vld [vmem:[#allocation8 + $0x320] sm:$0xff]
    %v4141 = vld [vmem:[#allocation8 + $0x328] sm:$0xff]
    %v4142 = vld [vmem:[#allocation8 + $0x330] sm:$0xff]
    %v4143 = vld [vmem:[#allocation8 + $0x338] sm:$0xff]
    %v4144 = vld [vmem:[#allocation8 + $0x340] sm:$0xff]
    %v4145 = vld [vmem:[#allocation8 + $0x348] sm:$0xff]
    %v4146 = vld [vmem:[#allocation8 + $0x350] sm:$0xff]
    %v4147 = vld [vmem:[#allocation8 + $0x358] sm:$0xff]
    %v4148 = vld [vmem:[#allocation8 + $0x360] sm:$0xff]
    %v4149 = vld [vmem:[#allocation8 + $0x368] sm:$0xff]
    %v4150 = vld [vmem:[#allocation8 + $0x370] sm:$0xff]
    %v4151 = vld [vmem:[#allocation8 + $0x378] sm:$0xff]
    %v4152 = vld [vmem:[#allocation8 + $0x380] sm:$0xff]
    %v4153 = vld [vmem:[#allocation8 + $0x388] sm:$0xff]
    %v4154 = vld [vmem:[#allocation8 + $0x390] sm:$0xff]
    %v4155 = vld [vmem:[#allocation8 + $0x398] sm:$0xff]
    %v4156 = vld [vmem:[#allocation8 + $0x3a0] sm:$0xff]
    %v4157 = vld [vmem:[#allocation8 + $0x3a8] sm:$0xff]
    %v4158 = vld [vmem:[#allocation8 + $0x3b0] sm:$0xff]
    %v4159 = vld [vmem:[#allocation8 + $0x3b8] sm:$0xff]
    %v4160 = vld [vmem:[#allocation8 + $0x3c0] sm:$0xff]
    %v4161 = vld [vmem:[#allocation8 + $0x3c8] sm:$0xff]
    %v4162 = vld [vmem:[#allocation8 + $0x3d0] sm:$0xff]
    %v4163 = vld [vmem:[#allocation8 + $0x3d8] sm:$0xff]
    %v4164 = vld [vmem:[#allocation8 + $0x3e0] sm:$0xff]
    %v4165 = vld [vmem:[#allocation8 + $0x3e8] sm:$0xff]
    %v4166 = vld [vmem:[#allocation8 + $0x3f0] sm:$0xff]
    %v4167 = vld [vmem:[#allocation8 + $0x3f8] sm:$0xff]
    %v4168 = vld [vmem:[#allocation8 + $0x400] sm:$0xff]
    %v4169 = vld [vmem:[#allocation8 + $0x408] sm:$0xff]
    %v4170 = vld [vmem:[#allocation8 + $0x410] sm:$0xff]
    %v4171 = vld [vmem:[#allocation8 + $0x418] sm:$0xff]
    %v4172 = vld [vmem:[#allocation8 + $0x420] sm:$0xff]
    %v4173 = vld [vmem:[#allocation8 + $0x428] sm:$0xff]
    %v4174 = vld [vmem:[#allocation8 + $0x430] sm:$0xff]
    %v4175 = vld [vmem:[#allocation8 + $0x438] sm:$0xff]
    %v4176 = vld [vmem:[#allocation8 + $0x440] sm:$0xff]
    %v4177 = vld [vmem:[#allocation8 + $0x448] sm:$0xff]
    %v4178 = vld [vmem:[#allocation8 + $0x450] sm:$0xff]
    %v4179 = vld [vmem:[#allocation8 + $0x458] sm:$0xff]
    %v4180 = vld [vmem:[#allocation8 + $0x460] sm:$0xff]
    %v4181 = vld [vmem:[#allocation8 + $0x468] sm:$0xff]
    %v4182 = vld [vmem:[#allocation8 + $0x470] sm:$0xff]
    %v4183 = vld [vmem:[#allocation8 + $0x478] sm:$0xff]
    %v4184 = vld [vmem:[#allocation8 + $0x480] sm:$0xff]
    %v4185 = vld [vmem:[#allocation8 + $0x488] sm:$0xff]
    %v4186 = vld [vmem:[#allocation8 + $0x490] sm:$0xff]
    %v4187 = vld [vmem:[#allocation8 + $0x498] sm:$0xff]
    %v4188 = vld [vmem:[#allocation8 + $0x4a0] sm:$0xff]
    %v4189 = vld [vmem:[#allocation8 + $0x4a8] sm:$0xff]
    %v4190 = vld [vmem:[#allocation8 + $0x4b0] sm:$0xff]
    %v4191 = vld [vmem:[#allocation8 + $0x4b8] sm:$0xff]
    %v4192 = vld [vmem:[#allocation8 + $0x4c0] sm:$0xff]
    %v4193 = vld [vmem:[#allocation8 + $0x4c8] sm:$0xff]
    %v4194 = vld [vmem:[#allocation8 + $0x4d0] sm:$0xff]
    %v4195 = vld [vmem:[#allocation8 + $0x4d8] sm:$0xff]
    %v4196 = vld [vmem:[#allocation8 + $0x4e0] sm:$0xff]
    %v4197 = vld [vmem:[#allocation8 + $0x4e8] sm:$0xff]
    %v4198 = vld [vmem:[#allocation8 + $0x4f0] sm:$0xff]
    %v4199 = vld [vmem:[#allocation8 + $0x4f8] sm:$0xff]
    %v4200 = vld [vmem:[#allocation8 + $0x500] sm:$0xff]
    %v4201 = vld [vmem:[#allocation8 + $0x508] sm:$0xff]
    %v4202 = vld [vmem:[#allocation8 + $0x510] sm:$0xff]
    %v4203 = vld [vmem:[#allocation8 + $0x518] sm:$0xff]
    %v4204 = vld [vmem:[#allocation8 + $0x520] sm:$0xff]
    %v4205 = vld [vmem:[#allocation8 + $0x528] sm:$0xff]
    %v4206 = vld [vmem:[#allocation8 + $0x530] sm:$0xff]
    %v4207 = vld [vmem:[#allocation8 + $0x538] sm:$0xff]
    %v4208 = vld [vmem:[#allocation8 + $0x540] sm:$0xff]
    %v4209 = vld [vmem:[#allocation8 + $0x548] sm:$0xff]
    %v4210 = vld [vmem:[#allocation8 + $0x550] sm:$0xff]
    %v4211 = vld [vmem:[#allocation8 + $0x558] sm:$0xff]
    %v4212 = vld [vmem:[#allocation8 + $0x560] sm:$0xff]
    %v4213 = vld [vmem:[#allocation8 + $0x568] sm:$0xff]
    %v4214 = vld [vmem:[#allocation8 + $0x570] sm:$0xff]
    %v4215 = vld [vmem:[#allocation8 + $0x578] sm:$0xff]
    %v4216 = vld [vmem:[#allocation8 + $0x580] sm:$0xff]
    %v4217 = vld [vmem:[#allocation8 + $0x588] sm:$0xff]
    %v4218 = vld [vmem:[#allocation8 + $0x590] sm:$0xff]
    %v4219 = vld [vmem:[#allocation8 + $0x598] sm:$0xff]
    %v4220 = vld [vmem:[#allocation8 + $0x5a0] sm:$0xff]
    %v4221 = vld [vmem:[#allocation8 + $0x5a8] sm:$0xff]
    %v4222 = vld [vmem:[#allocation8 + $0x5b0] sm:$0xff]
    %v4223 = vld [vmem:[#allocation8 + $0x5b8] sm:$0xff]
    %v4224 = vld [vmem:[#allocation8 + $0x5c0] sm:$0xff]
    %v4225 = vld [vmem:[#allocation8 + $0x5c8] sm:$0xff]
    %v4226 = vld [vmem:[#allocation8 + $0x5d0] sm:$0xff]
    %v4227 = vld [vmem:[#allocation8 + $0x5d8] sm:$0xff]
    %v4228 = vld [vmem:[#allocation8 + $0x5e0] sm:$0xff]
    %v4229 = vld [vmem:[#allocation8 + $0x5e8] sm:$0xff]
    %v4230 = vld [vmem:[#allocation8 + $0x5f0] sm:$0xff]
    %v4231 = vld [vmem:[#allocation8 + $0x5f8] sm:$0xff]
    %v4232 = vld [vmem:[%s4] sm:$0x1]
    %v4234 = vlaneseq
    %v4235 = vshrl.u32 %v4234, 7
    %v4236 = vsub.s32 0, %v4235
    %v4237 = vrot.slane %v4232, %v4236
    %4239 = vmatprep.subr.mxu0 0.0
    %4240 = vmatpush1.msra.mxu0 %v4055
    %4241 = vmatprep.subr.mxu0 0.0
    %4242 = vmatpush1.msra.mxu0 %v4054
    %4243 = vmatprep.subr.mxu0 0.0
    %4244 = vmatpush1.msra.mxu0 %v4053
    %4245 = vmatprep.subr.mxu0 0.0
    %4246 = vmatpush1.msra.mxu0 %v4052
    %4247 = vmatprep.subr.mxu0 0.0
    %4248 = vmatpush1.msra.mxu0 %v4051
    %4249 = vmatprep.subr.mxu0 0.0
    %4250 = vmatpush1.msra.mxu0 %v4050
    %4251 = vmatprep.subr.mxu0 0.0
    %4252 = vmatpush1.msra.mxu0 %v4049
    %4253 = vmatprep.subr.mxu0 0.0
    %4254 = vmatpush1.msra.mxu0 %v4048
    %4255 = vmatprep.subr.mxu0 0.0
    %4256 = vmatpush1.msra.mxu0 %v4047
    %4257 = vmatprep.subr.mxu0 0.0
    %4258 = vmatpush1.msra.mxu0 %v4046
    %4259 = vmatprep.subr.mxu0 0.0
    %4260 = vmatpush1.msra.mxu0 %v4045
    %4261 = vmatprep.subr.mxu0 0.0
    %4262 = vmatpush1.msra.mxu0 %v4044
    %4263 = vmatprep.subr.mxu0 0.0
    %4264 = vmatpush1.msra.mxu0 %v4043
    %4265 = vmatprep.subr.mxu0 0.0
    %4266 = vmatpush1.msra.mxu0 %v4042
    %4267 = vmatprep.subr.mxu0 0.0
    %4268 = vmatpush1.msra.mxu0 %v4041
    %4269 = vmatprep.subr.mxu0 0.0
    %4270 = vmatpush1.msra.mxu0 %v4040
    %4271 = vmatprep.subr.mxu0 0.0
    %4272 = vmatpush2.msra.mxu0 %v4071
    %4273 = vmatprep.subr.mxu0 0.0
    %4274 = vmatpush2.msra.mxu0 %v4070
    %4275 = vmatprep.subr.mxu0 0.0
    %4276 = vmatpush2.msra.mxu0 %v4069
    %4277 = vmatprep.subr.mxu0 0.0
    %4278 = vmatpush2.msra.mxu0 %v4068
    %4279 = vmatprep.subr.mxu0 0.0
    %4280 = vmatpush2.msra.mxu0 %v4067
    %4281 = vmatprep.subr.mxu0 0.0
    %4282 = vmatpush2.msra.mxu0 %v4066
    %4283 = vmatprep.subr.mxu0 0.0
    %4284 = vmatpush2.msra.mxu0 %v4065
    %4285 = vmatprep.subr.mxu0 0.0
    %4286 = vmatpush2.msra.mxu0 %v4064
    %4287 = vmatprep.subr.mxu0 0.0
    %4288 = vmatpush2.msra.mxu0 %v4063
    %4289 = vmatprep.subr.mxu0 0.0
    %4290 = vmatpush2.msra.mxu0 %v4062
    %4291 = vmatprep.subr.mxu0 0.0
    %4292 = vmatpush2.msra.mxu0 %v4061
    %4293 = vmatprep.subr.mxu0 0.0
    %4294 = vmatpush2.msra.mxu0 %v4060
    %4295 = vmatprep.subr.mxu0 0.0
    %4296 = vmatpush2.msra.mxu0 %v4059
    %4297 = vmatprep.subr.mxu0 0.0
    %4298 = vmatpush2.msra.mxu0 %v4058
    %4299 = vmatprep.subr.mxu0 0.0
    %4300 = vmatpush2.msra.mxu0 %v4057
    %4301 = vmatprep.subr.mxu0 0.0
    %4302 = vmatpush2.msra.mxu0 %v4056
    %4303 = vmatprep.mubr.f32.mxu0 %v3993
    %4304 = vmatmul.mubr.f32.gmra.mxu0 %v3992
    %v4305 = vpop.f32.mrf.mxu0
    %v4306 = vadd.f32 %v4237, %v4305
    %v4307 = vpop.f32.mrf.mxu0
    %4308 = vmatprep.mubr.f32.mxu0 %v4005
    %4309 = vmatmul.mubr.f32.gmra.mxu0 %v4004
    %v4310 = vpop.f32.mrf.mxu0
    %v4311 = vadd.f32 %v4237, %v4310
    %v4312 = vpop.f32.mrf.mxu0
    %4313 = vmatprep.mubr.f32.mxu0 %v4017
    %4314 = vmatmul.mubr.f32.gmra.mxu0 %v4016
    %v4315 = vpop.f32.mrf.mxu0
    %v4316 = vadd.f32 %v4237, %v4315
    %v4317 = vpop.f32.mrf.mxu0
    %4318 = vmatprep.mubr.f32.mxu0 %v4029
    %4319 = vmatmul.mubr.f32.gmra.mxu0 %v4028
    %v4320 = vpop.f32.mrf.mxu0
    %v4321 = vadd.f32 %v4237, %v4320
    %v4322 = vpop.f32.mrf.mxu0
    %4323 = vdwg.mxu0
    %4324 = vmatprep.subr.mxu0 0.0
    %4325 = vmatpush1.msra.mxu0 %v4087
    %4326 = vmatprep.subr.mxu0 0.0
    %4327 = vmatpush1.msra.mxu0 %v4086
    %4328 = vmatprep.subr.mxu0 0.0
    %4329 = vmatpush1.msra.mxu0 %v4085
    %4330 = vmatprep.subr.mxu0 0.0
    %4331 = vmatpush1.msra.mxu0 %v4084
    %4332 = vmatprep.subr.mxu0 0.0
    %4333 = vmatpush1.msra.mxu0 %v4083
    %4334 = vmatprep.subr.mxu0 0.0
    %4335 = vmatpush1.msra.mxu0 %v4082
    %4336 = vmatprep.subr.mxu0 0.0
    %4337 = vmatpush1.msra.mxu0 %v4081
    %4338 = vmatprep.subr.mxu0 0.0
    %4339 = vmatpush1.msra.mxu0 %v4080
    %4340 = vmatprep.subr.mxu0 0.0
    %4341 = vmatpush1.msra.mxu0 %v4079
    %4342 = vmatprep.subr.mxu0 0.0
    %4343 = vmatpush1.msra.mxu0 %v4078
    %4344 = vmatprep.subr.mxu0 0.0
    %4345 = vmatpush1.msra.mxu0 %v4077
    %4346 = vmatprep.subr.mxu0 0.0
    %4347 = vmatpush1.msra.mxu0 %v4076
    %4348 = vmatprep.subr.mxu0 0.0
    %4349 = vmatpush1.msra.mxu0 %v4075
    %4350 = vmatprep.subr.mxu0 0.0
    %4351 = vmatpush1.msra.mxu0 %v4074
    %4352 = vmatprep.subr.mxu0 0.0
    %4353 = vmatpush1.msra.mxu0 %v4073
    %4354 = vmatprep.subr.mxu0 0.0
    %4355 = vmatpush1.msra.mxu0 %v4072
    %4356 = vmatprep.subr.mxu0 0.0
    %4357 = vmatpush2.msra.mxu0 %v4103
    %4358 = vmatprep.subr.mxu0 0.0
    %4359 = vmatpush2.msra.mxu0 %v4102
    %4360 = vmatprep.subr.mxu0 0.0
    %4361 = vmatpush2.msra.mxu0 %v4101
    %4362 = vmatprep.subr.mxu0 0.0
    %4363 = vmatpush2.msra.mxu0 %v4100
    %4364 = vmatprep.subr.mxu0 0.0
    %4365 = vmatpush2.msra.mxu0 %v4099
    %4366 = vmatprep.subr.mxu0 0.0
    %4367 = vmatpush2.msra.mxu0 %v4098
    %4368 = vmatprep.subr.mxu0 0.0
    %4369 = vmatpush2.msra.mxu0 %v4097
    %4370 = vmatprep.subr.mxu0 0.0
    %4371 = vmatpush2.msra.mxu0 %v4096
    %4372 = vmatprep.subr.mxu0 0.0
    %4373 = vmatpush2.msra.mxu0 %v4095
    %4374 = vmatprep.subr.mxu0 0.0
    %4375 = vmatpush2.msra.mxu0 %v4094
    %4376 = vmatprep.subr.mxu0 0.0
    %4377 = vmatpush2.msra.mxu0 %v4093
    %4378 = vmatprep.subr.mxu0 0.0
    %4379 = vmatpush2.msra.mxu0 %v4092
    %4380 = vmatprep.subr.mxu0 0.0
    %4381 = vmatpush2.msra.mxu0 %v4091
    %4382 = vmatprep.subr.mxu0 0.0
    %4383 = vmatpush2.msra.mxu0 %v4090
    %4384 = vmatprep.subr.mxu0 0.0
    %4385 = vmatpush2.msra.mxu0 %v4089
    %4386 = vmatprep.subr.mxu0 0.0
    %4387 = vmatpush2.msra.mxu0 %v4088
    %4388 = vmatprep.mubr.f32.mxu0 %v3995
    %4389 = vmatmul.mubr.f32.gmra.mxu0 %v3994
    %v4390 = vpop.f32.mrf.mxu0
    %v4391 = vadd.f32 %v4306, %v4390
    %v4392 = vpop.f32.mrf.mxu0
    %4393 = vmatprep.mubr.f32.mxu0 %v4007
    %4394 = vmatmul.mubr.f32.gmra.mxu0 %v4006
    %v4395 = vpop.f32.mrf.mxu0
    %v4396 = vadd.f32 %v4311, %v4395
    %v4397 = vpop.f32.mrf.mxu0
    %4398 = vmatprep.mubr.f32.mxu0 %v4019
    %4399 = vmatmul.mubr.f32.gmra.mxu0 %v4018
    %v4400 = vpop.f32.mrf.mxu0
    %v4401 = vadd.f32 %v4316, %v4400
    %v4402 = vpop.f32.mrf.mxu0
    %4403 = vmatprep.mubr.f32.mxu0 %v4031
    %4404 = vmatmul.mubr.f32.gmra.mxu0 %v4030
    %v4405 = vpop.f32.mrf.mxu0
    %v4406 = vadd.f32 %v4321, %v4405
    %v4407 = vpop.f32.mrf.mxu0
    %4408 = vdwg.mxu0
    %4409 = vmatprep.subr.mxu0 0.0
    %4410 = vmatpush1.msra.mxu0 %v4119
    %4411 = vmatprep.subr.mxu0 0.0
    %4412 = vmatpush1.msra.mxu0 %v4118
    %4413 = vmatprep.subr.mxu0 0.0
    %4414 = vmatpush1.msra.mxu0 %v4117
    %4415 = vmatprep.subr.mxu0 0.0
    %4416 = vmatpush1.msra.mxu0 %v4116
    %4417 = vmatprep.subr.mxu0 0.0
    %4418 = vmatpush1.msra.mxu0 %v4115
    %4419 = vmatprep.subr.mxu0 0.0
    %4420 = vmatpush1.msra.mxu0 %v4114
    %4421 = vmatprep.subr.mxu0 0.0
    %4422 = vmatpush1.msra.mxu0 %v4113
    %4423 = vmatprep.subr.mxu0 0.0
    %4424 = vmatpush1.msra.mxu0 %v4112
    %4425 = vmatprep.subr.mxu0 0.0
    %4426 = vmatpush1.msra.mxu0 %v4111
    %4427 = vmatprep.subr.mxu0 0.0
    %4428 = vmatpush1.msra.mxu0 %v4110
    %4429 = vmatprep.subr.mxu0 0.0
    %4430 = vmatpush1.msra.mxu0 %v4109
    %4431 = vmatprep.subr.mxu0 0.0
    %4432 = vmatpush1.msra.mxu0 %v4108
    %4433 = vmatprep.subr.mxu0 0.0
    %4434 = vmatpush1.msra.mxu0 %v4107
    %4435 = vmatprep.subr.mxu0 0.0
    %4436 = vmatpush1.msra.mxu0 %v4106
    %4437 = vmatprep.subr.mxu0 0.0
    %4438 = vmatpush1.msra.mxu0 %v4105
    %4439 = vmatprep.subr.mxu0 0.0
    %4440 = vmatpush1.msra.mxu0 %v4104
    %4441 = vmatprep.subr.mxu0 0.0
    %4442 = vmatpush2.msra.mxu0 %v4135
    %4443 = vmatprep.subr.mxu0 0.0
    %4444 = vmatpush2.msra.mxu0 %v4134
    %4445 = vmatprep.subr.mxu0 0.0
    %4446 = vmatpush2.msra.mxu0 %v4133
    %4447 = vmatprep.subr.mxu0 0.0
    %4448 = vmatpush2.msra.mxu0 %v4132
    %4449 = vmatprep.subr.mxu0 0.0
    %4450 = vmatpush2.msra.mxu0 %v4131
    %4451 = vmatprep.subr.mxu0 0.0
    %4452 = vmatpush2.msra.mxu0 %v4130
    %4453 = vmatprep.subr.mxu0 0.0
    %4454 = vmatpush2.msra.mxu0 %v4129
    %4455 = vmatprep.subr.mxu0 0.0
    %4456 = vmatpush2.msra.mxu0 %v4128
    %4457 = vmatprep.subr.mxu0 0.0
    %4458 = vmatpush2.msra.mxu0 %v4127
    %4459 = vmatprep.subr.mxu0 0.0
    %4460 = vmatpush2.msra.mxu0 %v4126
    %4461 = vmatprep.subr.mxu0 0.0
    %4462 = vmatpush2.msra.mxu0 %v4125
    %4463 = vmatprep.subr.mxu0 0.0
    %4464 = vmatpush2.msra.mxu0 %v4124
    %4465 = vmatprep.subr.mxu0 0.0
    %4466 = vmatpush2.msra.mxu0 %v4123
    %4467 = vmatprep.subr.mxu0 0.0
    %4468 = vmatpush2.msra.mxu0 %v4122
    %4469 = vmatprep.subr.mxu0 0.0
    %4470 = vmatpush2.msra.mxu0 %v4121
    %4471 = vmatprep.subr.mxu0 0.0
    %4472 = vmatpush2.msra.mxu0 %v4120
    %4473 = vmatprep.mubr.f32.mxu0 %v3997
    %4474 = vmatmul.mubr.f32.gmra.mxu0 %v3996
    %v4475 = vpop.f32.mrf.mxu0
    %v4476 = vadd.f32 %v4391, %v4475
    %v4477 = vpop.f32.mrf.mxu0
    %4478 = vmatprep.mubr.f32.mxu0 %v4009
    %4479 = vmatmul.mubr.f32.gmra.mxu0 %v4008
    %v4480 = vpop.f32.mrf.mxu0
    %v4481 = vadd.f32 %v4396, %v4480
    %v4482 = vpop.f32.mrf.mxu0
    %4483 = vmatprep.mubr.f32.mxu0 %v4021
    %4484 = vmatmul.mubr.f32.gmra.mxu0 %v4020
    %v4485 = vpop.f32.mrf.mxu0
    %v4486 = vadd.f32 %v4401, %v4485
    %v4487 = vpop.f32.mrf.mxu0
    %4488 = vmatprep.mubr.f32.mxu0 %v4033
    %4489 = vmatmul.mubr.f32.gmra.mxu0 %v4032
    %v4490 = vpop.f32.mrf.mxu0
    %v4491 = vadd.f32 %v4406, %v4490
    %v4492 = vpop.f32.mrf.mxu0
    %4493 = vdwg.mxu0
    %4494 = vmatprep.subr.mxu0 0.0
    %4495 = vmatpush1.msra.mxu0 %v4151
    %4496 = vmatprep.subr.mxu0 0.0
    %4497 = vmatpush1.msra.mxu0 %v4150
    %4498 = vmatprep.subr.mxu0 0.0
    %4499 = vmatpush1.msra.mxu0 %v4149
    %4500 = vmatprep.subr.mxu0 0.0
    %4501 = vmatpush1.msra.mxu0 %v4148
    %4502 = vmatprep.subr.mxu0 0.0
    %4503 = vmatpush1.msra.mxu0 %v4147
    %4504 = vmatprep.subr.mxu0 0.0
    %4505 = vmatpush1.msra.mxu0 %v4146
    %4506 = vmatprep.subr.mxu0 0.0
    %4507 = vmatpush1.msra.mxu0 %v4145
    %4508 = vmatprep.subr.mxu0 0.0
    %4509 = vmatpush1.msra.mxu0 %v4144
    %4510 = vmatprep.subr.mxu0 0.0
    %4511 = vmatpush1.msra.mxu0 %v4143
    %4512 = vmatprep.subr.mxu0 0.0
    %4513 = vmatpush1.msra.mxu0 %v4142
    %4514 = vmatprep.subr.mxu0 0.0
    %4515 = vmatpush1.msra.mxu0 %v4141
    %4516 = vmatprep.subr.mxu0 0.0
    %4517 = vmatpush1.msra.mxu0 %v4140
    %4518 = vmatprep.subr.mxu0 0.0
    %4519 = vmatpush1.msra.mxu0 %v4139
    %4520 = vmatprep.subr.mxu0 0.0
    %4521 = vmatpush1.msra.mxu0 %v4138
    %4522 = vmatprep.subr.mxu0 0.0
    %4523 = vmatpush1.msra.mxu0 %v4137
    %4524 = vmatprep.subr.mxu0 0.0
    %4525 = vmatpush1.msra.mxu0 %v4136
    %4526 = vmatprep.subr.mxu0 0.0
    %4527 = vmatpush2.msra.mxu0 %v4167
    %4528 = vmatprep.subr.mxu0 0.0
    %4529 = vmatpush2.msra.mxu0 %v4166
    %4530 = vmatprep.subr.mxu0 0.0
    %4531 = vmatpush2.msra.mxu0 %v4165
    %4532 = vmatprep.subr.mxu0 0.0
    %4533 = vmatpush2.msra.mxu0 %v4164
    %4534 = vmatprep.subr.mxu0 0.0
    %4535 = vmatpush2.msra.mxu0 %v4163
    %4536 = vmatprep.subr.mxu0 0.0
    %4537 = vmatpush2.msra.mxu0 %v4162
    %4538 = vmatprep.subr.mxu0 0.0
    %4539 = vmatpush2.msra.mxu0 %v4161
    %4540 = vmatprep.subr.mxu0 0.0
    %4541 = vmatpush2.msra.mxu0 %v4160
    %4542 = vmatprep.subr.mxu0 0.0
    %4543 = vmatpush2.msra.mxu0 %v4159
    %4544 = vmatprep.subr.mxu0 0.0
    %4545 = vmatpush2.msra.mxu0 %v4158
    %4546 = vmatprep.subr.mxu0 0.0
    %4547 = vmatpush2.msra.mxu0 %v4157
    %4548 = vmatprep.subr.mxu0 0.0
    %4549 = vmatpush2.msra.mxu0 %v4156
    %4550 = vmatprep.subr.mxu0 0.0
    %4551 = vmatpush2.msra.mxu0 %v4155
    %4552 = vmatprep.subr.mxu0 0.0
    %4553 = vmatpush2.msra.mxu0 %v4154
    %4554 = vmatprep.subr.mxu0 0.0
    %4555 = vmatpush2.msra.mxu0 %v4153
    %4556 = vmatprep.subr.mxu0 0.0
    %4557 = vmatpush2.msra.mxu0 %v4152
    %4558 = vmatprep.mubr.f32.mxu0 %v3999
    %4559 = vmatmul.mubr.f32.gmra.mxu0 %v3998
    %v4560 = vpop.f32.mrf.mxu0
    %v4561 = vadd.f32 %v4476, %v4560
    %v4562 = vpop.f32.mrf.mxu0
    %4563 = vmatprep.mubr.f32.mxu0 %v4011
    %4564 = vmatmul.mubr.f32.gmra.mxu0 %v4010
    %v4565 = vpop.f32.mrf.mxu0
    %v4566 = vadd.f32 %v4481, %v4565
    %v4567 = vpop.f32.mrf.mxu0
    %4568 = vmatprep.mubr.f32.mxu0 %v4023
    %4569 = vmatmul.mubr.f32.gmra.mxu0 %v4022
    %v4570 = vpop.f32.mrf.mxu0
    %v4571 = vadd.f32 %v4486, %v4570
    %v4572 = vpop.f32.mrf.mxu0
    %4573 = vmatprep.mubr.f32.mxu0 %v4035
    %4574 = vmatmul.mubr.f32.gmra.mxu0 %v4034
    %v4575 = vpop.f32.mrf.mxu0
    %v4576 = vadd.f32 %v4491, %v4575
    %v4577 = vpop.f32.mrf.mxu0
    %4578 = vdwg.mxu0
    %4579 = vmatprep.subr.mxu0 0.0
    %4580 = vmatpush1.msra.mxu0 %v4183
    %4581 = vmatprep.subr.mxu0 0.0
    %4582 = vmatpush1.msra.mxu0 %v4182
    %4583 = vmatprep.subr.mxu0 0.0
    %4584 = vmatpush1.msra.mxu0 %v4181
    %4585 = vmatprep.subr.mxu0 0.0
    %4586 = vmatpush1.msra.mxu0 %v4180
    %4587 = vmatprep.subr.mxu0 0.0
    %4588 = vmatpush1.msra.mxu0 %v4179
    %4589 = vmatprep.subr.mxu0 0.0
    %4590 = vmatpush1.msra.mxu0 %v4178
    %4591 = vmatprep.subr.mxu0 0.0
    %4592 = vmatpush1.msra.mxu0 %v4177
    %4593 = vmatprep.subr.mxu0 0.0
    %4594 = vmatpush1.msra.mxu0 %v4176
    %4595 = vmatprep.subr.mxu0 0.0
    %4596 = vmatpush1.msra.mxu0 %v4175
    %4597 = vmatprep.subr.mxu0 0.0
    %4598 = vmatpush1.msra.mxu0 %v4174
    %4599 = vmatprep.subr.mxu0 0.0
    %4600 = vmatpush1.msra.mxu0 %v4173
    %4601 = vmatprep.subr.mxu0 0.0
    %4602 = vmatpush1.msra.mxu0 %v4172
    %4603 = vmatprep.subr.mxu0 0.0
    %4604 = vmatpush1.msra.mxu0 %v4171
    %4605 = vmatprep.subr.mxu0 0.0
    %4606 = vmatpush1.msra.mxu0 %v4170
    %4607 = vmatprep.subr.mxu0 0.0
    %4608 = vmatpush1.msra.mxu0 %v4169
    %4609 = vmatprep.subr.mxu0 0.0
    %4610 = vmatpush1.msra.mxu0 %v4168
    %4611 = vmatprep.subr.mxu0 0.0
    %4612 = vmatpush2.msra.mxu0 %v4199
    %4613 = vmatprep.subr.mxu0 0.0
    %4614 = vmatpush2.msra.mxu0 %v4198
    %4615 = vmatprep.subr.mxu0 0.0
    %4616 = vmatpush2.msra.mxu0 %v4197
    %4617 = vmatprep.subr.mxu0 0.0
    %4618 = vmatpush2.msra.mxu0 %v4196
    %4619 = vmatprep.subr.mxu0 0.0
    %4620 = vmatpush2.msra.mxu0 %v4195
    %4621 = vmatprep.subr.mxu0 0.0
    %4622 = vmatpush2.msra.mxu0 %v4194
    %4623 = vmatprep.subr.mxu0 0.0
    %4624 = vmatpush2.msra.mxu0 %v4193
    %4625 = vmatprep.subr.mxu0 0.0
    %4626 = vmatpush2.msra.mxu0 %v4192
    %4627 = vmatprep.subr.mxu0 0.0
    %4628 = vmatpush2.msra.mxu0 %v4191
    %4629 = vmatprep.subr.mxu0 0.0
    %4630 = vmatpush2.msra.mxu0 %v4190
    %4631 = vmatprep.subr.mxu0 0.0
    %4632 = vmatpush2.msra.mxu0 %v4189
    %4633 = vmatprep.subr.mxu0 0.0
    %4634 = vmatpush2.msra.mxu0 %v4188
    %4635 = vmatprep.subr.mxu0 0.0
    %4636 = vmatpush2.msra.mxu0 %v4187
    %4637 = vmatprep.subr.mxu0 0.0
    %4638 = vmatpush2.msra.mxu0 %v4186
    %4639 = vmatprep.subr.mxu0 0.0
    %4640 = vmatpush2.msra.mxu0 %v4185
    %4641 = vmatprep.subr.mxu0 0.0
    %4642 = vmatpush2.msra.mxu0 %v4184
    %4643 = vmatprep.mubr.f32.mxu0 %v4001
    %4644 = vmatmul.mubr.f32.gmra.mxu0 %v4000
    %v4645 = vpop.f32.mrf.mxu0
    %v4646 = vadd.f32 %v4561, %v4645
    %v4647 = vpop.f32.mrf.mxu0
    %4648 = vmatprep.mubr.f32.mxu0 %v4013
    %4649 = vmatmul.mubr.f32.gmra.mxu0 %v4012
    %v4650 = vpop.f32.mrf.mxu0
    %v4651 = vadd.f32 %v4566, %v4650
    %v4652 = vpop.f32.mrf.mxu0
    %4653 = vmatprep.mubr.f32.mxu0 %v4025
    %4654 = vmatmul.mubr.f32.gmra.mxu0 %v4024
    %v4655 = vpop.f32.mrf.mxu0
    %v4656 = vadd.f32 %v4571, %v4655
    %v4657 = vpop.f32.mrf.mxu0
    %4658 = vmatprep.mubr.f32.mxu0 %v4037
    %4659 = vmatmul.mubr.f32.gmra.mxu0 %v4036
    %v4660 = vpop.f32.mrf.mxu0
    %v4661 = vadd.f32 %v4576, %v4660
    %v4662 = vpop.f32.mrf.mxu0
    %4663 = vdwg.mxu0
    %4664 = vmatprep.subr.mxu0 0.0
    %4665 = vmatpush1.msra.mxu0 %v4215
    %4666 = vmatprep.subr.mxu0 0.0
    %4667 = vmatpush1.msra.mxu0 %v4214
    %4668 = vmatprep.subr.mxu0 0.0
    %4669 = vmatpush1.msra.mxu0 %v4213
    %4670 = vmatprep.subr.mxu0 0.0
    %4671 = vmatpush1.msra.mxu0 %v4212
    %4672 = vmatprep.subr.mxu0 0.0
    %4673 = vmatpush1.msra.mxu0 %v4211
    %4674 = vmatprep.subr.mxu0 0.0
    %4675 = vmatpush1.msra.mxu0 %v4210
    %4676 = vmatprep.subr.mxu0 0.0
    %4677 = vmatpush1.msra.mxu0 %v4209
    %4678 = vmatprep.subr.mxu0 0.0
    %4679 = vmatpush1.msra.mxu0 %v4208
    %4680 = vmatprep.subr.mxu0 0.0
    %4681 = vmatpush1.msra.mxu0 %v4207
    %4682 = vmatprep.subr.mxu0 0.0
    %4683 = vmatpush1.msra.mxu0 %v4206
    %4684 = vmatprep.subr.mxu0 0.0
    %4685 = vmatpush1.msra.mxu0 %v4205
    %4686 = vmatprep.subr.mxu0 0.0
    %4687 = vmatpush1.msra.mxu0 %v4204
    %4688 = vmatprep.subr.mxu0 0.0
    %4689 = vmatpush1.msra.mxu0 %v4203
    %4690 = vmatprep.subr.mxu0 0.0
    %4691 = vmatpush1.msra.mxu0 %v4202
    %4692 = vmatprep.subr.mxu0 0.0
    %4693 = vmatpush1.msra.mxu0 %v4201
    %4694 = vmatprep.subr.mxu0 0.0
    %4695 = vmatpush1.msra.mxu0 %v4200
    %4696 = vmatprep.subr.mxu0 0.0
    %4697 = vmatpush2.msra.mxu0 %v4231
    %4698 = vmatprep.subr.mxu0 0.0
    %4699 = vmatpush2.msra.mxu0 %v4230
    %4700 = vmatprep.subr.mxu0 0.0
    %4701 = vmatpush2.msra.mxu0 %v4229
    %4702 = vmatprep.subr.mxu0 0.0
    %4703 = vmatpush2.msra.mxu0 %v4228
    %4704 = vmatprep.subr.mxu0 0.0
    %4705 = vmatpush2.msra.mxu0 %v4227
    %4706 = vmatprep.subr.mxu0 0.0
    %4707 = vmatpush2.msra.mxu0 %v4226
    %4708 = vmatprep.subr.mxu0 0.0
    %4709 = vmatpush2.msra.mxu0 %v4225
    %4710 = vmatprep.subr.mxu0 0.0
    %4711 = vmatpush2.msra.mxu0 %v4224
    %4712 = vmatprep.subr.mxu0 0.0
    %4713 = vmatpush2.msra.mxu0 %v4223
    %4714 = vmatprep.subr.mxu0 0.0
    %4715 = vmatpush2.msra.mxu0 %v4222
    %4716 = vmatprep.subr.mxu0 0.0
    %4717 = vmatpush2.msra.mxu0 %v4221
    %4718 = vmatprep.subr.mxu0 0.0
    %4719 = vmatpush2.msra.mxu0 %v4220
    %4720 = vmatprep.subr.mxu0 0.0
    %4721 = vmatpush2.msra.mxu0 %v4219
    %4722 = vmatprep.subr.mxu0 0.0
    %4723 = vmatpush2.msra.mxu0 %v4218
    %4724 = vmatprep.subr.mxu0 0.0
    %4725 = vmatpush2.msra.mxu0 %v4217
    %4726 = vmatprep.subr.mxu0 0.0
    %4727 = vmatpush2.msra.mxu0 %v4216
    %4728 = vmatprep.mubr.f32.mxu0 %v4003
    %4729 = vmatmul.mubr.f32.gmra.mxu0 %v4002
    %v4730 = vpop.f32.mrf.mxu0
    %v4731 = vadd.f32 %v4646, %v4730
    %v4732 = vpop.f32.mrf.mxu0
    %4733 = vmatprep.mubr.f32.mxu0 %v4015
    %4734 = vmatmul.mubr.f32.gmra.mxu0 %v4014
    %v4735 = vpop.f32.mrf.mxu0
    %v4736 = vadd.f32 %v4651, %v4735
    %v4737 = vpop.f32.mrf.mxu0
    %4738 = vmatprep.mubr.f32.mxu0 %v4027
    %4739 = vmatmul.mubr.f32.gmra.mxu0 %v4026
    %v4740 = vpop.f32.mrf.mxu0
    %v4741 = vadd.f32 %v4656, %v4740
    %v4742 = vpop.f32.mrf.mxu0
    %4743 = vmatprep.mubr.f32.mxu0 %v4039
    %4744 = vmatmul.mubr.f32.gmra.mxu0 %v4038
    %v4745 = vpop.f32.mrf.mxu0
    %v4746 = vadd.f32 %v4661, %v4745
    %v4747 = vpop.f32.mrf.mxu0
    %4748 = vdwg.mxu0
    %4749 = vst [vmem:[#allocation9] sm:$0xff] %v4731
    %4750 = vst [vmem:[#allocation9 + $0x8] sm:$0xff] %v4736
    %4751 = vst [vmem:[#allocation9 + $0x10] sm:$0xff] %v4741
    %4752 = vst [vmem:[#allocation9 + $0x18] sm:$0xff] %v4746
    // Predicated region
    $region34: #{tpu_custom_call.1} parent=1 // pred_check
      _
    $region35: #{tpu_custom_call.1} parent=1 // pred_check_branch
      %4754 = sbr.rel (0) target = $region37
    $region36: #{tpu_custom_call.1} parent=1 // pred_region
      %s4756 = ssub.s32 512, 512
      %4757 = vsyncadd [#allocation5], %s4756
      %s4758 = sshll.u32 [#allocation9], 4
      %s4759 = int_to_ptr.vmem [resolvable:$true] %s4758
      %4764 = dma.vmem_to_hbm [thread:$0]  %s4759, 512, %s5, [#allocation5], 128, 128, 8
    $region37: #{tpu_custom_call.1} parent=1 // pred_fallthru
      _
    // Predicated region
    $region38: #{tpu_custom_call.1} parent=1 // pred_check
      _
    $region39: #{tpu_custom_call.1} parent=1 // pred_check_branch
      %4766 = sbr.rel (0) target = $region41
    $region40: #{tpu_custom_call.1} parent=1 // pred_region
      %4767 = dma.done [#allocation5], 512
    $region41: #{tpu_custom_call.1} parent=1 // pred_fallthru
      _
    %4768 = vsyncpa [#allocation4], 1
    %4769 = vsyncpa [#allocation7], 1
    %4770 = vsyncpa [#allocation5], 1

</llo_original>
